<compile_context>
chip_gen: v5e
topology: v5e:2x2
jax: 0.10.0
libtpu: 0.0.40
codegen_flags: <defaults>
</compile_context>

<pallas_src>
import jax
import jax.numpy as jnp
import numpy as np
from jax import lax
from jax.experimental import pallas as pl
from jax.experimental.pallas import tpu as pltpu


# ------------------------- Pallas kernel -------------------------
def encoder_gru_kernel(emb_ref,                      # (T*BT, E)   bf16, time-major tile
                       wih_f_ref, wih_b_ref,         # (E, 3Hp)    bf16
                       bih_f_ref, bih_b_ref,         # (1, 3Hp)    f32 (r,z hidden bias folded in)
                       whh_f_ref, whh_b_ref,         # (Hp, 3Hp)   bf16
                       bhhn_f_ref, bhhn_b_ref,       # (1, Hp)     f32 (n-gate hidden bias)
                       fcw_f_ref, fcw_b_ref,         # (Hp, Hp)    f32
                       fcb_ref,                      # (1, Hp)     f32
                       out_f_ref, out_b_ref,         # (T, BT, Hp) f32
                       hdec_ref,                     # (BT, Hp)    f32
                       gi_f_ref, gi_b_ref):          # (T*BT, 3Hp) bf16 VMEM scratch
    T = out_f_ref.shape[0]
    BT = out_f_ref.shape[1]
    Hp = hdec_ref.shape[1]

    # ---- Phase 1: hoisted input projection (no serial dependence on h) ----
    # One bf16 MXU GEMM per direction over all timesteps of this batch tile,
    # bias (with folded r/z hidden bias) fused; stored down to bf16 scratch.
    emb = emb_ref[...]
    gi_f_ref[...] = (
        jnp.dot(emb, wih_f_ref[...], preferred_element_type=jnp.float32)
        + bih_f_ref[...]).astype(jnp.bfloat16)
    gi_b_ref[...] = (
        jnp.dot(emb, wih_b_ref[...], preferred_element_type=jnp.float32)
        + bih_b_ref[...]).astype(jnp.bfloat16)

    # ---- Hoist loop-invariant loads out of the recurrence ----
    whh_f = whh_f_ref[...]                 # bf16
    whh_b = whh_b_ref[...]                 # bf16
    bhhn_f = bhhn_f_ref[...]               # (1, Hp) f32, broadcast-add in loop
    bhhn_b = bhhn_b_ref[...]

    def gru_gates(gi, h_prev, whh, bhh_n):
        # PyTorch GRU gate order: [r, z, n].  bf16 matmul, f32 gate math.
        gh = jnp.dot(h_prev.astype(jnp.bfloat16), whh,
                     preferred_element_type=jnp.float32)
        r = jax.nn.sigmoid(gi[:, 0:Hp] + gh[:, 0:Hp])
        z = jax.nn.sigmoid(gi[:, Hp:2 * Hp] + gh[:, Hp:2 * Hp])
        n = jnp.tanh(gi[:, 2 * Hp:3 * Hp] + r * (gh[:, 2 * Hp:3 * Hp] + bhh_n))
        return (1.0 - z) * n + z * h_prev

    # ---- Phase 2: fused fwd/bwd recurrence (both chains per iteration) ----
    def body(t, carry):
        h_f, h_b = carry
        tb = T - 1 - t
        row_f = pl.multiple_of(t * BT, BT)
        row_b = pl.multiple_of(tb * BT, BT)
        gi_f = gi_f_ref[pl.ds(row_f, BT), :].astype(jnp.float32)
        gi_b = gi_b_ref[pl.ds(row_b, BT), :].astype(jnp.float32)
        h_f_new = gru_gates(gi_f, h_f, whh_f, bhhn_f)
        h_b_new = gru_gates(gi_b, h_b, whh_b, bhhn_b)
        out_f_ref[t, :, :] = h_f_new
        out_b_ref[tb, :, :] = h_b_new
        return (h_f_new, h_b_new)

    h0 = jnp.zeros((BT, Hp), jnp.float32)
    unroll = True if T <= 32 else 8
    h_f_last, h_b_last = lax.fori_loop(0, T, body, (h0, h0), unroll=unroll)

    # ---- Phase 3: hidden = tanh(fc(cat(h_fwd, h_bwd))) without the concat ----
    hdec_ref[...] = jnp.tanh(
        jnp.dot(h_f_last, fcw_f_ref[...], preferred_element_type=jnp.float32)
        + jnp.dot(h_b_last, fcw_b_ref[...], preferred_element_type=jnp.float32)
        + fcb_ref[...])


# ------------------------- helpers -------------------------
def _round_up(x, m):
    return ((x + m - 1) // m) * m


def _vmem_capacity_bytes():
    try:
        return int(pltpu.get_tpu_info().vmem_capacity_bytes)
    except Exception:
        return 64 * 1024 * 1024      # conservative default (v7x per-TC)


def _tile_vmem_bytes(T, BT, E, Hp):
    """Rough per-tile resident VMEM in BYTES (double-buffered gridded arrays)."""
    bf, f4 = 2, 4
    emb_t = 2 * T * BT * E * bf                       # emb tile, x2 buffers
    out_t = 2 * 2 * T * BT * Hp * f4                  # out_f + out_b, x2 buffers
    hdec_t = 2 * BT * Hp * f4
    gi_t = 2 * T * BT * 3 * Hp * bf                   # gi_f + gi_b scratch (single)
    live = T * BT * 3 * Hp * f4                       # phase-1 f32 dot result
    weights = 2 * (2 * E * 3 * Hp * bf + 2 * 3 * Hp * f4
                   + 2 * Hp * 3 * Hp * bf + 2 * Hp * f4
                   + 2 * Hp * Hp * f4 + Hp * f4)
    return emb_t + out_t + hdec_t + gi_t + live + weights


# ------------------------- wrapper -------------------------
def encoder_forward(src, params):
    """src: (B, T) int32 token ids. Returns (outputs (B,T,2H), hidden (1,B,H))."""
    emb_table = params["embedding"]                   # (V, E)
    B, T = src.shape
    E = emb_table.shape[1]
    H = params["whh_f"].shape[0]
    Hp = _round_up(H, 128)                            # lane-align hidden dim

    cap = _vmem_capacity_bytes()
    budget = int(0.6 * cap)

    # Batch tile: multiple of 8 sublanes; shrink until the tile fits the budget.
    BT = min(256, _round_up(max(B, 1), 8))
    while BT > 8 and _tile_vmem_bytes(T, BT, E, Hp) > budget:
        BT = max(8, _round_up(BT // 2, 8))
    Bp = _round_up(B, BT)
    nt = Bp // BT

    vmem_limit = int(min(max(2 * _tile_vmem_bytes(T, BT, E, Hp), 16 << 20),
                         int(0.9 * cap)))

    # ---- embedding gather, reordered into per-tile time-major slabs ----
    # Dropout p=0.0 is identity; gather itself is wrapper glue.
    src_tm = src.T                                    # (T, B)
    if Bp != B:
        src_tm = jnp.pad(src_tm, ((0, 0), (0, Bp - B)))
    idx = src_tm.reshape(T, nt, BT).transpose(1, 0, 2).reshape(nt, T * BT)
    emb_in = emb_table[idx].astype(jnp.bfloat16)      # (nt, T*BT, E)

    # ---- weight padding (each gate block padded H -> Hp separately) ----
    def pad_gate_cols(w):
        padw = ((0, 0), (0, Hp - H))
        return jnp.concatenate([jnp.pad(w[:, 0:H], padw),
                                jnp.pad(w[:, H:2 * H], padw),
                                jnp.pad(w[:, 2 * H:3 * H], padw)], axis=1)

    def fold_bias(bih, bhh):
        padw = ((0, 0), (0, Hp - H))
        return jnp.concatenate([jnp.pad(bih[:, 0:H] + bhh[:, 0:H], padw),
                                jnp.pad(bih[:, H:2 * H] + bhh[:, H:2 * H], padw),
                                jnp.pad(bih[:, 2 * H:3 * H], padw)], axis=1)

    padw_h = ((0, 0), (0, Hp - H))
    wih_f = pad_gate_cols(params["wih_f"]).astype(jnp.bfloat16)        # (E, 3Hp)
    wih_b = pad_gate_cols(params["wih_b"]).astype(jnp.bfloat16)
    bih_f = fold_bias(params["bih_f"], params["bhh_f"])                # (1, 3Hp)
    bih_b = fold_bias(params["bih_b"], params["bhh_b"])
    whh_f = pad_gate_cols(jnp.pad(params["whh_f"], ((0, Hp - H), (0, 0)))
                          ).astype(jnp.bfloat16)                       # (Hp, 3Hp)
    whh_b = pad_gate_cols(jnp.pad(params["whh_b"], ((0, Hp - H), (0, 0)))
                          ).astype(jnp.bfloat16)
    bhhn_f = jnp.pad(params["bhh_f"][:, 2 * H:3 * H], padw_h)          # (1, Hp)
    bhhn_b = jnp.pad(params["bhh_b"][:, 2 * H:3 * H], padw_h)
    fcw_f = jnp.pad(params["fc_w"][:H], ((0, Hp - H), (0, Hp - H)))    # (Hp, Hp)
    fcw_b = jnp.pad(params["fc_w"][H:], ((0, Hp - H), (0, Hp - H)))
    fcb = jnp.pad(params["fc_b"], padw_h)                              # (1, Hp)

    args = (emb_in, wih_f, wih_b, bih_f, bih_b, whh_f, whh_b,
            bhhn_f, bhhn_b, fcw_f, fcw_b, fcb)

    const2 = lambda i: (0, 0)
    in_specs = [
        pl.BlockSpec((None, T * BT, E), lambda i: (i, 0, 0)),   # emb tile
        pl.BlockSpec((E, 3 * Hp), const2),
        pl.BlockSpec((E, 3 * Hp), const2),
        pl.BlockSpec((1, 3 * Hp), const2),
        pl.BlockSpec((1, 3 * Hp), const2),
        pl.BlockSpec((Hp, 3 * Hp), const2),
        pl.BlockSpec((Hp, 3 * Hp), const2),
        pl.BlockSpec((1, Hp), const2),
        pl.BlockSpec((1, Hp), const2),
        pl.BlockSpec((Hp, Hp), const2),
        pl.BlockSpec((Hp, Hp), const2),
        pl.BlockSpec((1, Hp), const2),
    ]
    out_specs = (
        pl.BlockSpec((T, BT, Hp), lambda i: (0, i, 0)),
        pl.BlockSpec((T, BT, Hp), lambda i: (0, i, 0)),
        pl.BlockSpec((BT, Hp), lambda i: (i, 0)),
    )

    out_f, out_b, hdec = pl.pallas_call(
        encoder_gru_kernel,
        out_shape=(
            jax.ShapeDtypeStruct((T, Bp, Hp), jnp.float32),
            jax.ShapeDtypeStruct((T, Bp, Hp), jnp.float32),
            jax.ShapeDtypeStruct((Bp, Hp), jnp.float32),
        ),
        grid=(nt,),
        in_specs=in_specs,
        out_specs=out_specs,
        scratch_shapes=[pltpu.VMEM((T * BT, 3 * Hp), jnp.bfloat16),
                        pltpu.VMEM((T * BT, 3 * Hp), jnp.bfloat16)],
        compiler_params=pltpu.CompilerParams(
            dimension_semantics=("parallel",),
            vmem_limit_bytes=vmem_limit),
    )(*args)

    # outputs: (B, T, 2H), hidden: (num_layers=1, B, H)
    outputs = jnp.transpose(
        jnp.concatenate([out_f[:, :B, :H], out_b[:, :B, :H]], axis=-1), (1, 0, 2))
    hidden = hdec[:B, :H][None]
    return outputs, hidden


# ------------------------- pure-JAX reference (for verification) -------------------------
def reference_forward(src, params):
    emb_table = params["embedding"]
    embedded = emb_table[src]                         # (B, T, E)
    B, T, E = embedded.shape
    H = params["whh_f"].shape[0]

    def gru_scan(emb_tm, wih, whh, bih, bhh):
        def step(h, x_t):
            gi = x_t @ wih + bih
            gh = h @ whh + bhh
            i_r, i_z, i_n = gi[:, :H], gi[:, H:2 * H], gi[:, 2 * H:]
            h_r, h_z, h_n = gh[:, :H], gh[:, H:2 * H], gh[:, 2 * H:]
            r = jax.nn.sigmoid(i_r + h_r)
            z = jax.nn.sigmoid(i_z + h_z)
            n = jnp.tanh(i_n + r * h_n)
            h_new = (1.0 - z) * n + z * h
            return h_new, h_new
        h0 = jnp.zeros((B, H), jnp.float32)
        h_last, hs = lax.scan(step, h0, emb_tm)
        return h_last, hs

    emb_tm = jnp.transpose(embedded, (1, 0, 2))       # (T, B, E)
    hf_last, hf_seq = gru_scan(emb_tm, params["wih_f"], params["whh_f"],
                               params["bih_f"][0], params["bhh_f"][0])
    hb_last, hb_seq_rev = gru_scan(emb_tm[::-1], params["wih_b"], params["whh_b"],
                                   params["bih_b"][0], params["bhh_b"][0])
    hb_seq = hb_seq_rev[::-1]
    outputs = jnp.transpose(jnp.concatenate([hf_seq, hb_seq], axis=-1), (1, 0, 2))
    h_comb = jnp.concatenate([hf_last, hb_last], axis=-1)
    hidden = jnp.tanh(h_comb @ params["fc_w"] + params["fc_b"][0])[None]
    return outputs, hidden


# ------------------------- parameter init -------------------------
def init_params(key, vocab, E, H):
    ks = jax.random.split(key, 12)
    s = 1.0 / np.sqrt(H)
    u = lambda k, shape: jax.random.uniform(k, shape, jnp.float32, -s, s)
    return {
        "embedding": jax.random.normal(ks[0], (vocab, E), jnp.float32),
        # weights stored pre-transposed for x @ W style matmuls
        "wih_f": u(ks[1], (E, 3 * H)), "whh_f": u(ks[2], (H, 3 * H)),
        "bih_f": u(ks[3], (1, 3 * H)), "bhh_f": u(ks[4], (1, 3 * H)),
        "wih_b": u(ks[5], (E, 3 * H)), "whh_b": u(ks[6], (H, 3 * H)),
        "bih_b": u(ks[7], (1, 3 * H)), "bhh_b": u(ks[8], (1, 3 * H)),
        "fc_w": u(ks[9], (2 * H, H)), "fc_b": u(ks[10], (1, H)),
    }


if __name__ == "__main__":
    VOCAB, E, H = 32, 16, 32
    B, T = 2, 8

    key = jax.random.PRNGKey(0)
    kp, ks = jax.random.split(key)
    params = init_params(kp, VOCAB, E, H)
    src = jax.random.randint(ks, (B, T), 0, VOCAB, dtype=jnp.int32)

    outputs, hidden = encoder_forward(src, params)
    outputs = jax.block_until_ready(outputs)
    hidden = jax.block_until_ready(hidden)

    ref_out, ref_hid = reference_forward(src, params)
    assert outputs.shape == (B, T, 2 * H) and hidden.shape == (1, B, H)
    # bf16 matmul operands / bf16 gi storage -> looser tolerance vs f32 reference
    np.testing.assert_allclose(np.asarray(outputs), np.asarray(ref_out),
                               rtol=5e-2, atol=5e-2)
    np.testing.assert_allclose(np.asarray(hidden), np.asarray(ref_hid),
                               rtol=5e-2, atol=5e-2)
    print("KERNEL_OK")
</pallas_src>

<mosaic_0001>
module attributes {stable_mosaic.version = 11 : i64} {
  func.func @encoder_gru_kernel(%arg0: i32, %arg1: memref<1x64x16xbf16, #tpu.memory_space<vmem>>, %arg2: memref<16x384xbf16, #tpu.memory_space<vmem>>, %arg3: memref<16x384xbf16, #tpu.memory_space<vmem>>, %arg4: memref<1x384xf32, #tpu.memory_space<vmem>>, %arg5: memref<1x384xf32, #tpu.memory_space<vmem>>, %arg6: memref<128x384xbf16, #tpu.memory_space<vmem>>, %arg7: memref<128x384xbf16, #tpu.memory_space<vmem>>, %arg8: memref<1x128xf32, #tpu.memory_space<vmem>>, %arg9: memref<1x128xf32, #tpu.memory_space<vmem>>, %arg10: memref<128x128xf32, #tpu.memory_space<vmem>>, %arg11: memref<128x128xf32, #tpu.memory_space<vmem>>, %arg12: memref<1x128xf32, #tpu.memory_space<vmem>>, %arg13: memref<8x8x128xf32, #tpu.memory_space<vmem>>, %arg14: memref<8x8x128xf32, #tpu.memory_space<vmem>>, %arg15: memref<8x128xf32, #tpu.memory_space<vmem>>, %arg16: memref<64x384xbf16, #tpu.memory_space<vmem>>, %arg17: memref<64x384xbf16, #tpu.memory_space<vmem>>) attributes {dimension_semantics = [#tpu.dimension_semantics<parallel>], iteration_bounds = array<i64: 1>, scalar_prefetch = 0 : i64, scratch_operands = 2 : i64, tpu.core_type = #tpu.core_type<tc>, window_params = [{transform_indices = @transform_0, window_bounds = array<i64: 1, 64, 16>}, {pipeline_mode = #tpu.pipeline_mode<synchronous>, transform_indices = @transform_1, window_bounds = array<i64: 16, 384>}, {pipeline_mode = #tpu.pipeline_mode<synchronous>, transform_indices = @transform_2, window_bounds = array<i64: 16, 384>}, {pipeline_mode = #tpu.pipeline_mode<synchronous>, transform_indices = @transform_3, window_bounds = array<i64: 1, 384>}, {pipeline_mode = #tpu.pipeline_mode<synchronous>, transform_indices = @transform_4, window_bounds = array<i64: 1, 384>}, {pipeline_mode = #tpu.pipeline_mode<synchronous>, transform_indices = @transform_5, window_bounds = array<i64: 128, 384>}, {pipeline_mode = #tpu.pipeline_mode<synchronous>, transform_indices = @transform_6, window_bounds = array<i64: 128, 384>}, {pipeline_mode = #tpu.pipeline_mode<synchronous>, transform_indices = @transform_7, window_bounds = array<i64: 1, 128>}, {pipeline_mode = #tpu.pipeline_mode<synchronous>, transform_indices = @transform_8, window_bounds = array<i64: 1, 128>}, {pipeline_mode = #tpu.pipeline_mode<synchronous>, transform_indices = @transform_9, window_bounds = array<i64: 128, 128>}, {pipeline_mode = #tpu.pipeline_mode<synchronous>, transform_indices = @transform_10, window_bounds = array<i64: 128, 128>}, {pipeline_mode = #tpu.pipeline_mode<synchronous>, transform_indices = @transform_11, window_bounds = array<i64: 1, 128>}, {transform_indices = @transform_12, window_bounds = array<i64: 8, 8, 128>}, {transform_indices = @transform_13, window_bounds = array<i64: 8, 8, 128>}, {transform_indices = @transform_14, window_bounds = array<i64: 8, 128>}]} {
    %c0 = arith.constant 0 : index
    %c0_0 = arith.constant 0 : index
    %c0_1 = arith.constant 0 : index
    %0 = vector.load %arg1[%c0, %c0_0, %c0_1] : memref<1x64x16xbf16, #tpu.memory_space<vmem>>, vector<1x64x16xbf16>
    %1 = vector.shape_cast %0 : vector<1x64x16xbf16> to vector<64x16xbf16>
    %c0_2 = arith.constant 0 : index
    %c0_3 = arith.constant 0 : index
    %2 = vector.load %arg2[%c0_2, %c0_3] : memref<16x384xbf16, #tpu.memory_space<vmem>>, vector<16x384xbf16>
    %cst = arith.constant dense<0.000000e+00> : vector<64x384xf32>
    %3 = tpu.matmul %1, %2, %cst {dimension_numbers = #tpu.dot_dimension_numbers<[1], [0], [0], [1], [0, 0, 1, 1], [], []>} : vector<64x16xbf16>, vector<16x384xbf16>, vector<64x384xf32> -> vector<64x384xf32>
    %c0_4 = arith.constant 0 : index
    %c0_5 = arith.constant 0 : index
    %4 = vector.load %arg4[%c0_4, %c0_5] : memref<1x384xf32, #tpu.memory_space<vmem>>, vector<1x384xf32>
    %5 = vector.broadcast %4 : vector<1x384xf32> to vector<64x384xf32>
    %6 = arith.addf %3, %5 : vector<64x384xf32>
    %7 = arith.truncf %6 : vector<64x384xf32> to vector<64x384xbf16>
    %c0_6 = arith.constant 0 : index
    %c0_7 = arith.constant 0 : index
    %8 = vector.load %arg16[%c0_6, %c0_7] : memref<64x384xbf16, #tpu.memory_space<vmem>>, vector<64x384xbf16>
    tpu.vector_store %arg16[%c0_6, %c0_7], %7 {strides = array<i32>} : memref<64x384xbf16, #tpu.memory_space<vmem>>, vector<64x384xbf16>,
    %c0_8 = arith.constant 0 : index
    %c0_9 = arith.constant 0 : index
    %9 = vector.load %arg3[%c0_8, %c0_9] : memref<16x384xbf16, #tpu.memory_space<vmem>>, vector<16x384xbf16>
    %cst_10 = arith.constant dense<0.000000e+00> : vector<64x384xf32>
    %10 = tpu.matmul %1, %9, %cst_10 {dimension_numbers = #tpu.dot_dimension_numbers<[1], [0], [0], [1], [0, 0, 1, 1], [], []>} : vector<64x16xbf16>, vector<16x384xbf16>, vector<64x384xf32> -> vector<64x384xf32>
    %c0_11 = arith.constant 0 : index
    %c0_12 = arith.constant 0 : index
    %11 = vector.load %arg5[%c0_11, %c0_12] : memref<1x384xf32, #tpu.memory_space<vmem>>, vector<1x384xf32>
    %12 = vector.broadcast %11 : vector<1x384xf32> to vector<64x384xf32>
    %13 = arith.addf %10, %12 : vector<64x384xf32>
    %14 = arith.truncf %13 : vector<64x384xf32> to vector<64x384xbf16>
    %c0_13 = arith.constant 0 : index
    %c0_14 = arith.constant 0 : index
    %15 = vector.load %arg17[%c0_13, %c0_14] : memref<64x384xbf16, #tpu.memory_space<vmem>>, vector<64x384xbf16>
    tpu.vector_store %arg17[%c0_13, %c0_14], %14 {strides = array<i32>} : memref<64x384xbf16, #tpu.memory_space<vmem>>, vector<64x384xbf16>,
    %c0_15 = arith.constant 0 : index
    %c0_16 = arith.constant 0 : index
    %16 = vector.load %arg6[%c0_15, %c0_16] : memref<128x384xbf16, #tpu.memory_space<vmem>>, vector<128x384xbf16>
    %c0_17 = arith.constant 0 : index
    %c0_18 = arith.constant 0 : index
    %17 = vector.load %arg7[%c0_17, %c0_18] : memref<128x384xbf16, #tpu.memory_space<vmem>>, vector<128x384xbf16>
    %c0_19 = arith.constant 0 : index
    %c0_20 = arith.constant 0 : index
    %18 = vector.load %arg8[%c0_19, %c0_20] : memref<1x128xf32, #tpu.memory_space<vmem>>, vector<1x128xf32>
    %c0_21 = arith.constant 0 : index
    %c0_22 = arith.constant 0 : index
    %19 = vector.load %arg9[%c0_21, %c0_22] : memref<1x128xf32, #tpu.memory_space<vmem>>, vector<1x128xf32>
    %cst_23 = arith.constant 0.000000e+00 : f32
    %20 = vector.broadcast %cst_23 : f32 to vector<8x128xf32>
    %c0_i32 = arith.constant 0 : i32
    %c7_i32 = arith.constant 7 : i32
    %21 = arith.subi %c7_i32, %c0_i32 : i32
    %c8_i32 = arith.constant 8 : i32
    %22 = arith.muli %c0_i32, %c8_i32 : i32
    %23 = tpu.assume_multiple %22, 8 : i32
    %c8_i32_24 = arith.constant 8 : i32
    %24 = arith.muli %21, %c8_i32_24 : i32
    %25 = tpu.assume_multiple %24, 8 : i32
    %26 = arith.index_cast %23 : i32 to index
    %c0_25 = arith.constant 0 : index
    %27 = vector.load %arg16[%26, %c0_25] : memref<64x384xbf16, #tpu.memory_space<vmem>>, vector<8x384xbf16>
    %28 = arith.extf %27 : vector<8x384xbf16> to vector<8x384xf32>
    %29 = arith.index_cast %25 : i32 to index
    %c0_26 = arith.constant 0 : index
    %30 = vector.load %arg17[%29, %c0_26] : memref<64x384xbf16, #tpu.memory_space<vmem>>, vector<8x384xbf16>
    %31 = arith.extf %30 : vector<8x384xbf16> to vector<8x384xf32>
    %32 = arith.truncf %20 : vector<8x128xf32> to vector<8x128xbf16>
    %cst_27 = arith.constant dense<0.000000e+00> : vector<8x384xf32>
    %33 = tpu.matmul %32, %16, %cst_27 {dimension_numbers = #tpu.dot_dimension_numbers<[1], [0], [0], [1], [0, 0, 1, 1], [], []>} : vector<8x128xbf16>, vector<128x384xbf16>, vector<8x384xf32> -> vector<8x384xf32>
    %34 = vector.extract_strided_slice %28 {offsets = [0, 0], sizes = [8, 128], strides = [1, 1]} : vector<8x384xf32> to vector<8x128xf32>
    %35 = vector.extract_strided_slice %33 {offsets = [0, 0], sizes = [8, 128], strides = [1, 1]} : vector<8x384xf32> to vector<8x128xf32>
    %36 = arith.addf %34, %35 : vector<8x128xf32>
    %37 = arith.negf %36 : vector<8x128xf32>
    %38 = math.exp %37 : vector<8x128xf32>
    %cst_28 = arith.constant 1.000000e+00 : f32
    %39 = vector.broadcast %cst_28 : f32 to vector<8x128xf32>
    %40 = arith.addf %39, %38 : vector<8x128xf32>
    %41 = arith.divf %39, %40 : vector<8x128xf32>
    %42 = vector.extract_strided_slice %28 {offsets = [0, 128], sizes = [8, 128], strides = [1, 1]} : vector<8x384xf32> to vector<8x128xf32>
    %43 = vector.extract_strided_slice %33 {offsets = [0, 128], sizes = [8, 128], strides = [1, 1]} : vector<8x384xf32> to vector<8x128xf32>
    %44 = arith.addf %42, %43 : vector<8x128xf32>
    %45 = arith.negf %44 : vector<8x128xf32>
    %46 = math.exp %45 : vector<8x128xf32>
    %cst_29 = arith.constant 1.000000e+00 : f32
    %47 = vector.broadcast %cst_29 : f32 to vector<8x128xf32>
    %48 = arith.addf %47, %46 : vector<8x128xf32>
    %49 = arith.divf %47, %48 : vector<8x128xf32>
    %50 = vector.extract_strided_slice %28 {offsets = [0, 256], sizes = [8, 128], strides = [1, 1]} : vector<8x384xf32> to vector<8x128xf32>
    %51 = vector.extract_strided_slice %33 {offsets = [0, 256], sizes = [8, 128], strides = [1, 1]} : vector<8x384xf32> to vector<8x128xf32>
    %52 = vector.broadcast %18 : vector<1x128xf32> to vector<8x128xf32>
    %53 = arith.addf %51, %52 : vector<8x128xf32>
    %54 = arith.mulf %41, %53 : vector<8x128xf32>
    %55 = arith.addf %50, %54 : vector<8x128xf32>
    %56 = math.tanh %55 : vector<8x128xf32>
    %cst_30 = arith.constant 1.000000e+00 : f32
    %57 = vector.broadcast %cst_30 : f32 to vector<8x128xf32>
    %58 = arith.subf %57, %49 : vector<8x128xf32>
    %59 = arith.mulf %58, %56 : vector<8x128xf32>
    %60 = arith.mulf %49, %20 : vector<8x128xf32>
    %61 = arith.addf %59, %60 : vector<8x128xf32>
    %62 = arith.truncf %20 : vector<8x128xf32> to vector<8x128xbf16>
    %cst_31 = arith.constant dense<0.000000e+00> : vector<8x384xf32>
    %63 = tpu.matmul %62, %17, %cst_31 {dimension_numbers = #tpu.dot_dimension_numbers<[1], [0], [0], [1], [0, 0, 1, 1], [], []>} : vector<8x128xbf16>, vector<128x384xbf16>, vector<8x384xf32> -> vector<8x384xf32>
    %64 = vector.extract_strided_slice %31 {offsets = [0, 0], sizes = [8, 128], strides = [1, 1]} : vector<8x384xf32> to vector<8x128xf32>
    %65 = vector.extract_strided_slice %63 {offsets = [0, 0], sizes = [8, 128], strides = [1, 1]} : vector<8x384xf32> to vector<8x128xf32>
    %66 = arith.addf %64, %65 : vector<8x128xf32>
    %67 = arith.negf %66 : vector<8x128xf32>
    %68 = math.exp %67 : vector<8x128xf32>
    %cst_32 = arith.constant 1.000000e+00 : f32
    %69 = vector.broadcast %cst_32 : f32 to vector<8x128xf32>
    %70 = arith.addf %69, %68 : vector<8x128xf32>
    %71 = arith.divf %69, %70 : vector<8x128xf32>
    %72 = vector.extract_strided_slice %31 {offsets = [0, 128], sizes = [8, 128], strides = [1, 1]} : vector<8x384xf32> to vector<8x128xf32>
    %73 = vector.extract_strided_slice %63 {offsets = [0, 128], sizes = [8, 128], strides = [1, 1]} : vector<8x384xf32> to vector<8x128xf32>
    %74 = arith.addf %72, %73 : vector<8x128xf32>
    %75 = arith.negf %74 : vector<8x128xf32>
    %76 = math.exp %75 : vector<8x128xf32>
    %cst_33 = arith.constant 1.000000e+00 : f32
    %77 = vector.broadcast %cst_33 : f32 to vector<8x128xf32>
    %78 = arith.addf %77, %76 : vector<8x128xf32>
    %79 = arith.divf %77, %78 : vector<8x128xf32>
    %80 = vector.extract_strided_slice %31 {offsets = [0, 256], sizes = [8, 128], strides = [1, 1]} : vector<8x384xf32> to vector<8x128xf32>
    %81 = vector.extract_strided_slice %63 {offsets = [0, 256], sizes = [8, 128], strides = [1, 1]} : vector<8x384xf32> to vector<8x128xf32>
    %82 = vector.broadcast %19 : vector<1x128xf32> to vector<8x128xf32>
    %83 = arith.addf %81, %82 : vector<8x128xf32>
    %84 = arith.mulf %71, %83 : vector<8x128xf32>
    %85 = arith.addf %80, %84 : vector<8x128xf32>
    %86 = math.tanh %85 : vector<8x128xf32>
    %cst_34 = arith.constant 1.000000e+00 : f32
    %87 = vector.broadcast %cst_34 : f32 to vector<8x128xf32>
    %88 = arith.subf %87, %79 : vector<8x128xf32>
    %89 = arith.mulf %88, %86 : vector<8x128xf32>
    %90 = arith.mulf %79, %20 : vector<8x128xf32>
    %91 = arith.addf %89, %90 : vector<8x128xf32>
    %92 = arith.index_cast %c0_i32 : i32 to index
    %c0_35 = arith.constant 0 : index
    %c0_36 = arith.constant 0 : index
    %93 = vector.load %arg13[%92, %c0_35, %c0_36] : memref<8x8x128xf32, #tpu.memory_space<vmem>>, vector<1x8x128xf32>
    %94 = vector.shape_cast %93 : vector<1x8x128xf32> to vector<8x128xf32>
    %95 = vector.shape_cast %61 : vector<8x128xf32> to vector<1x8x128xf32>
    tpu.vector_store %arg13[%92, %c0_35, %c0_36], %95 {strides = array<i32>} : memref<8x8x128xf32, #tpu.memory_space<vmem>>, vector<1x8x128xf32>,
    %96 = arith.index_cast %21 : i32 to index
    %c0_37 = arith.constant 0 : index
    %c0_38 = arith.constant 0 : index
    %97 = vector.load %arg14[%96, %c0_37, %c0_38] : memref<8x8x128xf32, #tpu.memory_space<vmem>>, vector<1x8x128xf32>
    %98 = vector.shape_cast %97 : vector<1x8x128xf32> to vector<8x128xf32>
    %99 = vector.shape_cast %91 : vector<8x128xf32> to vector<1x8x128xf32>
    tpu.vector_store %arg14[%96, %c0_37, %c0_38], %99 {strides = array<i32>} : memref<8x8x128xf32, #tpu.memory_space<vmem>>, vector<1x8x128xf32>,
    %c1_i32 = arith.constant 1 : i32
    %c7_i32_39 = arith.constant 7 : i32
    %100 = arith.subi %c7_i32_39, %c1_i32 : i32
    %c8_i32_40 = arith.constant 8 : i32
    %101 = arith.muli %c1_i32, %c8_i32_40 : i32
    %102 = tpu.assume_multiple %101, 8 : i32
    %c8_i32_41 = arith.constant 8 : i32
    %103 = arith.muli %100, %c8_i32_41 : i32
    %104 = tpu.assume_multiple %103, 8 : i32
    %105 = arith.index_cast %102 : i32 to index
    %c0_42 = arith.constant 0 : index
    %106 = vector.load %arg16[%105, %c0_42] : memref<64x384xbf16, #tpu.memory_space<vmem>>, vector<8x384xbf16>
    %107 = arith.extf %106 : vector<8x384xbf16> to vector<8x384xf32>
    %108 = arith.index_cast %104 : i32 to index
    %c0_43 = arith.constant 0 : index
    %109 = vector.load %arg17[%108, %c0_43] : memref<64x384xbf16, #tpu.memory_space<vmem>>, vector<8x384xbf16>
    %110 = arith.extf %109 : vector<8x384xbf16> to vector<8x384xf32>
    %111 = arith.truncf %61 : vector<8x128xf32> to vector<8x128xbf16>
    %cst_44 = arith.constant dense<0.000000e+00> : vector<8x384xf32>
    %112 = tpu.matmul %111, %16, %cst_44 {dimension_numbers = #tpu.dot_dimension_numbers<[1], [0], [0], [1], [0, 0, 1, 1], [], []>} : vector<8x128xbf16>, vector<128x384xbf16>, vector<8x384xf32> -> vector<8x384xf32>
    %113 = vector.extract_strided_slice %107 {offsets = [0, 0], sizes = [8, 128], strides = [1, 1]} : vector<8x384xf32> to vector<8x128xf32>
    %114 = vector.extract_strided_slice %112 {offsets = [0, 0], sizes = [8, 128], strides = [1, 1]} : vector<8x384xf32> to vector<8x128xf32>
    %115 = arith.addf %113, %114 : vector<8x128xf32>
    %116 = arith.negf %115 : vector<8x128xf32>
    %117 = math.exp %116 : vector<8x128xf32>
    %cst_45 = arith.constant 1.000000e+00 : f32
    %118 = vector.broadcast %cst_45 : f32 to vector<8x128xf32>
    %119 = arith.addf %118, %117 : vector<8x128xf32>
    %120 = arith.divf %118, %119 : vector<8x128xf32>
    %121 = vector.extract_strided_slice %107 {offsets = [0, 128], sizes = [8, 128], strides = [1, 1]} : vector<8x384xf32> to vector<8x128xf32>
    %122 = vector.extract_strided_slice %112 {offsets = [0, 128], sizes = [8, 128], strides = [1, 1]} : vector<8x384xf32> to vector<8x128xf32>
    %123 = arith.addf %121, %122 : vector<8x128xf32>
    %124 = arith.negf %123 : vector<8x128xf32>
    %125 = math.exp %124 : vector<8x128xf32>
    %cst_46 = arith.constant 1.000000e+00 : f32
    %126 = vector.broadcast %cst_46 : f32 to vector<8x128xf32>
    %127 = arith.addf %126, %125 : vector<8x128xf32>
    %128 = arith.divf %126, %127 : vector<8x128xf32>
    %129 = vector.extract_strided_slice %107 {offsets = [0, 256], sizes = [8, 128], strides = [1, 1]} : vector<8x384xf32> to vector<8x128xf32>
    %130 = vector.extract_strided_slice %112 {offsets = [0, 256], sizes = [8, 128], strides = [1, 1]} : vector<8x384xf32> to vector<8x128xf32>
    %131 = vector.broadcast %18 : vector<1x128xf32> to vector<8x128xf32>
    %132 = arith.addf %130, %131 : vector<8x128xf32>
    %133 = arith.mulf %120, %132 : vector<8x128xf32>
    %134 = arith.addf %129, %133 : vector<8x128xf32>
    %135 = math.tanh %134 : vector<8x128xf32>
    %cst_47 = arith.constant 1.000000e+00 : f32
    %136 = vector.broadcast %cst_47 : f32 to vector<8x128xf32>
    %137 = arith.subf %136, %128 : vector<8x128xf32>
    %138 = arith.mulf %137, %135 : vector<8x128xf32>
    %139 = arith.mulf %128, %61 : vector<8x128xf32>
    %140 = arith.addf %138, %139 : vector<8x128xf32>
    %141 = arith.truncf %91 : vector<8x128xf32> to vector<8x128xbf16>
    %cst_48 = arith.constant dense<0.000000e+00> : vector<8x384xf32>
    %142 = tpu.matmul %141, %17, %cst_48 {dimension_numbers = #tpu.dot_dimension_numbers<[1], [0], [0], [1], [0, 0, 1, 1], [], []>} : vector<8x128xbf16>, vector<128x384xbf16>, vector<8x384xf32> -> vector<8x384xf32>
    %143 = vector.extract_strided_slice %110 {offsets = [0, 0], sizes = [8, 128], strides = [1, 1]} : vector<8x384xf32> to vector<8x128xf32>
    %144 = vector.extract_strided_slice %142 {offsets = [0, 0], sizes = [8, 128], strides = [1, 1]} : vector<8x384xf32> to vector<8x128xf32>
    %145 = arith.addf %143, %144 : vector<8x128xf32>
    %146 = arith.negf %145 : vector<8x128xf32>
    %147 = math.exp %146 : vector<8x128xf32>
    %cst_49 = arith.constant 1.000000e+00 : f32
    %148 = vector.broadcast %cst_49 : f32 to vector<8x128xf32>
    %149 = arith.addf %148, %147 : vector<8x128xf32>
    %150 = arith.divf %148, %149 : vector<8x128xf32>
    %151 = vector.extract_strided_slice %110 {offsets = [0, 128], sizes = [8, 128], strides = [1, 1]} : vector<8x384xf32> to vector<8x128xf32>
    %152 = vector.extract_strided_slice %142 {offsets = [0, 128], sizes = [8, 128], strides = [1, 1]} : vector<8x384xf32> to vector<8x128xf32>
    %153 = arith.addf %151, %152 : vector<8x128xf32>
    %154 = arith.negf %153 : vector<8x128xf32>
    %155 = math.exp %154 : vector<8x128xf32>
    %cst_50 = arith.constant 1.000000e+00 : f32
    %156 = vector.broadcast %cst_50 : f32 to vector<8x128xf32>
    %157 = arith.addf %156, %155 : vector<8x128xf32>
    %158 = arith.divf %156, %157 : vector<8x128xf32>
    %159 = vector.extract_strided_slice %110 {offsets = [0, 256], sizes = [8, 128], strides = [1, 1]} : vector<8x384xf32> to vector<8x128xf32>
    %160 = vector.extract_strided_slice %142 {offsets = [0, 256], sizes = [8, 128], strides = [1, 1]} : vector<8x384xf32> to vector<8x128xf32>
    %161 = vector.broadcast %19 : vector<1x128xf32> to vector<8x128xf32>
    %162 = arith.addf %160, %161 : vector<8x128xf32>
    %163 = arith.mulf %150, %162 : vector<8x128xf32>
    %164 = arith.addf %159, %163 : vector<8x128xf32>
    %165 = math.tanh %164 : vector<8x128xf32>
    %cst_51 = arith.constant 1.000000e+00 : f32
    %166 = vector.broadcast %cst_51 : f32 to vector<8x128xf32>
    %167 = arith.subf %166, %158 : vector<8x128xf32>
    %168 = arith.mulf %167, %165 : vector<8x128xf32>
    %169 = arith.mulf %158, %91 : vector<8x128xf32>
    %170 = arith.addf %168, %169 : vector<8x128xf32>
    %171 = arith.index_cast %c1_i32 : i32 to index
    %c0_52 = arith.constant 0 : index
    %c0_53 = arith.constant 0 : index
    %172 = vector.load %arg13[%171, %c0_52, %c0_53] : memref<8x8x128xf32, #tpu.memory_space<vmem>>, vector<1x8x128xf32>
    %173 = vector.shape_cast %172 : vector<1x8x128xf32> to vector<8x128xf32>
    %174 = vector.shape_cast %140 : vector<8x128xf32> to vector<1x8x128xf32>
    tpu.vector_store %arg13[%171, %c0_52, %c0_53], %174 {strides = array<i32>} : memref<8x8x128xf32, #tpu.memory_space<vmem>>, vector<1x8x128xf32>,
    %175 = arith.index_cast %100 : i32 to index
    %c0_54 = arith.constant 0 : index
    %c0_55 = arith.constant 0 : index
    %176 = vector.load %arg14[%175, %c0_54, %c0_55] : memref<8x8x128xf32, #tpu.memory_space<vmem>>, vector<1x8x128xf32>
    %177 = vector.shape_cast %176 : vector<1x8x128xf32> to vector<8x128xf32>
    %178 = vector.shape_cast %170 : vector<8x128xf32> to vector<1x8x128xf32>
    tpu.vector_store %arg14[%175, %c0_54, %c0_55], %178 {strides = array<i32>} : memref<8x8x128xf32, #tpu.memory_space<vmem>>, vector<1x8x128xf32>,
    %c2_i32 = arith.constant 2 : i32
    %c7_i32_56 = arith.constant 7 : i32
    %179 = arith.subi %c7_i32_56, %c2_i32 : i32
    %c8_i32_57 = arith.constant 8 : i32
    %180 = arith.muli %c2_i32, %c8_i32_57 : i32
    %181 = tpu.assume_multiple %180, 8 : i32
    %c8_i32_58 = arith.constant 8 : i32
    %182 = arith.muli %179, %c8_i32_58 : i32
    %183 = tpu.assume_multiple %182, 8 : i32
    %184 = arith.index_cast %181 : i32 to index
    %c0_59 = arith.constant 0 : index
    %185 = vector.load %arg16[%184, %c0_59] : memref<64x384xbf16, #tpu.memory_space<vmem>>, vector<8x384xbf16>
    %186 = arith.extf %185 : vector<8x384xbf16> to vector<8x384xf32>
    %187 = arith.index_cast %183 : i32 to index
    %c0_60 = arith.constant 0 : index
    %188 = vector.load %arg17[%187, %c0_60] : memref<64x384xbf16, #tpu.memory_space<vmem>>, vector<8x384xbf16>
    %189 = arith.extf %188 : vector<8x384xbf16> to vector<8x384xf32>
    %190 = arith.truncf %140 : vector<8x128xf32> to vector<8x128xbf16>
    %cst_61 = arith.constant dense<0.000000e+00> : vector<8x384xf32>
    %191 = tpu.matmul %190, %16, %cst_61 {dimension_numbers = #tpu.dot_dimension_numbers<[1], [0], [0], [1], [0, 0, 1, 1], [], []>} : vector<8x128xbf16>, vector<128x384xbf16>, vector<8x384xf32> -> vector<8x384xf32>
    %192 = vector.extract_strided_slice %186 {offsets = [0, 0], sizes = [8, 128], strides = [1, 1]} : vector<8x384xf32> to vector<8x128xf32>
    %193 = vector.extract_strided_slice %191 {offsets = [0, 0], sizes = [8, 128], strides = [1, 1]} : vector<8x384xf32> to vector<8x128xf32>
    %194 = arith.addf %192, %193 : vector<8x128xf32>
    %195 = arith.negf %194 : vector<8x128xf32>
    %196 = math.exp %195 : vector<8x128xf32>
    %cst_62 = arith.constant 1.000000e+00 : f32
    %197 = vector.broadcast %cst_62 : f32 to vector<8x128xf32>
    %198 = arith.addf %197, %196 : vector<8x128xf32>
    %199 = arith.divf %197, %198 : vector<8x128xf32>
    %200 = vector.extract_strided_slice %186 {offsets = [0, 128], sizes = [8, 128], strides = [1, 1]} : vector<8x384xf32> to vector<8x128xf32>
    %201 = vector.extract_strided_slice %191 {offsets = [0, 128], sizes = [8, 128], strides = [1, 1]} : vector<8x384xf32> to vector<8x128xf32>
    %202 = arith.addf %200, %201 : vector<8x128xf32>
    %203 = arith.negf %202 : vector<8x128xf32>
    %204 = math.exp %203 : vector<8x128xf32>
    %cst_63 = arith.constant 1.000000e+00 : f32
    %205 = vector.broadcast %cst_63 : f32 to vector<8x128xf32>
    %206 = arith.addf %205, %204 : vector<8x128xf32>
    %207 = arith.divf %205, %206 : vector<8x128xf32>
    %208 = vector.extract_strided_slice %186 {offsets = [0, 256], sizes = [8, 128], strides = [1, 1]} : vector<8x384xf32> to vector<8x128xf32>
    %209 = vector.extract_strided_slice %191 {offsets = [0, 256], sizes = [8, 128], strides = [1, 1]} : vector<8x384xf32> to vector<8x128xf32>
    %210 = vector.broadcast %18 : vector<1x128xf32> to vector<8x128xf32>
    %211 = arith.addf %209, %210 : vector<8x128xf32>
    %212 = arith.mulf %199, %211 : vector<8x128xf32>
    %213 = arith.addf %208, %212 : vector<8x128xf32>
    %214 = math.tanh %213 : vector<8x128xf32>
    %cst_64 = arith.constant 1.000000e+00 : f32
    %215 = vector.broadcast %cst_64 : f32 to vector<8x128xf32>
    %216 = arith.subf %215, %207 : vector<8x128xf32>
    %217 = arith.mulf %216, %214 : vector<8x128xf32>
    %218 = arith.mulf %207, %140 : vector<8x128xf32>
    %219 = arith.addf %217, %218 : vector<8x128xf32>
    %220 = arith.truncf %170 : vector<8x128xf32> to vector<8x128xbf16>
    %cst_65 = arith.constant dense<0.000000e+00> : vector<8x384xf32>
    %221 = tpu.matmul %220, %17, %cst_65 {dimension_numbers = #tpu.dot_dimension_numbers<[1], [0], [0], [1], [0, 0, 1, 1], [], []>} : vector<8x128xbf16>, vector<128x384xbf16>, vector<8x384xf32> -> vector<8x384xf32>
    %222 = vector.extract_strided_slice %189 {offsets = [0, 0], sizes = [8, 128], strides = [1, 1]} : vector<8x384xf32> to vector<8x128xf32>
    %223 = vector.extract_strided_slice %221 {offsets = [0, 0], sizes = [8, 128], strides = [1, 1]} : vector<8x384xf32> to vector<8x128xf32>
    %224 = arith.addf %222, %223 : vector<8x128xf32>
    %225 = arith.negf %224 : vector<8x128xf32>
    %226 = math.exp %225 : vector<8x128xf32>
    %cst_66 = arith.constant 1.000000e+00 : f32
    %227 = vector.broadcast %cst_66 : f32 to vector<8x128xf32>
    %228 = arith.addf %227, %226 : vector<8x128xf32>
    %229 = arith.divf %227, %228 : vector<8x128xf32>
    %230 = vector.extract_strided_slice %189 {offsets = [0, 128], sizes = [8, 128], strides = [1, 1]} : vector<8x384xf32> to vector<8x128xf32>
    %231 = vector.extract_strided_slice %221 {offsets = [0, 128], sizes = [8, 128], strides = [1, 1]} : vector<8x384xf32> to vector<8x128xf32>
    %232 = arith.addf %230, %231 : vector<8x128xf32>
    %233 = arith.negf %232 : vector<8x128xf32>
    %234 = math.exp %233 : vector<8x128xf32>
    %cst_67 = arith.constant 1.000000e+00 : f32
    %235 = vector.broadcast %cst_67 : f32 to vector<8x128xf32>
    %236 = arith.addf %235, %234 : vector<8x128xf32>
    %237 = arith.divf %235, %236 : vector<8x128xf32>
    %238 = vector.extract_strided_slice %189 {offsets = [0, 256], sizes = [8, 128], strides = [1, 1]} : vector<8x384xf32> to vector<8x128xf32>
    %239 = vector.extract_strided_slice %221 {offsets = [0, 256], sizes = [8, 128], strides = [1, 1]} : vector<8x384xf32> to vector<8x128xf32>
    %240 = vector.broadcast %19 : vector<1x128xf32> to vector<8x128xf32>
    %241 = arith.addf %239, %240 : vector<8x128xf32>
    %242 = arith.mulf %229, %241 : vector<8x128xf32>
    %243 = arith.addf %238, %242 : vector<8x128xf32>
    %244 = math.tanh %243 : vector<8x128xf32>
    %cst_68 = arith.constant 1.000000e+00 : f32
    %245 = vector.broadcast %cst_68 : f32 to vector<8x128xf32>
    %246 = arith.subf %245, %237 : vector<8x128xf32>
    %247 = arith.mulf %246, %244 : vector<8x128xf32>
    %248 = arith.mulf %237, %170 : vector<8x128xf32>
    %249 = arith.addf %247, %248 : vector<8x128xf32>
    %250 = arith.index_cast %c2_i32 : i32 to index
    %c0_69 = arith.constant 0 : index
    %c0_70 = arith.constant 0 : index
    %251 = vector.load %arg13[%250, %c0_69, %c0_70] : memref<8x8x128xf32, #tpu.memory_space<vmem>>, vector<1x8x128xf32>
    %252 = vector.shape_cast %251 : vector<1x8x128xf32> to vector<8x128xf32>
    %253 = vector.shape_cast %219 : vector<8x128xf32> to vector<1x8x128xf32>
    tpu.vector_store %arg13[%250, %c0_69, %c0_70], %253 {strides = array<i32>} : memref<8x8x128xf32, #tpu.memory_space<vmem>>, vector<1x8x128xf32>,
    %254 = arith.index_cast %179 : i32 to index
    %c0_71 = arith.constant 0 : index
    %c0_72 = arith.constant 0 : index
    %255 = vector.load %arg14[%254, %c0_71, %c0_72] : memref<8x8x128xf32, #tpu.memory_space<vmem>>, vector<1x8x128xf32>
    %256 = vector.shape_cast %255 : vector<1x8x128xf32> to vector<8x128xf32>
    %257 = vector.shape_cast %249 : vector<8x128xf32> to vector<1x8x128xf32>
    tpu.vector_store %arg14[%254, %c0_71, %c0_72], %257 {strides = array<i32>} : memref<8x8x128xf32, #tpu.memory_space<vmem>>, vector<1x8x128xf32>,
    %c3_i32 = arith.constant 3 : i32
    %c7_i32_73 = arith.constant 7 : i32
    %258 = arith.subi %c7_i32_73, %c3_i32 : i32
    %c8_i32_74 = arith.constant 8 : i32
    %259 = arith.muli %c3_i32, %c8_i32_74 : i32
    %260 = tpu.assume_multiple %259, 8 : i32
    %c8_i32_75 = arith.constant 8 : i32
    %261 = arith.muli %258, %c8_i32_75 : i32
    %262 = tpu.assume_multiple %261, 8 : i32
    %263 = arith.index_cast %260 : i32 to index
    %c0_76 = arith.constant 0 : index
    %264 = vector.load %arg16[%263, %c0_76] : memref<64x384xbf16, #tpu.memory_space<vmem>>, vector<8x384xbf16>
    %265 = arith.extf %264 : vector<8x384xbf16> to vector<8x384xf32>
    %266 = arith.index_cast %262 : i32 to index
    %c0_77 = arith.constant 0 : index
    %267 = vector.load %arg17[%266, %c0_77] : memref<64x384xbf16, #tpu.memory_space<vmem>>, vector<8x384xbf16>
    %268 = arith.extf %267 : vector<8x384xbf16> to vector<8x384xf32>
    %269 = arith.truncf %219 : vector<8x128xf32> to vector<8x128xbf16>
    %cst_78 = arith.constant dense<0.000000e+00> : vector<8x384xf32>
    %270 = tpu.matmul %269, %16, %cst_78 {dimension_numbers = #tpu.dot_dimension_numbers<[1], [0], [0], [1], [0, 0, 1, 1], [], []>} : vector<8x128xbf16>, vector<128x384xbf16>, vector<8x384xf32> -> vector<8x384xf32>
    %271 = vector.extract_strided_slice %265 {offsets = [0, 0], sizes = [8, 128], strides = [1, 1]} : vector<8x384xf32> to vector<8x128xf32>
    %272 = vector.extract_strided_slice %270 {offsets = [0, 0], sizes = [8, 128], strides = [1, 1]} : vector<8x384xf32> to vector<8x128xf32>
    %273 = arith.addf %271, %272 : vector<8x128xf32>
    %274 = arith.negf %273 : vector<8x128xf32>
    %275 = math.exp %274 : vector<8x128xf32>
    %cst_79 = arith.constant 1.000000e+00 : f32
    %276 = vector.broadcast %cst_79 : f32 to vector<8x128xf32>
    %277 = arith.addf %276, %275 : vector<8x128xf32>
    %278 = arith.divf %276, %277 : vector<8x128xf32>
    %279 = vector.extract_strided_slice %265 {offsets = [0, 128], sizes = [8, 128], strides = [1, 1]} : vector<8x384xf32> to vector<8x128xf32>
    %280 = vector.extract_strided_slice %270 {offsets = [0, 128], sizes = [8, 128], strides = [1, 1]} : vector<8x384xf32> to vector<8x128xf32>
    %281 = arith.addf %279, %280 : vector<8x128xf32>
    %282 = arith.negf %281 : vector<8x128xf32>
    %283 = math.exp %282 : vector<8x128xf32>
    %cst_80 = arith.constant 1.000000e+00 : f32
    %284 = vector.broadcast %cst_80 : f32 to vector<8x128xf32>
    %285 = arith.addf %284, %283 : vector<8x128xf32>
    %286 = arith.divf %284, %285 : vector<8x128xf32>
    %287 = vector.extract_strided_slice %265 {offsets = [0, 256], sizes = [8, 128], strides = [1, 1]} : vector<8x384xf32> to vector<8x128xf32>
    %288 = vector.extract_strided_slice %270 {offsets = [0, 256], sizes = [8, 128], strides = [1, 1]} : vector<8x384xf32> to vector<8x128xf32>
    %289 = vector.broadcast %18 : vector<1x128xf32> to vector<8x128xf32>
    %290 = arith.addf %288, %289 : vector<8x128xf32>
    %291 = arith.mulf %278, %290 : vector<8x128xf32>
    %292 = arith.addf %287, %291 : vector<8x128xf32>
    %293 = math.tanh %292 : vector<8x128xf32>
    %cst_81 = arith.constant 1.000000e+00 : f32
    %294 = vector.broadcast %cst_81 : f32 to vector<8x128xf32>
    %295 = arith.subf %294, %286 : vector<8x128xf32>
    %296 = arith.mulf %295, %293 : vector<8x128xf32>
    %297 = arith.mulf %286, %219 : vector<8x128xf32>
    %298 = arith.addf %296, %297 : vector<8x128xf32>
    %299 = arith.truncf %249 : vector<8x128xf32> to vector<8x128xbf16>
    %cst_82 = arith.constant dense<0.000000e+00> : vector<8x384xf32>
    %300 = tpu.matmul %299, %17, %cst_82 {dimension_numbers = #tpu.dot_dimension_numbers<[1], [0], [0], [1], [0, 0, 1, 1], [], []>} : vector<8x128xbf16>, vector<128x384xbf16>, vector<8x384xf32> -> vector<8x384xf32>
    %301 = vector.extract_strided_slice %268 {offsets = [0, 0], sizes = [8, 128], strides = [1, 1]} : vector<8x384xf32> to vector<8x128xf32>
    %302 = vector.extract_strided_slice %300 {offsets = [0, 0], sizes = [8, 128], strides = [1, 1]} : vector<8x384xf32> to vector<8x128xf32>
    %303 = arith.addf %301, %302 : vector<8x128xf32>
    %304 = arith.negf %303 : vector<8x128xf32>
    %305 = math.exp %304 : vector<8x128xf32>
    %cst_83 = arith.constant 1.000000e+00 : f32
    %306 = vector.broadcast %cst_83 : f32 to vector<8x128xf32>
    %307 = arith.addf %306, %305 : vector<8x128xf32>
    %308 = arith.divf %306, %307 : vector<8x128xf32>
    %309 = vector.extract_strided_slice %268 {offsets = [0, 128], sizes = [8, 128], strides = [1, 1]} : vector<8x384xf32> to vector<8x128xf32>
    %310 = vector.extract_strided_slice %300 {offsets = [0, 128], sizes = [8, 128], strides = [1, 1]} : vector<8x384xf32> to vector<8x128xf32>
    %311 = arith.addf %309, %310 : vector<8x128xf32>
    %312 = arith.negf %311 : vector<8x128xf32>
    %313 = math.exp %312 : vector<8x128xf32>
    %cst_84 = arith.constant 1.000000e+00 : f32
    %314 = vector.broadcast %cst_84 : f32 to vector<8x128xf32>
    %315 = arith.addf %314, %313 : vector<8x128xf32>
    %316 = arith.divf %314, %315 : vector<8x128xf32>
    %317 = vector.extract_strided_slice %268 {offsets = [0, 256], sizes = [8, 128], strides = [1, 1]} : vector<8x384xf32> to vector<8x128xf32>
    %318 = vector.extract_strided_slice %300 {offsets = [0, 256], sizes = [8, 128], strides = [1, 1]} : vector<8x384xf32> to vector<8x128xf32>
    %319 = vector.broadcast %19 : vector<1x128xf32> to vector<8x128xf32>
    %320 = arith.addf %318, %319 : vector<8x128xf32>
    %321 = arith.mulf %308, %320 : vector<8x128xf32>
    %322 = arith.addf %317, %321 : vector<8x128xf32>
    %323 = math.tanh %322 : vector<8x128xf32>
    %cst_85 = arith.constant 1.000000e+00 : f32
    %324 = vector.broadcast %cst_85 : f32 to vector<8x128xf32>
    %325 = arith.subf %324, %316 : vector<8x128xf32>
    %326 = arith.mulf %325, %323 : vector<8x128xf32>
    %327 = arith.mulf %316, %249 : vector<8x128xf32>
    %328 = arith.addf %326, %327 : vector<8x128xf32>
    %329 = arith.index_cast %c3_i32 : i32 to index
    %c0_86 = arith.constant 0 : index
    %c0_87 = arith.constant 0 : index
    %330 = vector.load %arg13[%329, %c0_86, %c0_87] : memref<8x8x128xf32, #tpu.memory_space<vmem>>, vector<1x8x128xf32>
    %331 = vector.shape_cast %330 : vector<1x8x128xf32> to vector<8x128xf32>
    %332 = vector.shape_cast %298 : vector<8x128xf32> to vector<1x8x128xf32>
    tpu.vector_store %arg13[%329, %c0_86, %c0_87], %332 {strides = array<i32>} : memref<8x8x128xf32, #tpu.memory_space<vmem>>, vector<1x8x128xf32>,
    %333 = arith.index_cast %258 : i32 to index
    %c0_88 = arith.constant 0 : index
    %c0_89 = arith.constant 0 : index
    %334 = vector.load %arg14[%333, %c0_88, %c0_89] : memref<8x8x128xf32, #tpu.memory_space<vmem>>, vector<1x8x128xf32>
    %335 = vector.shape_cast %334 : vector<1x8x128xf32> to vector<8x128xf32>
    %336 = vector.shape_cast %328 : vector<8x128xf32> to vector<1x8x128xf32>
    tpu.vector_store %arg14[%333, %c0_88, %c0_89], %336 {strides = array<i32>} : memref<8x8x128xf32, #tpu.memory_space<vmem>>, vector<1x8x128xf32>,
    %c4_i32 = arith.constant 4 : i32
    %c7_i32_90 = arith.constant 7 : i32
    %337 = arith.subi %c7_i32_90, %c4_i32 : i32
    %c8_i32_91 = arith.constant 8 : i32
    %338 = arith.muli %c4_i32, %c8_i32_91 : i32
    %339 = tpu.assume_multiple %338, 8 : i32
    %c8_i32_92 = arith.constant 8 : i32
    %340 = arith.muli %337, %c8_i32_92 : i32
    %341 = tpu.assume_multiple %340, 8 : i32
    %342 = arith.index_cast %339 : i32 to index
    %c0_93 = arith.constant 0 : index
    %343 = vector.load %arg16[%342, %c0_93] : memref<64x384xbf16, #tpu.memory_space<vmem>>, vector<8x384xbf16>
    %344 = arith.extf %343 : vector<8x384xbf16> to vector<8x384xf32>
    %345 = arith.index_cast %341 : i32 to index
    %c0_94 = arith.constant 0 : index
    %346 = vector.load %arg17[%345, %c0_94] : memref<64x384xbf16, #tpu.memory_space<vmem>>, vector<8x384xbf16>
    %347 = arith.extf %346 : vector<8x384xbf16> to vector<8x384xf32>
    %348 = arith.truncf %298 : vector<8x128xf32> to vector<8x128xbf16>
    %cst_95 = arith.constant dense<0.000000e+00> : vector<8x384xf32>
    %349 = tpu.matmul %348, %16, %cst_95 {dimension_numbers = #tpu.dot_dimension_numbers<[1], [0], [0], [1], [0, 0, 1, 1], [], []>} : vector<8x128xbf16>, vector<128x384xbf16>, vector<8x384xf32> -> vector<8x384xf32>
    %350 = vector.extract_strided_slice %344 {offsets = [0, 0], sizes = [8, 128], strides = [1, 1]} : vector<8x384xf32> to vector<8x128xf32>
    %351 = vector.extract_strided_slice %349 {offsets = [0, 0], sizes = [8, 128], strides = [1, 1]} : vector<8x384xf32> to vector<8x128xf32>
    %352 = arith.addf %350, %351 : vector<8x128xf32>
    %353 = arith.negf %352 : vector<8x128xf32>
    %354 = math.exp %353 : vector<8x128xf32>
    %cst_96 = arith.constant 1.000000e+00 : f32
    %355 = vector.broadcast %cst_96 : f32 to vector<8x128xf32>
    %356 = arith.addf %355, %354 : vector<8x128xf32>
    %357 = arith.divf %355, %356 : vector<8x128xf32>
    %358 = vector.extract_strided_slice %344 {offsets = [0, 128], sizes = [8, 128], strides = [1, 1]} : vector<8x384xf32> to vector<8x128xf32>
    %359 = vector.extract_strided_slice %349 {offsets = [0, 128], sizes = [8, 128], strides = [1, 1]} : vector<8x384xf32> to vector<8x128xf32>
    %360 = arith.addf %358, %359 : vector<8x128xf32>
    %361 = arith.negf %360 : vector<8x128xf32>
    %362 = math.exp %361 : vector<8x128xf32>
    %cst_97 = arith.constant 1.000000e+00 : f32
    %363 = vector.broadcast %cst_97 : f32 to vector<8x128xf32>
    %364 = arith.addf %363, %362 : vector<8x128xf32>
    %365 = arith.divf %363, %364 : vector<8x128xf32>
    %366 = vector.extract_strided_slice %344 {offsets = [0, 256], sizes = [8, 128], strides = [1, 1]} : vector<8x384xf32> to vector<8x128xf32>
    %367 = vector.extract_strided_slice %349 {offsets = [0, 256], sizes = [8, 128], strides = [1, 1]} : vector<8x384xf32> to vector<8x128xf32>
    %368 = vector.broadcast %18 : vector<1x128xf32> to vector<8x128xf32>
    %369 = arith.addf %367, %368 : vector<8x128xf32>
    %370 = arith.mulf %357, %369 : vector<8x128xf32>
    %371 = arith.addf %366, %370 : vector<8x128xf32>
    %372 = math.tanh %371 : vector<8x128xf32>
    %cst_98 = arith.constant 1.000000e+00 : f32
    %373 = vector.broadcast %cst_98 : f32 to vector<8x128xf32>
    %374 = arith.subf %373, %365 : vector<8x128xf32>
    %375 = arith.mulf %374, %372 : vector<8x128xf32>
    %376 = arith.mulf %365, %298 : vector<8x128xf32>
    %377 = arith.addf %375, %376 : vector<8x128xf32>
    %378 = arith.truncf %328 : vector<8x128xf32> to vector<8x128xbf16>
    %cst_99 = arith.constant dense<0.000000e+00> : vector<8x384xf32>
    %379 = tpu.matmul %378, %17, %cst_99 {dimension_numbers = #tpu.dot_dimension_numbers<[1], [0], [0], [1], [0, 0, 1, 1], [], []>} : vector<8x128xbf16>, vector<128x384xbf16>, vector<8x384xf32> -> vector<8x384xf32>
    %380 = vector.extract_strided_slice %347 {offsets = [0, 0], sizes = [8, 128], strides = [1, 1]} : vector<8x384xf32> to vector<8x128xf32>
    %381 = vector.extract_strided_slice %379 {offsets = [0, 0], sizes = [8, 128], strides = [1, 1]} : vector<8x384xf32> to vector<8x128xf32>
    %382 = arith.addf %380, %381 : vector<8x128xf32>
    %383 = arith.negf %382 : vector<8x128xf32>
    %384 = math.exp %383 : vector<8x128xf32>
    %cst_100 = arith.constant 1.000000e+00 : f32
    %385 = vector.broadcast %cst_100 : f32 to vector<8x128xf32>
    %386 = arith.addf %385, %384 : vector<8x128xf32>
    %387 = arith.divf %385, %386 : vector<8x128xf32>
    %388 = vector.extract_strided_slice %347 {offsets = [0, 128], sizes = [8, 128], strides = [1, 1]} : vector<8x384xf32> to vector<8x128xf32>
    %389 = vector.extract_strided_slice %379 {offsets = [0, 128], sizes = [8, 128], strides = [1, 1]} : vector<8x384xf32> to vector<8x128xf32>
    %390 = arith.addf %388, %389 : vector<8x128xf32>
    %391 = arith.negf %390 : vector<8x128xf32>
    %392 = math.exp %391 : vector<8x128xf32>
    %cst_101 = arith.constant 1.000000e+00 : f32
    %393 = vector.broadcast %cst_101 : f32 to vector<8x128xf32>
    %394 = arith.addf %393, %392 : vector<8x128xf32>
    %395 = arith.divf %393, %394 : vector<8x128xf32>
    %396 = vector.extract_strided_slice %347 {offsets = [0, 256], sizes = [8, 128], strides = [1, 1]} : vector<8x384xf32> to vector<8x128xf32>
    %397 = vector.extract_strided_slice %379 {offsets = [0, 256], sizes = [8, 128], strides = [1, 1]} : vector<8x384xf32> to vector<8x128xf32>
    %398 = vector.broadcast %19 : vector<1x128xf32> to vector<8x128xf32>
    %399 = arith.addf %397, %398 : vector<8x128xf32>
    %400 = arith.mulf %387, %399 : vector<8x128xf32>
    %401 = arith.addf %396, %400 : vector<8x128xf32>
    %402 = math.tanh %401 : vector<8x128xf32>
    %cst_102 = arith.constant 1.000000e+00 : f32
    %403 = vector.broadcast %cst_102 : f32 to vector<8x128xf32>
    %404 = arith.subf %403, %395 : vector<8x128xf32>
    %405 = arith.mulf %404, %402 : vector<8x128xf32>
    %406 = arith.mulf %395, %328 : vector<8x128xf32>
    %407 = arith.addf %405, %406 : vector<8x128xf32>
    %408 = arith.index_cast %c4_i32 : i32 to index
    %c0_103 = arith.constant 0 : index
    %c0_104 = arith.constant 0 : index
    %409 = vector.load %arg13[%408, %c0_103, %c0_104] : memref<8x8x128xf32, #tpu.memory_space<vmem>>, vector<1x8x128xf32>
    %410 = vector.shape_cast %409 : vector<1x8x128xf32> to vector<8x128xf32>
    %411 = vector.shape_cast %377 : vector<8x128xf32> to vector<1x8x128xf32>
    tpu.vector_store %arg13[%408, %c0_103, %c0_104], %411 {strides = array<i32>} : memref<8x8x128xf32, #tpu.memory_space<vmem>>, vector<1x8x128xf32>,
    %412 = arith.index_cast %337 : i32 to index
    %c0_105 = arith.constant 0 : index
    %c0_106 = arith.constant 0 : index
    %413 = vector.load %arg14[%412, %c0_105, %c0_106] : memref<8x8x128xf32, #tpu.memory_space<vmem>>, vector<1x8x128xf32>
    %414 = vector.shape_cast %413 : vector<1x8x128xf32> to vector<8x128xf32>
    %415 = vector.shape_cast %407 : vector<8x128xf32> to vector<1x8x128xf32>
    tpu.vector_store %arg14[%412, %c0_105, %c0_106], %415 {strides = array<i32>} : memref<8x8x128xf32, #tpu.memory_space<vmem>>, vector<1x8x128xf32>,
    %c5_i32 = arith.constant 5 : i32
    %c7_i32_107 = arith.constant 7 : i32
    %416 = arith.subi %c7_i32_107, %c5_i32 : i32
    %c8_i32_108 = arith.constant 8 : i32
    %417 = arith.muli %c5_i32, %c8_i32_108 : i32
    %418 = tpu.assume_multiple %417, 8 : i32
    %c8_i32_109 = arith.constant 8 : i32
    %419 = arith.muli %416, %c8_i32_109 : i32
    %420 = tpu.assume_multiple %419, 8 : i32
    %421 = arith.index_cast %418 : i32 to index
    %c0_110 = arith.constant 0 : index
    %422 = vector.load %arg16[%421, %c0_110] : memref<64x384xbf16, #tpu.memory_space<vmem>>, vector<8x384xbf16>
    %423 = arith.extf %422 : vector<8x384xbf16> to vector<8x384xf32>
    %424 = arith.index_cast %420 : i32 to index
    %c0_111 = arith.constant 0 : index
    %425 = vector.load %arg17[%424, %c0_111] : memref<64x384xbf16, #tpu.memory_space<vmem>>, vector<8x384xbf16>
    %426 = arith.extf %425 : vector<8x384xbf16> to vector<8x384xf32>
    %427 = arith.truncf %377 : vector<8x128xf32> to vector<8x128xbf16>
    %cst_112 = arith.constant dense<0.000000e+00> : vector<8x384xf32>
    %428 = tpu.matmul %427, %16, %cst_112 {dimension_numbers = #tpu.dot_dimension_numbers<[1], [0], [0], [1], [0, 0, 1, 1], [], []>} : vector<8x128xbf16>, vector<128x384xbf16>, vector<8x384xf32> -> vector<8x384xf32>
    %429 = vector.extract_strided_slice %423 {offsets = [0, 0], sizes = [8, 128], strides = [1, 1]} : vector<8x384xf32> to vector<8x128xf32>
    %430 = vector.extract_strided_slice %428 {offsets = [0, 0], sizes = [8, 128], strides = [1, 1]} : vector<8x384xf32> to vector<8x128xf32>
    %431 = arith.addf %429, %430 : vector<8x128xf32>
    %432 = arith.negf %431 : vector<8x128xf32>
    %433 = math.exp %432 : vector<8x128xf32>
    %cst_113 = arith.constant 1.000000e+00 : f32
    %434 = vector.broadcast %cst_113 : f32 to vector<8x128xf32>
    %435 = arith.addf %434, %433 : vector<8x128xf32>
    %436 = arith.divf %434, %435 : vector<8x128xf32>
    %437 = vector.extract_strided_slice %423 {offsets = [0, 128], sizes = [8, 128], strides = [1, 1]} : vector<8x384xf32> to vector<8x128xf32>
    %438 = vector.extract_strided_slice %428 {offsets = [0, 128], sizes = [8, 128], strides = [1, 1]} : vector<8x384xf32> to vector<8x128xf32>
    %439 = arith.addf %437, %438 : vector<8x128xf32>
    %440 = arith.negf %439 : vector<8x128xf32>
    %441 = math.exp %440 : vector<8x128xf32>
    %cst_114 = arith.constant 1.000000e+00 : f32
    %442 = vector.broadcast %cst_114 : f32 to vector<8x128xf32>
    %443 = arith.addf %442, %441 : vector<8x128xf32>
    %444 = arith.divf %442, %443 : vector<8x128xf32>
    %445 = vector.extract_strided_slice %423 {offsets = [0, 256], sizes = [8, 128], strides = [1, 1]} : vector<8x384xf32> to vector<8x128xf32>
    %446 = vector.extract_strided_slice %428 {offsets = [0, 256], sizes = [8, 128], strides = [1, 1]} : vector<8x384xf32> to vector<8x128xf32>
    %447 = vector.broadcast %18 : vector<1x128xf32> to vector<8x128xf32>
    %448 = arith.addf %446, %447 : vector<8x128xf32>
    %449 = arith.mulf %436, %448 : vector<8x128xf32>
    %450 = arith.addf %445, %449 : vector<8x128xf32>
    %451 = math.tanh %450 : vector<8x128xf32>
    %cst_115 = arith.constant 1.000000e+00 : f32
    %452 = vector.broadcast %cst_115 : f32 to vector<8x128xf32>
    %453 = arith.subf %452, %444 : vector<8x128xf32>
    %454 = arith.mulf %453, %451 : vector<8x128xf32>
    %455 = arith.mulf %444, %377 : vector<8x128xf32>
    %456 = arith.addf %454, %455 : vector<8x128xf32>
    %457 = arith.truncf %407 : vector<8x128xf32> to vector<8x128xbf16>
    %cst_116 = arith.constant dense<0.000000e+00> : vector<8x384xf32>
    %458 = tpu.matmul %457, %17, %cst_116 {dimension_numbers = #tpu.dot_dimension_numbers<[1], [0], [0], [1], [0, 0, 1, 1], [], []>} : vector<8x128xbf16>, vector<128x384xbf16>, vector<8x384xf32> -> vector<8x384xf32>
    %459 = vector.extract_strided_slice %426 {offsets = [0, 0], sizes = [8, 128], strides = [1, 1]} : vector<8x384xf32> to vector<8x128xf32>
    %460 = vector.extract_strided_slice %458 {offsets = [0, 0], sizes = [8, 128], strides = [1, 1]} : vector<8x384xf32> to vector<8x128xf32>
    %461 = arith.addf %459, %460 : vector<8x128xf32>
    %462 = arith.negf %461 : vector<8x128xf32>
    %463 = math.exp %462 : vector<8x128xf32>
    %cst_117 = arith.constant 1.000000e+00 : f32
    %464 = vector.broadcast %cst_117 : f32 to vector<8x128xf32>
    %465 = arith.addf %464, %463 : vector<8x128xf32>
    %466 = arith.divf %464, %465 : vector<8x128xf32>
    %467 = vector.extract_strided_slice %426 {offsets = [0, 128], sizes = [8, 128], strides = [1, 1]} : vector<8x384xf32> to vector<8x128xf32>
    %468 = vector.extract_strided_slice %458 {offsets = [0, 128], sizes = [8, 128], strides = [1, 1]} : vector<8x384xf32> to vector<8x128xf32>
    %469 = arith.addf %467, %468 : vector<8x128xf32>
    %470 = arith.negf %469 : vector<8x128xf32>
    %471 = math.exp %470 : vector<8x128xf32>
    %cst_118 = arith.constant 1.000000e+00 : f32
    %472 = vector.broadcast %cst_118 : f32 to vector<8x128xf32>
    %473 = arith.addf %472, %471 : vector<8x128xf32>
    %474 = arith.divf %472, %473 : vector<8x128xf32>
    %475 = vector.extract_strided_slice %426 {offsets = [0, 256], sizes = [8, 128], strides = [1, 1]} : vector<8x384xf32> to vector<8x128xf32>
    %476 = vector.extract_strided_slice %458 {offsets = [0, 256], sizes = [8, 128], strides = [1, 1]} : vector<8x384xf32> to vector<8x128xf32>
    %477 = vector.broadcast %19 : vector<1x128xf32> to vector<8x128xf32>
    %478 = arith.addf %476, %477 : vector<8x128xf32>
    %479 = arith.mulf %466, %478 : vector<8x128xf32>
    %480 = arith.addf %475, %479 : vector<8x128xf32>
    %481 = math.tanh %480 : vector<8x128xf32>
    %cst_119 = arith.constant 1.000000e+00 : f32
    %482 = vector.broadcast %cst_119 : f32 to vector<8x128xf32>
    %483 = arith.subf %482, %474 : vector<8x128xf32>
    %484 = arith.mulf %483, %481 : vector<8x128xf32>
    %485 = arith.mulf %474, %407 : vector<8x128xf32>
    %486 = arith.addf %484, %485 : vector<8x128xf32>
    %487 = arith.index_cast %c5_i32 : i32 to index
    %c0_120 = arith.constant 0 : index
    %c0_121 = arith.constant 0 : index
    %488 = vector.load %arg13[%487, %c0_120, %c0_121] : memref<8x8x128xf32, #tpu.memory_space<vmem>>, vector<1x8x128xf32>
    %489 = vector.shape_cast %488 : vector<1x8x128xf32> to vector<8x128xf32>
    %490 = vector.shape_cast %456 : vector<8x128xf32> to vector<1x8x128xf32>
    tpu.vector_store %arg13[%487, %c0_120, %c0_121], %490 {strides = array<i32>} : memref<8x8x128xf32, #tpu.memory_space<vmem>>, vector<1x8x128xf32>,
    %491 = arith.index_cast %416 : i32 to index
    %c0_122 = arith.constant 0 : index
    %c0_123 = arith.constant 0 : index
    %492 = vector.load %arg14[%491, %c0_122, %c0_123] : memref<8x8x128xf32, #tpu.memory_space<vmem>>, vector<1x8x128xf32>
    %493 = vector.shape_cast %492 : vector<1x8x128xf32> to vector<8x128xf32>
    %494 = vector.shape_cast %486 : vector<8x128xf32> to vector<1x8x128xf32>
    tpu.vector_store %arg14[%491, %c0_122, %c0_123], %494 {strides = array<i32>} : memref<8x8x128xf32, #tpu.memory_space<vmem>>, vector<1x8x128xf32>,
    %c6_i32 = arith.constant 6 : i32
    %c7_i32_124 = arith.constant 7 : i32
    %495 = arith.subi %c7_i32_124, %c6_i32 : i32
    %c8_i32_125 = arith.constant 8 : i32
    %496 = arith.muli %c6_i32, %c8_i32_125 : i32
    %497 = tpu.assume_multiple %496, 8 : i32
    %c8_i32_126 = arith.constant 8 : i32
    %498 = arith.muli %495, %c8_i32_126 : i32
    %499 = tpu.assume_multiple %498, 8 : i32
    %500 = arith.index_cast %497 : i32 to index
    %c0_127 = arith.constant 0 : index
    %501 = vector.load %arg16[%500, %c0_127] : memref<64x384xbf16, #tpu.memory_space<vmem>>, vector<8x384xbf16>
    %502 = arith.extf %501 : vector<8x384xbf16> to vector<8x384xf32>
    %503 = arith.index_cast %499 : i32 to index
    %c0_128 = arith.constant 0 : index
    %504 = vector.load %arg17[%503, %c0_128] : memref<64x384xbf16, #tpu.memory_space<vmem>>, vector<8x384xbf16>
    %505 = arith.extf %504 : vector<8x384xbf16> to vector<8x384xf32>
    %506 = arith.truncf %456 : vector<8x128xf32> to vector<8x128xbf16>
    %cst_129 = arith.constant dense<0.000000e+00> : vector<8x384xf32>
    %507 = tpu.matmul %506, %16, %cst_129 {dimension_numbers = #tpu.dot_dimension_numbers<[1], [0], [0], [1], [0, 0, 1, 1], [], []>} : vector<8x128xbf16>, vector<128x384xbf16>, vector<8x384xf32> -> vector<8x384xf32>
    %508 = vector.extract_strided_slice %502 {offsets = [0, 0], sizes = [8, 128], strides = [1, 1]} : vector<8x384xf32> to vector<8x128xf32>
    %509 = vector.extract_strided_slice %507 {offsets = [0, 0], sizes = [8, 128], strides = [1, 1]} : vector<8x384xf32> to vector<8x128xf32>
    %510 = arith.addf %508, %509 : vector<8x128xf32>
    %511 = arith.negf %510 : vector<8x128xf32>
    %512 = math.exp %511 : vector<8x128xf32>
    %cst_130 = arith.constant 1.000000e+00 : f32
    %513 = vector.broadcast %cst_130 : f32 to vector<8x128xf32>
    %514 = arith.addf %513, %512 : vector<8x128xf32>
    %515 = arith.divf %513, %514 : vector<8x128xf32>
    %516 = vector.extract_strided_slice %502 {offsets = [0, 128], sizes = [8, 128], strides = [1, 1]} : vector<8x384xf32> to vector<8x128xf32>
    %517 = vector.extract_strided_slice %507 {offsets = [0, 128], sizes = [8, 128], strides = [1, 1]} : vector<8x384xf32> to vector<8x128xf32>
    %518 = arith.addf %516, %517 : vector<8x128xf32>
    %519 = arith.negf %518 : vector<8x128xf32>
    %520 = math.exp %519 : vector<8x128xf32>
    %cst_131 = arith.constant 1.000000e+00 : f32
    %521 = vector.broadcast %cst_131 : f32 to vector<8x128xf32>
    %522 = arith.addf %521, %520 : vector<8x128xf32>
    %523 = arith.divf %521, %522 : vector<8x128xf32>
    %524 = vector.extract_strided_slice %502 {offsets = [0, 256], sizes = [8, 128], strides = [1, 1]} : vector<8x384xf32> to vector<8x128xf32>
    %525 = vector.extract_strided_slice %507 {offsets = [0, 256], sizes = [8, 128], strides = [1, 1]} : vector<8x384xf32> to vector<8x128xf32>
    %526 = vector.broadcast %18 : vector<1x128xf32> to vector<8x128xf32>
    %527 = arith.addf %525, %526 : vector<8x128xf32>
    %528 = arith.mulf %515, %527 : vector<8x128xf32>
    %529 = arith.addf %524, %528 : vector<8x128xf32>
    %530 = math.tanh %529 : vector<8x128xf32>
    %cst_132 = arith.constant 1.000000e+00 : f32
    %531 = vector.broadcast %cst_132 : f32 to vector<8x128xf32>
    %532 = arith.subf %531, %523 : vector<8x128xf32>
    %533 = arith.mulf %532, %530 : vector<8x128xf32>
    %534 = arith.mulf %523, %456 : vector<8x128xf32>
    %535 = arith.addf %533, %534 : vector<8x128xf32>
    %536 = arith.truncf %486 : vector<8x128xf32> to vector<8x128xbf16>
    %cst_133 = arith.constant dense<0.000000e+00> : vector<8x384xf32>
    %537 = tpu.matmul %536, %17, %cst_133 {dimension_numbers = #tpu.dot_dimension_numbers<[1], [0], [0], [1], [0, 0, 1, 1], [], []>} : vector<8x128xbf16>, vector<128x384xbf16>, vector<8x384xf32> -> vector<8x384xf32>
    %538 = vector.extract_strided_slice %505 {offsets = [0, 0], sizes = [8, 128], strides = [1, 1]} : vector<8x384xf32> to vector<8x128xf32>
    %539 = vector.extract_strided_slice %537 {offsets = [0, 0], sizes = [8, 128], strides = [1, 1]} : vector<8x384xf32> to vector<8x128xf32>
    %540 = arith.addf %538, %539 : vector<8x128xf32>
    %541 = arith.negf %540 : vector<8x128xf32>
    %542 = math.exp %541 : vector<8x128xf32>
    %cst_134 = arith.constant 1.000000e+00 : f32
    %543 = vector.broadcast %cst_134 : f32 to vector<8x128xf32>
    %544 = arith.addf %543, %542 : vector<8x128xf32>
    %545 = arith.divf %543, %544 : vector<8x128xf32>
    %546 = vector.extract_strided_slice %505 {offsets = [0, 128], sizes = [8, 128], strides = [1, 1]} : vector<8x384xf32> to vector<8x128xf32>
    %547 = vector.extract_strided_slice %537 {offsets = [0, 128], sizes = [8, 128], strides = [1, 1]} : vector<8x384xf32> to vector<8x128xf32>
    %548 = arith.addf %546, %547 : vector<8x128xf32>
    %549 = arith.negf %548 : vector<8x128xf32>
    %550 = math.exp %549 : vector<8x128xf32>
    %cst_135 = arith.constant 1.000000e+00 : f32
    %551 = vector.broadcast %cst_135 : f32 to vector<8x128xf32>
    %552 = arith.addf %551, %550 : vector<8x128xf32>
    %553 = arith.divf %551, %552 : vector<8x128xf32>
    %554 = vector.extract_strided_slice %505 {offsets = [0, 256], sizes = [8, 128], strides = [1, 1]} : vector<8x384xf32> to vector<8x128xf32>
    %555 = vector.extract_strided_slice %537 {offsets = [0, 256], sizes = [8, 128], strides = [1, 1]} : vector<8x384xf32> to vector<8x128xf32>
    %556 = vector.broadcast %19 : vector<1x128xf32> to vector<8x128xf32>
    %557 = arith.addf %555, %556 : vector<8x128xf32>
    %558 = arith.mulf %545, %557 : vector<8x128xf32>
    %559 = arith.addf %554, %558 : vector<8x128xf32>
    %560 = math.tanh %559 : vector<8x128xf32>
    %cst_136 = arith.constant 1.000000e+00 : f32
    %561 = vector.broadcast %cst_136 : f32 to vector<8x128xf32>
    %562 = arith.subf %561, %553 : vector<8x128xf32>
    %563 = arith.mulf %562, %560 : vector<8x128xf32>
    %564 = arith.mulf %553, %486 : vector<8x128xf32>
    %565 = arith.addf %563, %564 : vector<8x128xf32>
    %566 = arith.index_cast %c6_i32 : i32 to index
    %c0_137 = arith.constant 0 : index
    %c0_138 = arith.constant 0 : index
    %567 = vector.load %arg13[%566, %c0_137, %c0_138] : memref<8x8x128xf32, #tpu.memory_space<vmem>>, vector<1x8x128xf32>
    %568 = vector.shape_cast %567 : vector<1x8x128xf32> to vector<8x128xf32>
    %569 = vector.shape_cast %535 : vector<8x128xf32> to vector<1x8x128xf32>
    tpu.vector_store %arg13[%566, %c0_137, %c0_138], %569 {strides = array<i32>} : memref<8x8x128xf32, #tpu.memory_space<vmem>>, vector<1x8x128xf32>,
    %570 = arith.index_cast %495 : i32 to index
    %c0_139 = arith.constant 0 : index
    %c0_140 = arith.constant 0 : index
    %571 = vector.load %arg14[%570, %c0_139, %c0_140] : memref<8x8x128xf32, #tpu.memory_space<vmem>>, vector<1x8x128xf32>
    %572 = vector.shape_cast %571 : vector<1x8x128xf32> to vector<8x128xf32>
    %573 = vector.shape_cast %565 : vector<8x128xf32> to vector<1x8x128xf32>
    tpu.vector_store %arg14[%570, %c0_139, %c0_140], %573 {strides = array<i32>} : memref<8x8x128xf32, #tpu.memory_space<vmem>>, vector<1x8x128xf32>,
    %c7_i32_141 = arith.constant 7 : i32
    %c7_i32_142 = arith.constant 7 : i32
    %574 = arith.subi %c7_i32_142, %c7_i32_141 : i32
    %c8_i32_143 = arith.constant 8 : i32
    %575 = arith.muli %c7_i32_141, %c8_i32_143 : i32
    %576 = tpu.assume_multiple %575, 8 : i32
    %c8_i32_144 = arith.constant 8 : i32
    %577 = arith.muli %574, %c8_i32_144 : i32
    %578 = tpu.assume_multiple %577, 8 : i32
    %579 = arith.index_cast %576 : i32 to index
    %c0_145 = arith.constant 0 : index
    %580 = vector.load %arg16[%579, %c0_145] : memref<64x384xbf16, #tpu.memory_space<vmem>>, vector<8x384xbf16>
    %581 = arith.extf %580 : vector<8x384xbf16> to vector<8x384xf32>
    %582 = arith.index_cast %578 : i32 to index
    %c0_146 = arith.constant 0 : index
    %583 = vector.load %arg17[%582, %c0_146] : memref<64x384xbf16, #tpu.memory_space<vmem>>, vector<8x384xbf16>
    %584 = arith.extf %583 : vector<8x384xbf16> to vector<8x384xf32>
    %585 = arith.truncf %535 : vector<8x128xf32> to vector<8x128xbf16>
    %cst_147 = arith.constant dense<0.000000e+00> : vector<8x384xf32>
    %586 = tpu.matmul %585, %16, %cst_147 {dimension_numbers = #tpu.dot_dimension_numbers<[1], [0], [0], [1], [0, 0, 1, 1], [], []>} : vector<8x128xbf16>, vector<128x384xbf16>, vector<8x384xf32> -> vector<8x384xf32>
    %587 = vector.extract_strided_slice %581 {offsets = [0, 0], sizes = [8, 128], strides = [1, 1]} : vector<8x384xf32> to vector<8x128xf32>
    %588 = vector.extract_strided_slice %586 {offsets = [0, 0], sizes = [8, 128], strides = [1, 1]} : vector<8x384xf32> to vector<8x128xf32>
    %589 = arith.addf %587, %588 : vector<8x128xf32>
    %590 = arith.negf %589 : vector<8x128xf32>
    %591 = math.exp %590 : vector<8x128xf32>
    %cst_148 = arith.constant 1.000000e+00 : f32
    %592 = vector.broadcast %cst_148 : f32 to vector<8x128xf32>
    %593 = arith.addf %592, %591 : vector<8x128xf32>
    %594 = arith.divf %592, %593 : vector<8x128xf32>
    %595 = vector.extract_strided_slice %581 {offsets = [0, 128], sizes = [8, 128], strides = [1, 1]} : vector<8x384xf32> to vector<8x128xf32>
    %596 = vector.extract_strided_slice %586 {offsets = [0, 128], sizes = [8, 128], strides = [1, 1]} : vector<8x384xf32> to vector<8x128xf32>
    %597 = arith.addf %595, %596 : vector<8x128xf32>
    %598 = arith.negf %597 : vector<8x128xf32>
    %599 = math.exp %598 : vector<8x128xf32>
    %cst_149 = arith.constant 1.000000e+00 : f32
    %600 = vector.broadcast %cst_149 : f32 to vector<8x128xf32>
    %601 = arith.addf %600, %599 : vector<8x128xf32>
    %602 = arith.divf %600, %601 : vector<8x128xf32>
    %603 = vector.extract_strided_slice %581 {offsets = [0, 256], sizes = [8, 128], strides = [1, 1]} : vector<8x384xf32> to vector<8x128xf32>
    %604 = vector.extract_strided_slice %586 {offsets = [0, 256], sizes = [8, 128], strides = [1, 1]} : vector<8x384xf32> to vector<8x128xf32>
    %605 = vector.broadcast %18 : vector<1x128xf32> to vector<8x128xf32>
    %606 = arith.addf %604, %605 : vector<8x128xf32>
    %607 = arith.mulf %594, %606 : vector<8x128xf32>
    %608 = arith.addf %603, %607 : vector<8x128xf32>
    %609 = math.tanh %608 : vector<8x128xf32>
    %cst_150 = arith.constant 1.000000e+00 : f32
    %610 = vector.broadcast %cst_150 : f32 to vector<8x128xf32>
    %611 = arith.subf %610, %602 : vector<8x128xf32>
    %612 = arith.mulf %611, %609 : vector<8x128xf32>
    %613 = arith.mulf %602, %535 : vector<8x128xf32>
    %614 = arith.addf %612, %613 : vector<8x128xf32>
    %615 = arith.truncf %565 : vector<8x128xf32> to vector<8x128xbf16>
    %cst_151 = arith.constant dense<0.000000e+00> : vector<8x384xf32>
    %616 = tpu.matmul %615, %17, %cst_151 {dimension_numbers = #tpu.dot_dimension_numbers<[1], [0], [0], [1], [0, 0, 1, 1], [], []>} : vector<8x128xbf16>, vector<128x384xbf16>, vector<8x384xf32> -> vector<8x384xf32>
    %617 = vector.extract_strided_slice %584 {offsets = [0, 0], sizes = [8, 128], strides = [1, 1]} : vector<8x384xf32> to vector<8x128xf32>
    %618 = vector.extract_strided_slice %616 {offsets = [0, 0], sizes = [8, 128], strides = [1, 1]} : vector<8x384xf32> to vector<8x128xf32>
    %619 = arith.addf %617, %618 : vector<8x128xf32>
    %620 = arith.negf %619 : vector<8x128xf32>
    %621 = math.exp %620 : vector<8x128xf32>
    %cst_152 = arith.constant 1.000000e+00 : f32
    %622 = vector.broadcast %cst_152 : f32 to vector<8x128xf32>
    %623 = arith.addf %622, %621 : vector<8x128xf32>
    %624 = arith.divf %622, %623 : vector<8x128xf32>
    %625 = vector.extract_strided_slice %584 {offsets = [0, 128], sizes = [8, 128], strides = [1, 1]} : vector<8x384xf32> to vector<8x128xf32>
    %626 = vector.extract_strided_slice %616 {offsets = [0, 128], sizes = [8, 128], strides = [1, 1]} : vector<8x384xf32> to vector<8x128xf32>
    %627 = arith.addf %625, %626 : vector<8x128xf32>
    %628 = arith.negf %627 : vector<8x128xf32>
    %629 = math.exp %628 : vector<8x128xf32>
    %cst_153 = arith.constant 1.000000e+00 : f32
    %630 = vector.broadcast %cst_153 : f32 to vector<8x128xf32>
    %631 = arith.addf %630, %629 : vector<8x128xf32>
    %632 = arith.divf %630, %631 : vector<8x128xf32>
    %633 = vector.extract_strided_slice %584 {offsets = [0, 256], sizes = [8, 128], strides = [1, 1]} : vector<8x384xf32> to vector<8x128xf32>
    %634 = vector.extract_strided_slice %616 {offsets = [0, 256], sizes = [8, 128], strides = [1, 1]} : vector<8x384xf32> to vector<8x128xf32>
    %635 = vector.broadcast %19 : vector<1x128xf32> to vector<8x128xf32>
    %636 = arith.addf %634, %635 : vector<8x128xf32>
    %637 = arith.mulf %624, %636 : vector<8x128xf32>
    %638 = arith.addf %633, %637 : vector<8x128xf32>
    %639 = math.tanh %638 : vector<8x128xf32>
    %cst_154 = arith.constant 1.000000e+00 : f32
    %640 = vector.broadcast %cst_154 : f32 to vector<8x128xf32>
    %641 = arith.subf %640, %632 : vector<8x128xf32>
    %642 = arith.mulf %641, %639 : vector<8x128xf32>
    %643 = arith.mulf %632, %565 : vector<8x128xf32>
    %644 = arith.addf %642, %643 : vector<8x128xf32>
    %645 = arith.index_cast %c7_i32_141 : i32 to index
    %c0_155 = arith.constant 0 : index
    %c0_156 = arith.constant 0 : index
    %646 = vector.load %arg13[%645, %c0_155, %c0_156] : memref<8x8x128xf32, #tpu.memory_space<vmem>>, vector<1x8x128xf32>
    %647 = vector.shape_cast %646 : vector<1x8x128xf32> to vector<8x128xf32>
    %648 = vector.shape_cast %614 : vector<8x128xf32> to vector<1x8x128xf32>
    tpu.vector_store %arg13[%645, %c0_155, %c0_156], %648 {strides = array<i32>} : memref<8x8x128xf32, #tpu.memory_space<vmem>>, vector<1x8x128xf32>,
    %649 = arith.index_cast %574 : i32 to index
    %c0_157 = arith.constant 0 : index
    %c0_158 = arith.constant 0 : index
    %650 = vector.load %arg14[%649, %c0_157, %c0_158] : memref<8x8x128xf32, #tpu.memory_space<vmem>>, vector<1x8x128xf32>
    %651 = vector.shape_cast %650 : vector<1x8x128xf32> to vector<8x128xf32>
    %652 = vector.shape_cast %644 : vector<8x128xf32> to vector<1x8x128xf32>
    tpu.vector_store %arg14[%649, %c0_157, %c0_158], %652 {strides = array<i32>} : memref<8x8x128xf32, #tpu.memory_space<vmem>>, vector<1x8x128xf32>,
    %c8_i32_159 = arith.constant 8 : i32
    %c0_160 = arith.constant 0 : index
    %c0_161 = arith.constant 0 : index
    %653 = vector.load %arg10[%c0_160, %c0_161] : memref<128x128xf32, #tpu.memory_space<vmem>>, vector<128x128xf32>
    %cst_162 = arith.constant dense<0.000000e+00> : vector<8x128xf32>
    %654 = tpu.matmul %614, %653, %cst_162 {dimension_numbers = #tpu.dot_dimension_numbers<[1], [0], [0], [1], [0, 0, 1, 1], [], []>} : vector<8x128xf32>, vector<128x128xf32>, vector<8x128xf32> -> vector<8x128xf32>
    %c0_163 = arith.constant 0 : index
    %c0_164 = arith.constant 0 : index
    %655 = vector.load %arg11[%c0_163, %c0_164] : memref<128x128xf32, #tpu.memory_space<vmem>>, vector<128x128xf32>
    %cst_165 = arith.constant dense<0.000000e+00> : vector<8x128xf32>
    %656 = tpu.matmul %644, %655, %cst_165 {dimension_numbers = #tpu.dot_dimension_numbers<[1], [0], [0], [1], [0, 0, 1, 1], [], []>} : vector<8x128xf32>, vector<128x128xf32>, vector<8x128xf32> -> vector<8x128xf32>
    %657 = arith.addf %654, %656 : vector<8x128xf32>
    %c0_166 = arith.constant 0 : index
    %c0_167 = arith.constant 0 : index
    %658 = vector.load %arg12[%c0_166, %c0_167] : memref<1x128xf32, #tpu.memory_space<vmem>>, vector<1x128xf32>
    %659 = vector.broadcast %658 : vector<1x128xf32> to vector<8x128xf32>
    %660 = arith.addf %657, %659 : vector<8x128xf32>
    %661 = math.tanh %660 : vector<8x128xf32>
    %c0_168 = arith.constant 0 : index
    %c0_169 = arith.constant 0 : index
    %662 = vector.load %arg15[%c0_168, %c0_169] : memref<8x128xf32, #tpu.memory_space<vmem>>, vector<8x128xf32>
    tpu.vector_store %arg15[%c0_168, %c0_169], %661 {strides = array<i32>} : memref<8x128xf32, #tpu.memory_space<vmem>>, vector<8x128xf32>,
    return
  }
  func.func @transform_0(%arg0: i32) -> (i32, i32, i32) {
    %c0_i32 = arith.constant 0 : i32
    %c0_i32_0 = arith.constant 0 : i32
    %c0_i32_1 = arith.constant 0 : i32
    return %arg0, %c0_i32, %c0_i32_0 : i32, i32, i32
  }
  func.func @transform_1(%arg0: i32) -> (i32, i32) {
    %c0_i32 = arith.constant 0 : i32
    %c0_i32_0 = arith.constant 0 : i32
    %c0_i32_1 = arith.constant 0 : i32
    return %c0_i32, %c0_i32_0 : i32, i32
  }
  func.func @transform_2(%arg0: i32) -> (i32, i32) {
    %c0_i32 = arith.constant 0 : i32
    %c0_i32_0 = arith.constant 0 : i32
    %c0_i32_1 = arith.constant 0 : i32
    return %c0_i32, %c0_i32_0 : i32, i32
  }
  func.func @transform_3(%arg0: i32) -> (i32, i32) {
    %c0_i32 = arith.constant 0 : i32
    %c0_i32_0 = arith.constant 0 : i32
    %c0_i32_1 = arith.constant 0 : i32
    return %c0_i32, %c0_i32_0 : i32, i32
  }
  func.func @transform_4(%arg0: i32) -> (i32, i32) {
    %c0_i32 = arith.constant 0 : i32
    %c0_i32_0 = arith.constant 0 : i32
    %c0_i32_1 = arith.constant 0 : i32
    return %c0_i32, %c0_i32_0 : i32, i32
  }
  func.func @transform_5(%arg0: i32) -> (i32, i32) {
    %c0_i32 = arith.constant 0 : i32
    %c0_i32_0 = arith.constant 0 : i32
    %c0_i32_1 = arith.constant 0 : i32
    return %c0_i32, %c0_i32_0 : i32, i32
  }
  func.func @transform_6(%arg0: i32) -> (i32, i32) {
    %c0_i32 = arith.constant 0 : i32
    %c0_i32_0 = arith.constant 0 : i32
    %c0_i32_1 = arith.constant 0 : i32
    return %c0_i32, %c0_i32_0 : i32, i32
  }
  func.func @transform_7(%arg0: i32) -> (i32, i32) {
    %c0_i32 = arith.constant 0 : i32
    %c0_i32_0 = arith.constant 0 : i32
    %c0_i32_1 = arith.constant 0 : i32
    return %c0_i32, %c0_i32_0 : i32, i32
  }
  func.func @transform_8(%arg0: i32) -> (i32, i32) {
    %c0_i32 = arith.constant 0 : i32
    %c0_i32_0 = arith.constant 0 : i32
    %c0_i32_1 = arith.constant 0 : i32
    return %c0_i32, %c0_i32_0 : i32, i32
  }
  func.func @transform_9(%arg0: i32) -> (i32, i32) {
    %c0_i32 = arith.constant 0 : i32
    %c0_i32_0 = arith.constant 0 : i32
    %c0_i32_1 = arith.constant 0 : i32
    return %c0_i32, %c0_i32_0 : i32, i32
  }
  func.func @transform_10(%arg0: i32) -> (i32, i32) {
    %c0_i32 = arith.constant 0 : i32
    %c0_i32_0 = arith.constant 0 : i32
    %c0_i32_1 = arith.constant 0 : i32
    return %c0_i32, %c0_i32_0 : i32, i32
  }
  func.func @transform_11(%arg0: i32) -> (i32, i32) {
    %c0_i32 = arith.constant 0 : i32
    %c0_i32_0 = arith.constant 0 : i32
    %c0_i32_1 = arith.constant 0 : i32
    return %c0_i32, %c0_i32_0 : i32, i32
  }
  func.func @transform_12(%arg0: i32) -> (i32, i32, i32) {
    %c0_i32 = arith.constant 0 : i32
    %c0_i32_0 = arith.constant 0 : i32
    %c0_i32_1 = arith.constant 0 : i32
    return %c0_i32, %arg0, %c0_i32_0 : i32, i32, i32
  }
  func.func @transform_13(%arg0: i32) -> (i32, i32, i32) {
    %c0_i32 = arith.constant 0 : i32
    %c0_i32_0 = arith.constant 0 : i32
    %c0_i32_1 = arith.constant 0 : i32
    return %c0_i32, %arg0, %c0_i32_0 : i32, i32, i32
  }
  func.func @transform_14(%arg0: i32) -> (i32, i32) {
    %c0_i32 = arith.constant 0 : i32
    %c0_i32_0 = arith.constant 0 : i32
    return %arg0, %c0_i32 : i32, i32
  }
}

</mosaic_0001>

<llo_original>
// kernel: tpu_custom_call.1
$region0: #{tpu_custom_call.1}
  #allocation0 [shape = 'u32[]', space=smem, size = 0x4, offset = 0x4, fixed_abs, tag = 'smem constant byte address 0x4 - core index']
  #allocation1 [shape = 'u32[72,128]{1,0:T(1,128)}', space=vmem, size = 0x9000, scoped, tag = 'internal scratch']
  #allocation2 [shape = 'bf16[64,384]{1,0:T(8,128)(2,1)}', space=vmem, size = 0xc000, scoped, tag = 'scratch operand']
  #allocation3 [shape = 'bf16[64,384]{1,0:T(8,128)(2,1)}', space=vmem, size = 0xc000, scoped, tag = 'scratch operand']
  %s0 = inlined_call_operand.vmem [shape: bf16[1,64,16], index: 0, kind: input, shape index: {}]
  %s1 = inlined_call_operand.vmem [shape: bf16[16,384], index: 1, kind: input, shape index: {}]
  %s2 = inlined_call_operand.hbm [shape: bf16[16,384], index: 2, kind: input, shape index: {}]
  %s3 = inlined_call_operand.vmem [shape: f32[1,384], index: 3, kind: input, shape index: {}]
  %s4 = inlined_call_operand.vmem [shape: f32[1,384], index: 4, kind: input, shape index: {}]
  %s5 = inlined_call_operand.hbm [shape: bf16[128,384], index: 5, kind: input, shape index: {}]
  %s6 = inlined_call_operand.hbm [shape: bf16[128,384], index: 6, kind: input, shape index: {}]
  %s7 = inlined_call_operand.vmem [shape: f32[1,128], index: 7, kind: input, shape index: {}]
  %s8 = inlined_call_operand.vmem [shape: f32[1,128], index: 8, kind: input, shape index: {}]
  %s9 = inlined_call_operand.hbm [shape: f32[128,128], index: 9, kind: input, shape index: {}]
  %s10 = inlined_call_operand.hbm [shape: f32[128,128], index: 10, kind: input, shape index: {}]
  %s11 = inlined_call_operand.vmem [shape: f32[1,128], index: 11, kind: input, shape index: {}]
  %s12 = inlined_call_operand.hbm [shape: f32[8,8,128], index: 12, kind: output, shape index: {0}]
  %s13 = inlined_call_operand.hbm [shape: f32[8,8,128], index: 13, kind: output, shape index: {1}]
  %s14 = inlined_call_operand.hbm [shape: f32[8,128], index: 14, kind: output, shape index: {2}]
  %15 = xla_tuple %s12, %s13, %s14
  %s16 = sld [smem:[#allocation0]]
  $region94: #{tpu_custom_call.1} parent=0
    _
  %s18 = ssub.s32 1, %s16
  %s19 = scalar_select 0, %s18, %s16
  $region1: #{tpu_custom_call.1} parent=0
    #allocation4 [shape = 'u8[12288]{0}', space=vmem, size = 0x3000, scoped, tag = 'input window, operand 2, single buffered']
    #allocation5 [shape = 's32[1]{0}', space=sflag, size = 0x4, scoped, tag = 'scoped memory for tpu_custom_call.1']
    #allocation6 [shape = 's32[1]{0}', space=sflag, size = 0x4, scoped, tag = 'scoped memory for tpu_custom_call.1']
    #allocation7 [shape = 'u8[98304]{0}', space=vmem, size = 0x18000, scoped, tag = 'input window, operand 5, single buffered']
    #allocation8 [shape = 's32[1]{0}', space=sflag, size = 0x4, scoped, tag = 'scoped memory for tpu_custom_call.1']
    #allocation9 [shape = 'u8[98304]{0}', space=vmem, size = 0x18000, scoped, tag = 'input window, operand 6, single buffered']
    #allocation10 [shape = 'u8[65536]{0}', space=vmem, size = 0x10000, scoped, tag = 'input window, operand 9, single buffered']
    #allocation11 [shape = 's32[1]{0}', space=sflag, size = 0x4, scoped, tag = 'scoped memory for tpu_custom_call.1']
    #allocation12 [shape = 'u8[65536]{0}', space=vmem, size = 0x10000, scoped, tag = 'input window, operand 10, single buffered']
    #allocation13 [shape = 'u8[32768]{0}', space=vmem, size = 0x8000, scoped, tag = 'output window, operand 0, single buffered']
    #allocation14 [shape = 'u8[32768]{0}', space=vmem, size = 0x8000, scoped, tag = 'output window, operand 1, single buffered']
    #allocation15 [shape = 's32[1]{0}', space=sflag, size = 0x4, scoped, tag = 'scoped memory for tpu_custom_call.1']
    #allocation16 [shape = 'u8[4096]{0}', space=vmem, size = 0x1000, scoped, tag = 'output window, operand 2, single buffered']
    %20 = vsyncpa [#allocation5], 0
    %21 = vsyncpa [#allocation8], 0
    %22 = vsyncpa [#allocation11], 0
    %23 = vsyncpa [#allocation6], 0
    %24 = vsyncpa [#allocation15], 0
    // Predicated region
    $region2: #{tpu_custom_call.1} parent=1 // pred_check
      _
    $region3: #{tpu_custom_call.1} parent=1 // pred_check_branch
      %26 = sbr.rel (0) target = $region5
    $region4: #{tpu_custom_call.1} parent=1 // pred_region
      _
    $region5: #{tpu_custom_call.1} parent=1 // pred_fallthru
      _
    // Predicated region
    $region6: #{tpu_custom_call.1} parent=1 // pred_check
      _
    $region7: #{tpu_custom_call.1} parent=1 // pred_check_branch
      %28 = sbr.rel (0) target = $region9
    $region8: #{tpu_custom_call.1} parent=1 // pred_region
      _
    $region9: #{tpu_custom_call.1} parent=1 // pred_fallthru
      _
    // Predicated region
    $region10: #{tpu_custom_call.1} parent=1 // pred_check
      _
    $region11: #{tpu_custom_call.1} parent=1 // pred_check_branch
      %30 = sbr.rel (0) target = $region13
    $region12: #{tpu_custom_call.1} parent=1 // pred_region
      %32 = vsyncadd [#allocation5], 0
      %s33 = sshll.u32 %s2, 4
      %s34 = int_to_ptr.hbm [resolvable:$true] %s33
      %s35 = sshll.u32 [#allocation4], 4
      %s36 = int_to_ptr.vmem [resolvable:$true] %s35
      %41 = dma.hbm_to_vmem [thread:$0]  %s34, 384, %s36, [#allocation5], 192, 192, 12
    $region13: #{tpu_custom_call.1} parent=1 // pred_fallthru
      _
    // Predicated region
    $region14: #{tpu_custom_call.1} parent=1 // pred_check
      _
    $region15: #{tpu_custom_call.1} parent=1 // pred_check_branch
      %43 = sbr.rel (0) target = $region17
    $region16: #{tpu_custom_call.1} parent=1 // pred_region
      _
    $region17: #{tpu_custom_call.1} parent=1 // pred_fallthru
      _
    // Predicated region
    $region18: #{tpu_custom_call.1} parent=1 // pred_check
      _
    $region19: #{tpu_custom_call.1} parent=1 // pred_check_branch
      %45 = sbr.rel (0) target = $region21
    $region20: #{tpu_custom_call.1} parent=1 // pred_region
      _
    $region21: #{tpu_custom_call.1} parent=1 // pred_fallthru
      _
    // Predicated region
    $region22: #{tpu_custom_call.1} parent=1 // pred_check
      _
    $region23: #{tpu_custom_call.1} parent=1 // pred_check_branch
      %47 = sbr.rel (0) target = $region25
    $region24: #{tpu_custom_call.1} parent=1 // pred_region
      %49 = vsyncadd [#allocation8], 0
      %s50 = sshll.u32 %s5, 4
      %s51 = int_to_ptr.hbm [resolvable:$true] %s50
      %s52 = sshll.u32 [#allocation7], 4
      %s53 = int_to_ptr.vmem [resolvable:$true] %s52
      %58 = dma.hbm_to_vmem [thread:$0]  %s51, 3072, %s53, [#allocation8], 192, 192, 12
    $region25: #{tpu_custom_call.1} parent=1 // pred_fallthru
      _
    // Predicated region
    $region26: #{tpu_custom_call.1} parent=1 // pred_check
      _
    $region27: #{tpu_custom_call.1} parent=1 // pred_check_branch
      %60 = sbr.rel (0) target = $region29
    $region28: #{tpu_custom_call.1} parent=1 // pred_region
      %62 = vsyncadd [#allocation8], 0
      %s63 = sshll.u32 %s6, 4
      %s64 = int_to_ptr.hbm [resolvable:$true] %s63
      %s65 = sshll.u32 [#allocation9], 4
      %s66 = int_to_ptr.vmem [resolvable:$true] %s65
      %71 = dma.hbm_to_vmem [thread:$0]  %s64, 3072, %s66, [#allocation8], 192, 192, 12
    $region29: #{tpu_custom_call.1} parent=1 // pred_fallthru
      _
    // Predicated region
    $region30: #{tpu_custom_call.1} parent=1 // pred_check
      _
    $region31: #{tpu_custom_call.1} parent=1 // pred_check_branch
      %73 = sbr.rel (0) target = $region33
    $region32: #{tpu_custom_call.1} parent=1 // pred_region
      _
    $region33: #{tpu_custom_call.1} parent=1 // pred_fallthru
      _
    // Predicated region
    $region34: #{tpu_custom_call.1} parent=1 // pred_check
      _
    $region35: #{tpu_custom_call.1} parent=1 // pred_check_branch
      %75 = sbr.rel (0) target = $region37
    $region36: #{tpu_custom_call.1} parent=1 // pred_region
      _
    $region37: #{tpu_custom_call.1} parent=1 // pred_fallthru
      _
    // Predicated region
    $region38: #{tpu_custom_call.1} parent=1 // pred_check
      _
    $region39: #{tpu_custom_call.1} parent=1 // pred_check_branch
      %77 = sbr.rel (0) target = $region41
    $region40: #{tpu_custom_call.1} parent=1 // pred_region
      %79 = vsyncadd [#allocation11], 0
      %s80 = sshll.u32 %s9, 4
      %s81 = int_to_ptr.hbm [resolvable:$true] %s80
      %s82 = sshll.u32 [#allocation10], 4
      %s83 = int_to_ptr.vmem [resolvable:$true] %s82
      %88 = dma.hbm_to_vmem [thread:$0]  %s81, 2048, %s83, [#allocation11], 128, 128, 8
    $region41: #{tpu_custom_call.1} parent=1 // pred_fallthru
      _
    // Predicated region
    $region42: #{tpu_custom_call.1} parent=1 // pred_check
      _
    $region43: #{tpu_custom_call.1} parent=1 // pred_check_branch
      %90 = sbr.rel (0) target = $region45
    $region44: #{tpu_custom_call.1} parent=1 // pred_region
      %92 = vsyncadd [#allocation11], 0
      %s93 = sshll.u32 %s10, 4
      %s94 = int_to_ptr.hbm [resolvable:$true] %s93
      %s95 = sshll.u32 [#allocation12], 4
      %s96 = int_to_ptr.vmem [resolvable:$true] %s95
      %101 = dma.hbm_to_vmem [thread:$0]  %s94, 2048, %s96, [#allocation11], 128, 128, 8
    $region45: #{tpu_custom_call.1} parent=1 // pred_fallthru
      _
    // Predicated region
    $region46: #{tpu_custom_call.1} parent=1 // pred_check
      _
    $region47: #{tpu_custom_call.1} parent=1 // pred_check_branch
      %103 = sbr.rel (0) target = $region49
    $region48: #{tpu_custom_call.1} parent=1 // pred_region
      _
    $region49: #{tpu_custom_call.1} parent=1 // pred_fallthru
      _
    // Predicated region
    $region50: #{tpu_custom_call.1} parent=1 // pred_check
      _
    $region51: #{tpu_custom_call.1} parent=1 // pred_check_branch
      %105 = sbr.rel (0) target = $region53
    $region52: #{tpu_custom_call.1} parent=1 // pred_region
      %107 = dma.done [#allocation5], 384
    $region53: #{tpu_custom_call.1} parent=1 // pred_fallthru
      _
    // Predicated region
    $region54: #{tpu_custom_call.1} parent=1 // pred_check
      _
    $region55: #{tpu_custom_call.1} parent=1 // pred_check_branch
      %109 = sbr.rel (0) target = $region57
    $region56: #{tpu_custom_call.1} parent=1 // pred_region
      %111 = dma.done [#allocation8], 3072
    $region57: #{tpu_custom_call.1} parent=1 // pred_fallthru
      _
    // Predicated region
    $region58: #{tpu_custom_call.1} parent=1 // pred_check
      _
    $region59: #{tpu_custom_call.1} parent=1 // pred_check_branch
      %113 = sbr.rel (0) target = $region61
    $region60: #{tpu_custom_call.1} parent=1 // pred_region
      %115 = dma.done [#allocation8], 3072
    $region61: #{tpu_custom_call.1} parent=1 // pred_fallthru
      _
    // Predicated region
    $region62: #{tpu_custom_call.1} parent=1 // pred_check
      _
    $region63: #{tpu_custom_call.1} parent=1 // pred_check_branch
      %117 = sbr.rel (0) target = $region65
    $region64: #{tpu_custom_call.1} parent=1 // pred_region
      %119 = dma.done [#allocation11], 2048
    $region65: #{tpu_custom_call.1} parent=1 // pred_fallthru
      _
    // Predicated region
    $region66: #{tpu_custom_call.1} parent=1 // pred_check
      _
    $region67: #{tpu_custom_call.1} parent=1 // pred_check_branch
      %121 = sbr.rel (0) target = $region69
    $region68: #{tpu_custom_call.1} parent=1 // pred_region
      %123 = dma.done [#allocation11], 2048
    $region69: #{tpu_custom_call.1} parent=1 // pred_fallthru
      _
    %v125 = vld [vmem:[%s0] sm:$0xf]
    %v126 = vld [vmem:[%s0 + $0x4] sm:$0xf]
    %v127 = vld [vmem:[%s0 + $0x8] sm:$0xf]
    %v128 = vld [vmem:[%s0 + $0xc] sm:$0xf]
    %v129 = vld [vmem:[%s0 + $0x10] sm:$0xf]
    %v130 = vld [vmem:[%s0 + $0x14] sm:$0xf]
    %v131 = vld [vmem:[%s0 + $0x18] sm:$0xf]
    %v132 = vld [vmem:[%s0 + $0x1c] sm:$0xf]
    %v133 = vld [vmem:[%s1] sm:$0xff]
    %v134 = vld [vmem:[%s1 + $0x8] sm:$0xf]
    %v135 = vld [vmem:[%s1 + $0xc] sm:$0xff]
    %v136 = vld [vmem:[%s1 + $0x14] sm:$0xf]
    %v137 = vld [vmem:[%s3] sm:$0x7]
    %v139 = vperm.slane %v137, 0
    %v140 = vperm.slane %v137, 1
    %v141 = vperm.slane %v137, 2
    %v153 = vunpack.c.l.b16 %v125
    %v154 = vunpack.c.l.b16 %v126
    %v155 = vunpack.c.l.b16 %v127
    %v156 = vunpack.c.l.b16 %v128
    %v157 = vunpack.c.l.b16 %v129
    %v158 = vunpack.c.l.b16 %v130
    %v159 = vunpack.c.l.b16 %v131
    %v160 = vunpack.c.l.b16 %v132
    %v161 = vpack.c.b16 %v154, %v153
    %v162 = vpack.c.b16 %v156, %v155
    %v163 = vpack.c.b16 %v158, %v157
    %v164 = vpack.c.b16 %v160, %v159
    %v169 = vunpack.c.l.b16 %v133
    %v170 = vunpack.c.h.b16 %v133
    %v171 = vunpack.c.l.b16 %v134
    %v172 = vunpack.c.l.b16 %v135
    %v173 = vunpack.c.h.b16 %v135
    %v174 = vunpack.c.l.b16 %v136
    %v175 = vpack.c.b16 %v172, %v169
    %v176 = vpack.c.b16 %v173, %v170
    %v177 = vpack.c.b16 %v174, %v171
    %vm181 = vcmask 130048
    %v183 = vsel %vm181, %v161, 0
    %v186 = vsel %vm181, %v162, 0
    %v189 = vsel %vm181, %v163, 0
    %v192 = vsel %vm181, %v164, 0
    %194 = vmatpush.bf16.msra.mxu0 0
    %195 = vmatpush.bf16.msra.mxu0 0
    %196 = vmatpush.bf16.msra.mxu0 0
    %197 = vmatpush.bf16.msra.mxu0 0
    %198 = vmatpush.bf16.msra.mxu0 0
    %199 = vmatpush.bf16.msra.mxu0 0
    %200 = vmatpush.bf16.msra.mxu0 0
    %201 = vmatpush.bf16.msra.mxu0 %v175
    %202 = vmatmul.bf16.gmra.mxu0 %v183
    %v203 = vpop.f32.mrf.mxu0
    %v204 = vadd.f32 %v139, %v203
    %v205 = vpop.f32.mrf.mxu0
    %v206 = vadd.f32 %v139, %v205
    %207 = vmatmul.bf16.gmra.mxu0 %v186
    %v208 = vpop.f32.mrf.mxu0
    %v209 = vadd.f32 %v139, %v208
    %v210 = vpop.f32.mrf.mxu0
    %v211 = vadd.f32 %v139, %v210
    %212 = vmatmul.bf16.gmra.mxu0 %v189
    %v213 = vpop.f32.mrf.mxu0
    %v214 = vadd.f32 %v139, %v213
    %v215 = vpop.f32.mrf.mxu0
    %v216 = vadd.f32 %v139, %v215
    %217 = vmatmul.bf16.gmra.mxu0 %v192
    %v218 = vpop.f32.mrf.mxu0
    %v219 = vadd.f32 %v139, %v218
    %v220 = vpop.f32.mrf.mxu0
    %v221 = vadd.f32 %v139, %v220
    %222 = vdwg.mxu0
    %223 = vmatpush.bf16.msra.mxu0 0
    %224 = vmatpush.bf16.msra.mxu0 0
    %225 = vmatpush.bf16.msra.mxu0 0
    %226 = vmatpush.bf16.msra.mxu0 0
    %227 = vmatpush.bf16.msra.mxu0 0
    %228 = vmatpush.bf16.msra.mxu0 0
    %229 = vmatpush.bf16.msra.mxu0 0
    %230 = vmatpush.bf16.msra.mxu0 %v176
    %231 = vmatmul.bf16.gmra.mxu0 %v183
    %v232 = vpop.f32.mrf.mxu0
    %v233 = vadd.f32 %v140, %v232
    %v234 = vpop.f32.mrf.mxu0
    %v235 = vadd.f32 %v140, %v234
    %236 = vmatmul.bf16.gmra.mxu0 %v186
    %v237 = vpop.f32.mrf.mxu0
    %v238 = vadd.f32 %v140, %v237
    %v239 = vpop.f32.mrf.mxu0
    %v240 = vadd.f32 %v140, %v239
    %241 = vmatmul.bf16.gmra.mxu0 %v189
    %v242 = vpop.f32.mrf.mxu0
    %v243 = vadd.f32 %v140, %v242
    %v244 = vpop.f32.mrf.mxu0
    %v245 = vadd.f32 %v140, %v244
    %246 = vmatmul.bf16.gmra.mxu0 %v192
    %v247 = vpop.f32.mrf.mxu0
    %v248 = vadd.f32 %v140, %v247
    %v249 = vpop.f32.mrf.mxu0
    %v250 = vadd.f32 %v140, %v249
    %251 = vdwg.mxu0
    %252 = vmatpush.bf16.msra.mxu0 0
    %253 = vmatpush.bf16.msra.mxu0 0
    %254 = vmatpush.bf16.msra.mxu0 0
    %255 = vmatpush.bf16.msra.mxu0 0
    %256 = vmatpush.bf16.msra.mxu0 0
    %257 = vmatpush.bf16.msra.mxu0 0
    %258 = vmatpush.bf16.msra.mxu0 0
    %259 = vmatpush.bf16.msra.mxu0 %v177
    %260 = vmatmul.bf16.gmra.mxu0 %v183
    %v261 = vpop.f32.mrf.mxu0
    %v262 = vadd.f32 %v141, %v261
    %v263 = vpop.f32.mrf.mxu0
    %v264 = vadd.f32 %v141, %v263
    %265 = vmatmul.bf16.gmra.mxu0 %v186
    %v266 = vpop.f32.mrf.mxu0
    %v267 = vadd.f32 %v141, %v266
    %v268 = vpop.f32.mrf.mxu0
    %v269 = vadd.f32 %v141, %v268
    %270 = vmatmul.bf16.gmra.mxu0 %v189
    %v271 = vpop.f32.mrf.mxu0
    %v272 = vadd.f32 %v141, %v271
    %v273 = vpop.f32.mrf.mxu0
    %v274 = vadd.f32 %v141, %v273
    %275 = vmatmul.bf16.gmra.mxu0 %v192
    %v276 = vpop.f32.mrf.mxu0
    %v277 = vadd.f32 %v141, %v276
    %v278 = vpop.f32.mrf.mxu0
    %v279 = vadd.f32 %v141, %v278
    %280 = vdwg.mxu0
    %v281 = vpack.c.bf16 %v233, %v204
    %v282 = vpack.c.bf16 %v262, %v262
    %v283 = vpack.c.bf16 %v235, %v206
    %v284 = vpack.c.bf16 %v264, %v264
    %v285 = vpack.c.bf16 %v238, %v209
    %v286 = vpack.c.bf16 %v267, %v267
    %v287 = vpack.c.bf16 %v240, %v211
    %v288 = vpack.c.bf16 %v269, %v269
    %v289 = vpack.c.bf16 %v243, %v214
    %v290 = vpack.c.bf16 %v272, %v272
    %v291 = vpack.c.bf16 %v245, %v216
    %v292 = vpack.c.bf16 %v274, %v274
    %v293 = vpack.c.bf16 %v248, %v219
    %v294 = vpack.c.bf16 %v277, %v277
    %v295 = vpack.c.bf16 %v250, %v221
    %v296 = vpack.c.bf16 %v279, %v279
    %297 = vst [vmem:[#allocation2] sm:$0xff] %v281
    %298 = vst [vmem:[#allocation2 + $0x8] sm:$0xf] %v282
    %299 = vst [vmem:[#allocation2 + $0xc] sm:$0xff] %v283
    %300 = vst [vmem:[#allocation2 + $0x14] sm:$0xf] %v284
    %301 = vst [vmem:[#allocation2 + $0x18] sm:$0xff] %v285
    %302 = vst [vmem:[#allocation2 + $0x20] sm:$0xf] %v286
    %303 = vst [vmem:[#allocation2 + $0x24] sm:$0xff] %v287
    %304 = vst [vmem:[#allocation2 + $0x2c] sm:$0xf] %v288
    %305 = vst [vmem:[#allocation2 + $0x30] sm:$0xff] %v289
    %306 = vst [vmem:[#allocation2 + $0x38] sm:$0xf] %v290
    %307 = vst [vmem:[#allocation2 + $0x3c] sm:$0xff] %v291
    %308 = vst [vmem:[#allocation2 + $0x44] sm:$0xf] %v292
    %309 = vst [vmem:[#allocation2 + $0x48] sm:$0xff] %v293
    %310 = vst [vmem:[#allocation2 + $0x50] sm:$0xf] %v294
    %311 = vst [vmem:[#allocation2 + $0x54] sm:$0xff] %v295
    %312 = vst [vmem:[#allocation2 + $0x5c] sm:$0xf] %v296
    %v313 = vld [vmem:[#allocation4] sm:$0xff]
    %v314 = vld [vmem:[#allocation4 + $0x8] sm:$0xf]
    %v315 = vld [vmem:[#allocation4 + $0xc] sm:$0xff]
    %v316 = vld [vmem:[#allocation4 + $0x14] sm:$0xf]
    %v317 = vld [vmem:[%s4] sm:$0x7]
    %v319 = vperm.slane %v317, 0
    %v320 = vperm.slane %v317, 1
    %v321 = vperm.slane %v317, 2
    %v329 = vunpack.c.l.b16 %v313
    %v330 = vunpack.c.h.b16 %v313
    %v331 = vunpack.c.l.b16 %v314
    %v332 = vunpack.c.l.b16 %v315
    %v333 = vunpack.c.h.b16 %v315
    %v334 = vunpack.c.l.b16 %v316
    %v335 = vpack.c.b16 %v332, %v329
    %v336 = vpack.c.b16 %v333, %v330
    %v337 = vpack.c.b16 %v334, %v331
    %341 = vmatpush.bf16.msra.mxu0 0
    %342 = vmatpush.bf16.msra.mxu0 0
    %343 = vmatpush.bf16.msra.mxu0 0
    %344 = vmatpush.bf16.msra.mxu0 0
    %345 = vmatpush.bf16.msra.mxu0 0
    %346 = vmatpush.bf16.msra.mxu0 0
    %347 = vmatpush.bf16.msra.mxu0 0
    %348 = vmatpush.bf16.msra.mxu0 %v335
    %349 = vmatmul.bf16.gmra.mxu0 %v183
    %v350 = vpop.f32.mrf.mxu0
    %v351 = vadd.f32 %v319, %v350
    %v352 = vpop.f32.mrf.mxu0
    %v353 = vadd.f32 %v319, %v352
    %354 = vmatmul.bf16.gmra.mxu0 %v186
    %v355 = vpop.f32.mrf.mxu0
    %v356 = vadd.f32 %v319, %v355
    %v357 = vpop.f32.mrf.mxu0
    %v358 = vadd.f32 %v319, %v357
    %359 = vmatmul.bf16.gmra.mxu0 %v189
    %v360 = vpop.f32.mrf.mxu0
    %v361 = vadd.f32 %v319, %v360
    %v362 = vpop.f32.mrf.mxu0
    %v363 = vadd.f32 %v319, %v362
    %364 = vmatmul.bf16.gmra.mxu0 %v192
    %v365 = vpop.f32.mrf.mxu0
    %v366 = vadd.f32 %v319, %v365
    %v367 = vpop.f32.mrf.mxu0
    %v368 = vadd.f32 %v319, %v367
    %369 = vdwg.mxu0
    %370 = vmatpush.bf16.msra.mxu0 0
    %371 = vmatpush.bf16.msra.mxu0 0
    %372 = vmatpush.bf16.msra.mxu0 0
    %373 = vmatpush.bf16.msra.mxu0 0
    %374 = vmatpush.bf16.msra.mxu0 0
    %375 = vmatpush.bf16.msra.mxu0 0
    %376 = vmatpush.bf16.msra.mxu0 0
    %377 = vmatpush.bf16.msra.mxu0 %v336
    %378 = vmatmul.bf16.gmra.mxu0 %v183
    %v379 = vpop.f32.mrf.mxu0
    %v380 = vadd.f32 %v320, %v379
    %v381 = vpop.f32.mrf.mxu0
    %v382 = vadd.f32 %v320, %v381
    %383 = vmatmul.bf16.gmra.mxu0 %v186
    %v384 = vpop.f32.mrf.mxu0
    %v385 = vadd.f32 %v320, %v384
    %v386 = vpop.f32.mrf.mxu0
    %v387 = vadd.f32 %v320, %v386
    %388 = vmatmul.bf16.gmra.mxu0 %v189
    %v389 = vpop.f32.mrf.mxu0
    %v390 = vadd.f32 %v320, %v389
    %v391 = vpop.f32.mrf.mxu0
    %v392 = vadd.f32 %v320, %v391
    %393 = vmatmul.bf16.gmra.mxu0 %v192
    %v394 = vpop.f32.mrf.mxu0
    %v395 = vadd.f32 %v320, %v394
    %v396 = vpop.f32.mrf.mxu0
    %v397 = vadd.f32 %v320, %v396
    %398 = vdwg.mxu0
    %399 = vmatpush.bf16.msra.mxu0 0
    %400 = vmatpush.bf16.msra.mxu0 0
    %401 = vmatpush.bf16.msra.mxu0 0
    %402 = vmatpush.bf16.msra.mxu0 0
    %403 = vmatpush.bf16.msra.mxu0 0
    %404 = vmatpush.bf16.msra.mxu0 0
    %405 = vmatpush.bf16.msra.mxu0 0
    %406 = vmatpush.bf16.msra.mxu0 %v337
    %407 = vmatmul.bf16.gmra.mxu0 %v183
    %v408 = vpop.f32.mrf.mxu0
    %v409 = vadd.f32 %v321, %v408
    %v410 = vpop.f32.mrf.mxu0
    %v411 = vadd.f32 %v321, %v410
    %412 = vmatmul.bf16.gmra.mxu0 %v186
    %v413 = vpop.f32.mrf.mxu0
    %v414 = vadd.f32 %v321, %v413
    %v415 = vpop.f32.mrf.mxu0
    %v416 = vadd.f32 %v321, %v415
    %417 = vmatmul.bf16.gmra.mxu0 %v189
    %v418 = vpop.f32.mrf.mxu0
    %v419 = vadd.f32 %v321, %v418
    %v420 = vpop.f32.mrf.mxu0
    %v421 = vadd.f32 %v321, %v420
    %422 = vmatmul.bf16.gmra.mxu0 %v192
    %v423 = vpop.f32.mrf.mxu0
    %v424 = vadd.f32 %v321, %v423
    %v425 = vpop.f32.mrf.mxu0
    %v426 = vadd.f32 %v321, %v425
    %427 = vdwg.mxu0
    %v428 = vpack.c.bf16 %v380, %v351
    %v429 = vpack.c.bf16 %v409, %v409
    %v430 = vpack.c.bf16 %v382, %v353
    %v431 = vpack.c.bf16 %v411, %v411
    %v432 = vpack.c.bf16 %v385, %v356
    %v433 = vpack.c.bf16 %v414, %v414
    %v434 = vpack.c.bf16 %v387, %v358
    %v435 = vpack.c.bf16 %v416, %v416
    %v436 = vpack.c.bf16 %v390, %v361
    %v437 = vpack.c.bf16 %v419, %v419
    %v438 = vpack.c.bf16 %v392, %v363
    %v439 = vpack.c.bf16 %v421, %v421
    %v440 = vpack.c.bf16 %v395, %v366
    %v441 = vpack.c.bf16 %v424, %v424
    %v442 = vpack.c.bf16 %v397, %v368
    %v443 = vpack.c.bf16 %v426, %v426
    %444 = vst [vmem:[#allocation3] sm:$0xff] %v428
    %445 = vst [vmem:[#allocation3 + $0x8] sm:$0xf] %v429
    %446 = vst [vmem:[#allocation3 + $0xc] sm:$0xff] %v430
    %447 = vst [vmem:[#allocation3 + $0x14] sm:$0xf] %v431
    %448 = vst [vmem:[#allocation3 + $0x18] sm:$0xff] %v432
    %449 = vst [vmem:[#allocation3 + $0x20] sm:$0xf] %v433
    %450 = vst [vmem:[#allocation3 + $0x24] sm:$0xff] %v434
    %451 = vst [vmem:[#allocation3 + $0x2c] sm:$0xf] %v435
    %452 = vst [vmem:[#allocation3 + $0x30] sm:$0xff] %v436
    %453 = vst [vmem:[#allocation3 + $0x38] sm:$0xf] %v437
    %454 = vst [vmem:[#allocation3 + $0x3c] sm:$0xff] %v438
    %455 = vst [vmem:[#allocation3 + $0x44] sm:$0xf] %v439
    %456 = vst [vmem:[#allocation3 + $0x48] sm:$0xff] %v440
    %457 = vst [vmem:[#allocation3 + $0x50] sm:$0xf] %v441
    %458 = vst [vmem:[#allocation3 + $0x54] sm:$0xff] %v442
    %459 = vst [vmem:[#allocation3 + $0x5c] sm:$0xf] %v443
    %v460 = vld [vmem:[#allocation7] sm:$0xff]
    %v461 = vld [vmem:[#allocation7 + $0x8] sm:$0xf]
    %v462 = vld [vmem:[#allocation7 + $0xc] sm:$0xff]
    %v463 = vld [vmem:[#allocation7 + $0x14] sm:$0xf]
    %v464 = vld [vmem:[#allocation7 + $0x18] sm:$0xff]
    %v465 = vld [vmem:[#allocation7 + $0x20] sm:$0xf]
    %v466 = vld [vmem:[#allocation7 + $0x24] sm:$0xff]
    %v467 = vld [vmem:[#allocation7 + $0x2c] sm:$0xf]
    %v468 = vld [vmem:[#allocation7 + $0x30] sm:$0xff]
    %v469 = vld [vmem:[#allocation7 + $0x38] sm:$0xf]
    %v470 = vld [vmem:[#allocation7 + $0x3c] sm:$0xff]
    %v471 = vld [vmem:[#allocation7 + $0x44] sm:$0xf]
    %v472 = vld [vmem:[#allocation7 + $0x48] sm:$0xff]
    %v473 = vld [vmem:[#allocation7 + $0x50] sm:$0xf]
    %v474 = vld [vmem:[#allocation7 + $0x54] sm:$0xff]
    %v475 = vld [vmem:[#allocation7 + $0x5c] sm:$0xf]
    %v476 = vld [vmem:[#allocation7 + $0x60] sm:$0xff]
    %v477 = vld [vmem:[#allocation7 + $0x68] sm:$0xf]
    %v478 = vld [vmem:[#allocation7 + $0x6c] sm:$0xff]
    %v479 = vld [vmem:[#allocation7 + $0x74] sm:$0xf]
    %v480 = vld [vmem:[#allocation7 + $0x78] sm:$0xff]
    %v481 = vld [vmem:[#allocation7 + $0x80] sm:$0xf]
    %v482 = vld [vmem:[#allocation7 + $0x84] sm:$0xff]
    %v483 = vld [vmem:[#allocation7 + $0x8c] sm:$0xf]
    %v484 = vld [vmem:[#allocation7 + $0x90] sm:$0xff]
    %v485 = vld [vmem:[#allocation7 + $0x98] sm:$0xf]
    %v486 = vld [vmem:[#allocation7 + $0x9c] sm:$0xff]
    %v487 = vld [vmem:[#allocation7 + $0xa4] sm:$0xf]
    %v488 = vld [vmem:[#allocation7 + $0xa8] sm:$0xff]
    %v489 = vld [vmem:[#allocation7 + $0xb0] sm:$0xf]
    %v490 = vld [vmem:[#allocation7 + $0xb4] sm:$0xff]
    %v491 = vld [vmem:[#allocation7 + $0xbc] sm:$0xf]
    %v492 = vld [vmem:[#allocation9] sm:$0xff]
    %v493 = vld [vmem:[#allocation9 + $0x8] sm:$0xf]
    %v494 = vld [vmem:[#allocation9 + $0xc] sm:$0xff]
    %v495 = vld [vmem:[#allocation9 + $0x14] sm:$0xf]
    %v496 = vld [vmem:[#allocation9 + $0x18] sm:$0xff]
    %v497 = vld [vmem:[#allocation9 + $0x20] sm:$0xf]
    %v498 = vld [vmem:[#allocation9 + $0x24] sm:$0xff]
    %v499 = vld [vmem:[#allocation9 + $0x2c] sm:$0xf]
    %v500 = vld [vmem:[#allocation9 + $0x30] sm:$0xff]
    %v501 = vld [vmem:[#allocation9 + $0x38] sm:$0xf]
    %v502 = vld [vmem:[#allocation9 + $0x3c] sm:$0xff]
    %v503 = vld [vmem:[#allocation9 + $0x44] sm:$0xf]
    %v504 = vld [vmem:[#allocation9 + $0x48] sm:$0xff]
    %v505 = vld [vmem:[#allocation9 + $0x50] sm:$0xf]
    %v506 = vld [vmem:[#allocation9 + $0x54] sm:$0xff]
    %v507 = vld [vmem:[#allocation9 + $0x5c] sm:$0xf]
    %v508 = vld [vmem:[#allocation9 + $0x60] sm:$0xff]
    %v509 = vld [vmem:[#allocation9 + $0x68] sm:$0xf]
    %v510 = vld [vmem:[#allocation9 + $0x6c] sm:$0xff]
    %v511 = vld [vmem:[#allocation9 + $0x74] sm:$0xf]
    %v512 = vld [vmem:[#allocation9 + $0x78] sm:$0xff]
    %v513 = vld [vmem:[#allocation9 + $0x80] sm:$0xf]
    %v514 = vld [vmem:[#allocation9 + $0x84] sm:$0xff]
    %v515 = vld [vmem:[#allocation9 + $0x8c] sm:$0xf]
    %v516 = vld [vmem:[#allocation9 + $0x90] sm:$0xff]
    %v517 = vld [vmem:[#allocation9 + $0x98] sm:$0xf]
    %v518 = vld [vmem:[#allocation9 + $0x9c] sm:$0xff]
    %v519 = vld [vmem:[#allocation9 + $0xa4] sm:$0xf]
    %v520 = vld [vmem:[#allocation9 + $0xa8] sm:$0xff]
    %v521 = vld [vmem:[#allocation9 + $0xb0] sm:$0xf]
    %v522 = vld [vmem:[#allocation9 + $0xb4] sm:$0xff]
    %v523 = vld [vmem:[#allocation9 + $0xbc] sm:$0xf]
    %v524 = vld [vmem:[%s7] sm:$0x1]
    %v525 = vld [vmem:[%s8] sm:$0x1]
    %s526 = smul.u32 0, 3
    %s527 = smul.addr %s526, 4
    %s528 = scalar_lea.vmem [#allocation2], %s527
    %v529 = vld [vmem:[%s528] sm:$0xff]
    %v530 = vld [vmem:[%s528 + $0x8] sm:$0xf]
    %v531 = vunpack.c.l.bf16 %v529
    %v532 = vunpack.c.h.bf16 %v529
    %v533 = vunpack.c.l.bf16 %v530
    %s534 = smul.u32 7, 3
    %s535 = smul.addr %s534, 4
    %s536 = scalar_lea.vmem [#allocation3], %s535
    %v537 = vld [vmem:[%s536] sm:$0xff]
    %v538 = vld [vmem:[%s536 + $0x8] sm:$0xf]
    %v539 = vunpack.c.l.bf16 %v537
    %v540 = vunpack.c.h.bf16 %v537
    %v541 = vunpack.c.l.bf16 %v538
    %v574 = vunpack.c.l.b16 %v460
    %v575 = vunpack.c.h.b16 %v460
    %v576 = vunpack.c.l.b16 %v461
    %v577 = vunpack.c.l.b16 %v462
    %v578 = vunpack.c.h.b16 %v462
    %v579 = vunpack.c.l.b16 %v463
    %v580 = vunpack.c.l.b16 %v464
    %v581 = vunpack.c.h.b16 %v464
    %v582 = vunpack.c.l.b16 %v465
    %v583 = vunpack.c.l.b16 %v466
    %v584 = vunpack.c.h.b16 %v466
    %v585 = vunpack.c.l.b16 %v467
    %v586 = vunpack.c.l.b16 %v468
    %v587 = vunpack.c.h.b16 %v468
    %v588 = vunpack.c.l.b16 %v469
    %v589 = vunpack.c.l.b16 %v470
    %v590 = vunpack.c.h.b16 %v470
    %v591 = vunpack.c.l.b16 %v471
    %v592 = vunpack.c.l.b16 %v472
    %v593 = vunpack.c.h.b16 %v472
    %v594 = vunpack.c.l.b16 %v473
    %v595 = vunpack.c.l.b16 %v474
    %v596 = vunpack.c.h.b16 %v474
    %v597 = vunpack.c.l.b16 %v475
    %v598 = vunpack.c.l.b16 %v476
    %v599 = vunpack.c.h.b16 %v476
    %v600 = vunpack.c.l.b16 %v477
    %v601 = vunpack.c.l.b16 %v478
    %v602 = vunpack.c.h.b16 %v478
    %v603 = vunpack.c.l.b16 %v479
    %v604 = vunpack.c.l.b16 %v480
    %v605 = vunpack.c.h.b16 %v480
    %v606 = vunpack.c.l.b16 %v481
    %v607 = vunpack.c.l.b16 %v482
    %v608 = vunpack.c.h.b16 %v482
    %v609 = vunpack.c.l.b16 %v483
    %v610 = vunpack.c.l.b16 %v484
    %v611 = vunpack.c.h.b16 %v484
    %v612 = vunpack.c.l.b16 %v485
    %v613 = vunpack.c.l.b16 %v486
    %v614 = vunpack.c.h.b16 %v486
    %v615 = vunpack.c.l.b16 %v487
    %v616 = vunpack.c.l.b16 %v488
    %v617 = vunpack.c.h.b16 %v488
    %v618 = vunpack.c.l.b16 %v489
    %v619 = vunpack.c.l.b16 %v490
    %v620 = vunpack.c.h.b16 %v490
    %v621 = vunpack.c.l.b16 %v491
    %v622 = vpack.c.b16 %v577, %v574
    %v623 = vpack.c.b16 %v578, %v575
    %v624 = vpack.c.b16 %v579, %v576
    %v625 = vpack.c.b16 %v583, %v580
    %v626 = vpack.c.b16 %v584, %v581
    %v627 = vpack.c.b16 %v585, %v582
    %v628 = vpack.c.b16 %v589, %v586
    %v629 = vpack.c.b16 %v590, %v587
    %v630 = vpack.c.b16 %v591, %v588
    %v631 = vpack.c.b16 %v595, %v592
    %v632 = vpack.c.b16 %v596, %v593
    %v633 = vpack.c.b16 %v597, %v594
    %v634 = vpack.c.b16 %v601, %v598
    %v635 = vpack.c.b16 %v602, %v599
    %v636 = vpack.c.b16 %v603, %v600
    %v637 = vpack.c.b16 %v607, %v604
    %v638 = vpack.c.b16 %v608, %v605
    %v639 = vpack.c.b16 %v609, %v606
    %v640 = vpack.c.b16 %v613, %v610
    %v641 = vpack.c.b16 %v614, %v611
    %v642 = vpack.c.b16 %v615, %v612
    %v643 = vpack.c.b16 %v619, %v616
    %v644 = vpack.c.b16 %v620, %v617
    %v645 = vpack.c.b16 %v621, %v618
    %670 = vmatpush.bf16.msra.mxu0 %v643
    %671 = vmatpush.bf16.msra.mxu0 %v640
    %672 = vmatpush.bf16.msra.mxu0 %v637
    %673 = vmatpush.bf16.msra.mxu0 %v634
    %674 = vmatpush.bf16.msra.mxu0 %v631
    %675 = vmatpush.bf16.msra.mxu0 %v628
    %676 = vmatpush.bf16.msra.mxu0 %v625
    %677 = vmatpush.bf16.msra.mxu0 %v622
    %678 = vmatmul.bf16.gmra.mxu0 0
    %v679 = vpop.f32.mrf.mxu0
    %v680 = vadd.f32 0.0, %v679
    %v681 = vpop.f32.mrf.mxu0
    %682 = vdwg.mxu0
    %683 = vmatpush.bf16.msra.mxu0 %v644
    %684 = vmatpush.bf16.msra.mxu0 %v641
    %685 = vmatpush.bf16.msra.mxu0 %v638
    %686 = vmatpush.bf16.msra.mxu0 %v635
    %687 = vmatpush.bf16.msra.mxu0 %v632
    %688 = vmatpush.bf16.msra.mxu0 %v629
    %689 = vmatpush.bf16.msra.mxu0 %v626
    %690 = vmatpush.bf16.msra.mxu0 %v623
    %691 = vmatmul.bf16.gmra.mxu0 0
    %v692 = vpop.f32.mrf.mxu0
    %v693 = vadd.f32 0.0, %v692
    %v694 = vpop.f32.mrf.mxu0
    %695 = vdwg.mxu0
    %696 = vmatpush.bf16.msra.mxu0 %v645
    %697 = vmatpush.bf16.msra.mxu0 %v642
    %698 = vmatpush.bf16.msra.mxu0 %v639
    %699 = vmatpush.bf16.msra.mxu0 %v636
    %700 = vmatpush.bf16.msra.mxu0 %v633
    %701 = vmatpush.bf16.msra.mxu0 %v630
    %702 = vmatpush.bf16.msra.mxu0 %v627
    %703 = vmatpush.bf16.msra.mxu0 %v624
    %704 = vmatmul.bf16.gmra.mxu0 0
    %v705 = vpop.f32.mrf.mxu0
    %v706 = vadd.f32 0.0, %v705
    %v707 = vpop.f32.mrf.mxu0
    %708 = vdwg.mxu0
    %v709 = vadd.f32 %v531, %v680
    %v710 = vxor.u32 %v709, 2147483648
    %v711 = vmul.f32 %v710, 1.442695
    %v712 = vpow.pop %v711
    %v713 = vadd.f32 %v712, 1.0
    %v714 = vrcp.pop %v713
    %v715 = vmul.f32 %v713, %v714
    %v716 = vsub.f32 1.0, %v715
    %v717 = vmul.f32 %v714, %v716
    %v718 = vadd.f32 %v714, %v717
    %vm719 = vweird.f32 %v713
    %vm720 = vweird.f32 %v714
    %vm721 = vmor %vm719, %vm720
    %v722 = vsel %vm721, %v714, %v718
    %v723 = vand.u32 2147483647, %v713
    %vm724 = vcmp.eq.f32.partialorder %v723, 8.507059e+37
    %v725 = vand.u32 %v713, 2147483648
    %v726 = vor.u32 1.1754944e-38, %v725
    %v727 = vsel %vm724, %v726, %v722
    %v728 = vmul.f32 1.0, %v727
    %v729 = vadd.f32 %v532, %v693
    %v730 = vxor.u32 %v729, 2147483648
    %v731 = vmul.f32 %v730, 1.442695
    %v732 = vpow.pop %v731
    %v733 = vadd.f32 %v732, 1.0
    %v734 = vrcp.pop %v733
    %v735 = vmul.f32 %v733, %v734
    %v736 = vsub.f32 1.0, %v735
    %v737 = vmul.f32 %v734, %v736
    %v738 = vadd.f32 %v734, %v737
    %vm739 = vweird.f32 %v733
    %vm740 = vweird.f32 %v734
    %vm741 = vmor %vm739, %vm740
    %v742 = vsel %vm741, %v734, %v738
    %v743 = vand.u32 2147483647, %v733
    %vm744 = vcmp.eq.f32.partialorder %v743, 8.507059e+37
    %v745 = vand.u32 %v733, 2147483648
    %v746 = vor.u32 1.1754944e-38, %v745
    %v747 = vsel %vm744, %v746, %v742
    %v748 = vmul.f32 1.0, %v747
    %v750 = vperm.slane %v524, 0
    %v752 = vadd.f32 %v706, %v750
    %v753 = vmul.f32 %v728, %v752
    %v754 = vadd.f32 %v533, %v753
    %v755 = vtanh.pop %v754
    %v756 = vsub.f32 1.0, %v748
    %v757 = vmul.f32 %v756, %v755
    %v758 = vmul.f32 %v748, 0.0
    %v759 = vadd.f32 %v757, %v758
    %v792 = vunpack.c.l.b16 %v492
    %v793 = vunpack.c.h.b16 %v492
    %v794 = vunpack.c.l.b16 %v493
    %v795 = vunpack.c.l.b16 %v494
    %v796 = vunpack.c.h.b16 %v494
    %v797 = vunpack.c.l.b16 %v495
    %v798 = vunpack.c.l.b16 %v496
    %v799 = vunpack.c.h.b16 %v496
    %v800 = vunpack.c.l.b16 %v497
    %v801 = vunpack.c.l.b16 %v498
    %v802 = vunpack.c.h.b16 %v498
    %v803 = vunpack.c.l.b16 %v499
    %v804 = vunpack.c.l.b16 %v500
    %v805 = vunpack.c.h.b16 %v500
    %v806 = vunpack.c.l.b16 %v501
    %v807 = vunpack.c.l.b16 %v502
    %v808 = vunpack.c.h.b16 %v502
    %v809 = vunpack.c.l.b16 %v503
    %v810 = vunpack.c.l.b16 %v504
    %v811 = vunpack.c.h.b16 %v504
    %v812 = vunpack.c.l.b16 %v505
    %v813 = vunpack.c.l.b16 %v506
    %v814 = vunpack.c.h.b16 %v506
    %v815 = vunpack.c.l.b16 %v507
    %v816 = vunpack.c.l.b16 %v508
    %v817 = vunpack.c.h.b16 %v508
    %v818 = vunpack.c.l.b16 %v509
    %v819 = vunpack.c.l.b16 %v510
    %v820 = vunpack.c.h.b16 %v510
    %v821 = vunpack.c.l.b16 %v511
    %v822 = vunpack.c.l.b16 %v512
    %v823 = vunpack.c.h.b16 %v512
    %v824 = vunpack.c.l.b16 %v513
    %v825 = vunpack.c.l.b16 %v514
    %v826 = vunpack.c.h.b16 %v514
    %v827 = vunpack.c.l.b16 %v515
    %v828 = vunpack.c.l.b16 %v516
    %v829 = vunpack.c.h.b16 %v516
    %v830 = vunpack.c.l.b16 %v517
    %v831 = vunpack.c.l.b16 %v518
    %v832 = vunpack.c.h.b16 %v518
    %v833 = vunpack.c.l.b16 %v519
    %v834 = vunpack.c.l.b16 %v520
    %v835 = vunpack.c.h.b16 %v520
    %v836 = vunpack.c.l.b16 %v521
    %v837 = vunpack.c.l.b16 %v522
    %v838 = vunpack.c.h.b16 %v522
    %v839 = vunpack.c.l.b16 %v523
    %v840 = vpack.c.b16 %v795, %v792
    %v841 = vpack.c.b16 %v796, %v793
    %v842 = vpack.c.b16 %v797, %v794
    %v843 = vpack.c.b16 %v801, %v798
    %v844 = vpack.c.b16 %v802, %v799
    %v845 = vpack.c.b16 %v803, %v800
    %v846 = vpack.c.b16 %v807, %v804
    %v847 = vpack.c.b16 %v808, %v805
    %v848 = vpack.c.b16 %v809, %v806
    %v849 = vpack.c.b16 %v813, %v810
    %v850 = vpack.c.b16 %v814, %v811
    %v851 = vpack.c.b16 %v815, %v812
    %v852 = vpack.c.b16 %v819, %v816
    %v853 = vpack.c.b16 %v820, %v817
    %v854 = vpack.c.b16 %v821, %v818
    %v855 = vpack.c.b16 %v825, %v822
    %v856 = vpack.c.b16 %v826, %v823
    %v857 = vpack.c.b16 %v827, %v824
    %v858 = vpack.c.b16 %v831, %v828
    %v859 = vpack.c.b16 %v832, %v829
    %v860 = vpack.c.b16 %v833, %v830
    %v861 = vpack.c.b16 %v837, %v834
    %v862 = vpack.c.b16 %v838, %v835
    %v863 = vpack.c.b16 %v839, %v836
    %888 = vmatpush.bf16.msra.mxu0 %v861
    %889 = vmatpush.bf16.msra.mxu0 %v858
    %890 = vmatpush.bf16.msra.mxu0 %v855
    %891 = vmatpush.bf16.msra.mxu0 %v852
    %892 = vmatpush.bf16.msra.mxu0 %v849
    %893 = vmatpush.bf16.msra.mxu0 %v846
    %894 = vmatpush.bf16.msra.mxu0 %v843
    %895 = vmatpush.bf16.msra.mxu0 %v840
    %896 = vmatmul.bf16.gmra.mxu0 0
    %v897 = vpop.f32.mrf.mxu0
    %v898 = vadd.f32 0.0, %v897
    %v899 = vpop.f32.mrf.mxu0
    %900 = vdwg.mxu0
    %901 = vmatpush.bf16.msra.mxu0 %v862
    %902 = vmatpush.bf16.msra.mxu0 %v859
    %903 = vmatpush.bf16.msra.mxu0 %v856
    %904 = vmatpush.bf16.msra.mxu0 %v853
    %905 = vmatpush.bf16.msra.mxu0 %v850
    %906 = vmatpush.bf16.msra.mxu0 %v847
    %907 = vmatpush.bf16.msra.mxu0 %v844
    %908 = vmatpush.bf16.msra.mxu0 %v841
    %909 = vmatmul.bf16.gmra.mxu0 0
    %v910 = vpop.f32.mrf.mxu0
    %v911 = vadd.f32 0.0, %v910
    %v912 = vpop.f32.mrf.mxu0
    %913 = vdwg.mxu0
    %914 = vmatpush.bf16.msra.mxu0 %v863
    %915 = vmatpush.bf16.msra.mxu0 %v860
    %916 = vmatpush.bf16.msra.mxu0 %v857
    %917 = vmatpush.bf16.msra.mxu0 %v854
    %918 = vmatpush.bf16.msra.mxu0 %v851
    %919 = vmatpush.bf16.msra.mxu0 %v848
    %920 = vmatpush.bf16.msra.mxu0 %v845
    %921 = vmatpush.bf16.msra.mxu0 %v842
    %922 = vmatmul.bf16.gmra.mxu0 0
    %v923 = vpop.f32.mrf.mxu0
    %v924 = vadd.f32 0.0, %v923
    %v925 = vpop.f32.mrf.mxu0
    %926 = vdwg.mxu0
    %v927 = vadd.f32 %v539, %v898
    %v928 = vxor.u32 %v927, 2147483648
    %v929 = vmul.f32 %v928, 1.442695
    %v930 = vpow.pop %v929
    %v931 = vadd.f32 %v930, 1.0
    %v932 = vrcp.pop %v931
    %v933 = vmul.f32 %v931, %v932
    %v934 = vsub.f32 1.0, %v933
    %v935 = vmul.f32 %v932, %v934
    %v936 = vadd.f32 %v932, %v935
    %vm937 = vweird.f32 %v931
    %vm938 = vweird.f32 %v932
    %vm939 = vmor %vm937, %vm938
    %v940 = vsel %vm939, %v932, %v936
    %v941 = vand.u32 2147483647, %v931
    %vm942 = vcmp.eq.f32.partialorder %v941, 8.507059e+37
    %v943 = vand.u32 %v931, 2147483648
    %v944 = vor.u32 1.1754944e-38, %v943
    %v945 = vsel %vm942, %v944, %v940
    %v946 = vmul.f32 1.0, %v945
    %v947 = vadd.f32 %v540, %v911
    %v948 = vxor.u32 %v947, 2147483648
    %v949 = vmul.f32 %v948, 1.442695
    %v950 = vpow.pop %v949
    %v951 = vadd.f32 %v950, 1.0
    %v952 = vrcp.pop %v951
    %v953 = vmul.f32 %v951, %v952
    %v954 = vsub.f32 1.0, %v953
    %v955 = vmul.f32 %v952, %v954
    %v956 = vadd.f32 %v952, %v955
    %vm957 = vweird.f32 %v951
    %vm958 = vweird.f32 %v952
    %vm959 = vmor %vm957, %vm958
    %v960 = vsel %vm959, %v952, %v956
    %v961 = vand.u32 2147483647, %v951
    %vm962 = vcmp.eq.f32.partialorder %v961, 8.507059e+37
    %v963 = vand.u32 %v951, 2147483648
    %v964 = vor.u32 1.1754944e-38, %v963
    %v965 = vsel %vm962, %v964, %v960
    %v966 = vmul.f32 1.0, %v965
    %v968 = vperm.slane %v525, 0
    %v970 = vadd.f32 %v924, %v968
    %v971 = vmul.f32 %v946, %v970
    %v972 = vadd.f32 %v541, %v971
    %v973 = vtanh.pop %v972
    %v974 = vsub.f32 1.0, %v966
    %v975 = vmul.f32 %v974, %v973
    %v976 = vmul.f32 %v966, 0.0
    %v977 = vadd.f32 %v975, %v976
    %978 = vst [vmem:[#allocation13] sm:$0xff] %v759
    %s979 = scalar_lea.vmem [#allocation14], 56
    %980 = vst [vmem:[%s979] sm:$0xff] %v977
    %s981 = smul.u32 1, 3
    %s982 = smul.addr %s981, 4
    %s983 = scalar_lea.vmem [#allocation2], %s982
    %v984 = vld [vmem:[%s983] sm:$0xff]
    %v985 = vld [vmem:[%s983 + $0x8] sm:$0xf]
    %v986 = vunpack.c.l.bf16 %v984
    %v987 = vunpack.c.h.bf16 %v984
    %v988 = vunpack.c.l.bf16 %v985
    %s989 = smul.u32 6, 3
    %s990 = smul.addr %s989, 4
    %s991 = scalar_lea.vmem [#allocation3], %s990
    %v992 = vld [vmem:[%s991] sm:$0xff]
    %v993 = vld [vmem:[%s991 + $0x8] sm:$0xf]
    %v994 = vunpack.c.l.bf16 %v992
    %v995 = vunpack.c.h.bf16 %v992
    %v996 = vunpack.c.l.bf16 %v993
    %v997 = vpack.c.bf16 %v759, %v759
    %998 = vmatpush.bf16.msra.mxu0 %v643
    %999 = vmatpush.bf16.msra.mxu0 %v640
    %1000 = vmatpush.bf16.msra.mxu0 %v637
    %1001 = vmatpush.bf16.msra.mxu0 %v634
    %1002 = vmatpush.bf16.msra.mxu0 %v631
    %1003 = vmatpush.bf16.msra.mxu0 %v628
    %1004 = vmatpush.bf16.msra.mxu0 %v625
    %1005 = vmatpush.bf16.msra.mxu0 %v622
    %1006 = vmatmul.bf16.gmra.mxu0 %v997
    %v1007 = vpop.f32.mrf.mxu0
    %v1008 = vadd.f32 0.0, %v1007
    %v1009 = vpop.f32.mrf.mxu0
    %1010 = vdwg.mxu0
    %1011 = vmatpush.bf16.msra.mxu0 %v644
    %1012 = vmatpush.bf16.msra.mxu0 %v641
    %1013 = vmatpush.bf16.msra.mxu0 %v638
    %1014 = vmatpush.bf16.msra.mxu0 %v635
    %1015 = vmatpush.bf16.msra.mxu0 %v632
    %1016 = vmatpush.bf16.msra.mxu0 %v629
    %1017 = vmatpush.bf16.msra.mxu0 %v626
    %1018 = vmatpush.bf16.msra.mxu0 %v623
    %1019 = vmatmul.bf16.gmra.mxu0 %v997
    %v1020 = vpop.f32.mrf.mxu0
    %v1021 = vadd.f32 0.0, %v1020
    %v1022 = vpop.f32.mrf.mxu0
    %1023 = vdwg.mxu0
    %1024 = vmatpush.bf16.msra.mxu0 %v645
    %1025 = vmatpush.bf16.msra.mxu0 %v642
    %1026 = vmatpush.bf16.msra.mxu0 %v639
    %1027 = vmatpush.bf16.msra.mxu0 %v636
    %1028 = vmatpush.bf16.msra.mxu0 %v633
    %1029 = vmatpush.bf16.msra.mxu0 %v630
    %1030 = vmatpush.bf16.msra.mxu0 %v627
    %1031 = vmatpush.bf16.msra.mxu0 %v624
    %1032 = vmatmul.bf16.gmra.mxu0 %v997
    %v1033 = vpop.f32.mrf.mxu0
    %v1034 = vadd.f32 0.0, %v1033
    %v1035 = vpop.f32.mrf.mxu0
    %1036 = vdwg.mxu0
    %v1037 = vadd.f32 %v986, %v1008
    %v1038 = vxor.u32 %v1037, 2147483648
    %v1039 = vmul.f32 %v1038, 1.442695
    %v1040 = vpow.pop %v1039
    %v1041 = vadd.f32 %v1040, 1.0
    %v1042 = vrcp.pop %v1041
    %v1043 = vmul.f32 %v1041, %v1042
    %v1044 = vsub.f32 1.0, %v1043
    %v1045 = vmul.f32 %v1042, %v1044
    %v1046 = vadd.f32 %v1042, %v1045
    %vm1047 = vweird.f32 %v1041
    %vm1048 = vweird.f32 %v1042
    %vm1049 = vmor %vm1047, %vm1048
    %v1050 = vsel %vm1049, %v1042, %v1046
    %v1051 = vand.u32 2147483647, %v1041
    %vm1052 = vcmp.eq.f32.partialorder %v1051, 8.507059e+37
    %v1053 = vand.u32 %v1041, 2147483648
    %v1054 = vor.u32 1.1754944e-38, %v1053
    %v1055 = vsel %vm1052, %v1054, %v1050
    %v1056 = vmul.f32 1.0, %v1055
    %v1057 = vadd.f32 %v987, %v1021
    %v1058 = vxor.u32 %v1057, 2147483648
    %v1059 = vmul.f32 %v1058, 1.442695
    %v1060 = vpow.pop %v1059
    %v1061 = vadd.f32 %v1060, 1.0
    %v1062 = vrcp.pop %v1061
    %v1063 = vmul.f32 %v1061, %v1062
    %v1064 = vsub.f32 1.0, %v1063
    %v1065 = vmul.f32 %v1062, %v1064
    %v1066 = vadd.f32 %v1062, %v1065
    %vm1067 = vweird.f32 %v1061
    %vm1068 = vweird.f32 %v1062
    %vm1069 = vmor %vm1067, %vm1068
    %v1070 = vsel %vm1069, %v1062, %v1066
    %v1071 = vand.u32 2147483647, %v1061
    %vm1072 = vcmp.eq.f32.partialorder %v1071, 8.507059e+37
    %v1073 = vand.u32 %v1061, 2147483648
    %v1074 = vor.u32 1.1754944e-38, %v1073
    %v1075 = vsel %vm1072, %v1074, %v1070
    %v1076 = vmul.f32 1.0, %v1075
    %v1077 = vadd.f32 %v1034, %v750
    %v1078 = vmul.f32 %v1056, %v1077
    %v1079 = vadd.f32 %v988, %v1078
    %v1080 = vtanh.pop %v1079
    %v1081 = vsub.f32 1.0, %v1076
    %v1082 = vmul.f32 %v1081, %v1080
    %v1083 = vmul.f32 %v1076, %v759
    %v1084 = vadd.f32 %v1082, %v1083
    %v1085 = vpack.c.bf16 %v977, %v977
    %1086 = vmatpush.bf16.msra.mxu0 %v861
    %1087 = vmatpush.bf16.msra.mxu0 %v858
    %1088 = vmatpush.bf16.msra.mxu0 %v855
    %1089 = vmatpush.bf16.msra.mxu0 %v852
    %1090 = vmatpush.bf16.msra.mxu0 %v849
    %1091 = vmatpush.bf16.msra.mxu0 %v846
    %1092 = vmatpush.bf16.msra.mxu0 %v843
    %1093 = vmatpush.bf16.msra.mxu0 %v840
    %1094 = vmatmul.bf16.gmra.mxu0 %v1085
    %v1095 = vpop.f32.mrf.mxu0
    %v1096 = vadd.f32 0.0, %v1095
    %v1097 = vpop.f32.mrf.mxu0
    %1098 = vdwg.mxu0
    %1099 = vmatpush.bf16.msra.mxu0 %v862
    %1100 = vmatpush.bf16.msra.mxu0 %v859
    %1101 = vmatpush.bf16.msra.mxu0 %v856
    %1102 = vmatpush.bf16.msra.mxu0 %v853
    %1103 = vmatpush.bf16.msra.mxu0 %v850
    %1104 = vmatpush.bf16.msra.mxu0 %v847
    %1105 = vmatpush.bf16.msra.mxu0 %v844
    %1106 = vmatpush.bf16.msra.mxu0 %v841
    %1107 = vmatmul.bf16.gmra.mxu0 %v1085
    %v1108 = vpop.f32.mrf.mxu0
    %v1109 = vadd.f32 0.0, %v1108
    %v1110 = vpop.f32.mrf.mxu0
    %1111 = vdwg.mxu0
    %1112 = vmatpush.bf16.msra.mxu0 %v863
    %1113 = vmatpush.bf16.msra.mxu0 %v860
    %1114 = vmatpush.bf16.msra.mxu0 %v857
    %1115 = vmatpush.bf16.msra.mxu0 %v854
    %1116 = vmatpush.bf16.msra.mxu0 %v851
    %1117 = vmatpush.bf16.msra.mxu0 %v848
    %1118 = vmatpush.bf16.msra.mxu0 %v845
    %1119 = vmatpush.bf16.msra.mxu0 %v842
    %1120 = vmatmul.bf16.gmra.mxu0 %v1085
    %v1121 = vpop.f32.mrf.mxu0
    %v1122 = vadd.f32 0.0, %v1121
    %v1123 = vpop.f32.mrf.mxu0
    %1124 = vdwg.mxu0
    %v1125 = vadd.f32 %v994, %v1096
    %v1126 = vxor.u32 %v1125, 2147483648
    %v1127 = vmul.f32 %v1126, 1.442695
    %v1128 = vpow.pop %v1127
    %v1129 = vadd.f32 %v1128, 1.0
    %v1130 = vrcp.pop %v1129
    %v1131 = vmul.f32 %v1129, %v1130
    %v1132 = vsub.f32 1.0, %v1131
    %v1133 = vmul.f32 %v1130, %v1132
    %v1134 = vadd.f32 %v1130, %v1133
    %vm1135 = vweird.f32 %v1129
    %vm1136 = vweird.f32 %v1130
    %vm1137 = vmor %vm1135, %vm1136
    %v1138 = vsel %vm1137, %v1130, %v1134
    %v1139 = vand.u32 2147483647, %v1129
    %vm1140 = vcmp.eq.f32.partialorder %v1139, 8.507059e+37
    %v1141 = vand.u32 %v1129, 2147483648
    %v1142 = vor.u32 1.1754944e-38, %v1141
    %v1143 = vsel %vm1140, %v1142, %v1138
    %v1144 = vmul.f32 1.0, %v1143
    %v1145 = vadd.f32 %v995, %v1109
    %v1146 = vxor.u32 %v1145, 2147483648
    %v1147 = vmul.f32 %v1146, 1.442695
    %v1148 = vpow.pop %v1147
    %v1149 = vadd.f32 %v1148, 1.0
    %v1150 = vrcp.pop %v1149
    %v1151 = vmul.f32 %v1149, %v1150
    %v1152 = vsub.f32 1.0, %v1151
    %v1153 = vmul.f32 %v1150, %v1152
    %v1154 = vadd.f32 %v1150, %v1153
    %vm1155 = vweird.f32 %v1149
    %vm1156 = vweird.f32 %v1150
    %vm1157 = vmor %vm1155, %vm1156
    %v1158 = vsel %vm1157, %v1150, %v1154
    %v1159 = vand.u32 2147483647, %v1149
    %vm1160 = vcmp.eq.f32.partialorder %v1159, 8.507059e+37
    %v1161 = vand.u32 %v1149, 2147483648
    %v1162 = vor.u32 1.1754944e-38, %v1161
    %v1163 = vsel %vm1160, %v1162, %v1158
    %v1164 = vmul.f32 1.0, %v1163
    %v1165 = vadd.f32 %v1122, %v968
    %v1166 = vmul.f32 %v1144, %v1165
    %v1167 = vadd.f32 %v996, %v1166
    %v1168 = vtanh.pop %v1167
    %v1169 = vsub.f32 1.0, %v1164
    %v1170 = vmul.f32 %v1169, %v1168
    %v1171 = vmul.f32 %v1164, %v977
    %v1172 = vadd.f32 %v1170, %v1171
    %s1173 = scalar_lea.vmem [#allocation13], 8
    %1174 = vst [vmem:[%s1173] sm:$0xff] %v1084
    %s1175 = scalar_lea.vmem [#allocation14], 48
    %1176 = vst [vmem:[%s1175] sm:$0xff] %v1172
    %s1177 = smul.u32 2, 3
    %s1178 = smul.addr %s1177, 4
    %s1179 = scalar_lea.vmem [#allocation2], %s1178
    %v1180 = vld [vmem:[%s1179] sm:$0xff]
    %v1181 = vld [vmem:[%s1179 + $0x8] sm:$0xf]
    %v1182 = vunpack.c.l.bf16 %v1180
    %v1183 = vunpack.c.h.bf16 %v1180
    %v1184 = vunpack.c.l.bf16 %v1181
    %s1185 = smul.u32 5, 3
    %s1186 = smul.addr %s1185, 4
    %s1187 = scalar_lea.vmem [#allocation3], %s1186
    %v1188 = vld [vmem:[%s1187] sm:$0xff]
    %v1189 = vld [vmem:[%s1187 + $0x8] sm:$0xf]
    %v1190 = vunpack.c.l.bf16 %v1188
    %v1191 = vunpack.c.h.bf16 %v1188
    %v1192 = vunpack.c.l.bf16 %v1189
    %v1193 = vpack.c.bf16 %v1084, %v1084
    %1194 = vmatpush.bf16.msra.mxu0 %v643
    %1195 = vmatpush.bf16.msra.mxu0 %v640
    %1196 = vmatpush.bf16.msra.mxu0 %v637
    %1197 = vmatpush.bf16.msra.mxu0 %v634
    %1198 = vmatpush.bf16.msra.mxu0 %v631
    %1199 = vmatpush.bf16.msra.mxu0 %v628
    %1200 = vmatpush.bf16.msra.mxu0 %v625
    %1201 = vmatpush.bf16.msra.mxu0 %v622
    %1202 = vmatmul.bf16.gmra.mxu0 %v1193
    %v1203 = vpop.f32.mrf.mxu0
    %v1204 = vadd.f32 0.0, %v1203
    %v1205 = vpop.f32.mrf.mxu0
    %1206 = vdwg.mxu0
    %1207 = vmatpush.bf16.msra.mxu0 %v644
    %1208 = vmatpush.bf16.msra.mxu0 %v641
    %1209 = vmatpush.bf16.msra.mxu0 %v638
    %1210 = vmatpush.bf16.msra.mxu0 %v635
    %1211 = vmatpush.bf16.msra.mxu0 %v632
    %1212 = vmatpush.bf16.msra.mxu0 %v629
    %1213 = vmatpush.bf16.msra.mxu0 %v626
    %1214 = vmatpush.bf16.msra.mxu0 %v623
    %1215 = vmatmul.bf16.gmra.mxu0 %v1193
    %v1216 = vpop.f32.mrf.mxu0
    %v1217 = vadd.f32 0.0, %v1216
    %v1218 = vpop.f32.mrf.mxu0
    %1219 = vdwg.mxu0
    %1220 = vmatpush.bf16.msra.mxu0 %v645
    %1221 = vmatpush.bf16.msra.mxu0 %v642
    %1222 = vmatpush.bf16.msra.mxu0 %v639
    %1223 = vmatpush.bf16.msra.mxu0 %v636
    %1224 = vmatpush.bf16.msra.mxu0 %v633
    %1225 = vmatpush.bf16.msra.mxu0 %v630
    %1226 = vmatpush.bf16.msra.mxu0 %v627
    %1227 = vmatpush.bf16.msra.mxu0 %v624
    %1228 = vmatmul.bf16.gmra.mxu0 %v1193
    %v1229 = vpop.f32.mrf.mxu0
    %v1230 = vadd.f32 0.0, %v1229
    %v1231 = vpop.f32.mrf.mxu0
    %1232 = vdwg.mxu0
    %v1233 = vadd.f32 %v1182, %v1204
    %v1234 = vxor.u32 %v1233, 2147483648
    %v1235 = vmul.f32 %v1234, 1.442695
    %v1236 = vpow.pop %v1235
    %v1237 = vadd.f32 %v1236, 1.0
    %v1238 = vrcp.pop %v1237
    %v1239 = vmul.f32 %v1237, %v1238
    %v1240 = vsub.f32 1.0, %v1239
    %v1241 = vmul.f32 %v1238, %v1240
    %v1242 = vadd.f32 %v1238, %v1241
    %vm1243 = vweird.f32 %v1237
    %vm1244 = vweird.f32 %v1238
    %vm1245 = vmor %vm1243, %vm1244
    %v1246 = vsel %vm1245, %v1238, %v1242
    %v1247 = vand.u32 2147483647, %v1237
    %vm1248 = vcmp.eq.f32.partialorder %v1247, 8.507059e+37
    %v1249 = vand.u32 %v1237, 2147483648
    %v1250 = vor.u32 1.1754944e-38, %v1249
    %v1251 = vsel %vm1248, %v1250, %v1246
    %v1252 = vmul.f32 1.0, %v1251
    %v1253 = vadd.f32 %v1183, %v1217
    %v1254 = vxor.u32 %v1253, 2147483648
    %v1255 = vmul.f32 %v1254, 1.442695
    %v1256 = vpow.pop %v1255
    %v1257 = vadd.f32 %v1256, 1.0
    %v1258 = vrcp.pop %v1257
    %v1259 = vmul.f32 %v1257, %v1258
    %v1260 = vsub.f32 1.0, %v1259
    %v1261 = vmul.f32 %v1258, %v1260
    %v1262 = vadd.f32 %v1258, %v1261
    %vm1263 = vweird.f32 %v1257
    %vm1264 = vweird.f32 %v1258
    %vm1265 = vmor %vm1263, %vm1264
    %v1266 = vsel %vm1265, %v1258, %v1262
    %v1267 = vand.u32 2147483647, %v1257
    %vm1268 = vcmp.eq.f32.partialorder %v1267, 8.507059e+37
    %v1269 = vand.u32 %v1257, 2147483648
    %v1270 = vor.u32 1.1754944e-38, %v1269
    %v1271 = vsel %vm1268, %v1270, %v1266
    %v1272 = vmul.f32 1.0, %v1271
    %v1273 = vadd.f32 %v1230, %v750
    %v1274 = vmul.f32 %v1252, %v1273
    %v1275 = vadd.f32 %v1184, %v1274
    %v1276 = vtanh.pop %v1275
    %v1277 = vsub.f32 1.0, %v1272
    %v1278 = vmul.f32 %v1277, %v1276
    %v1279 = vmul.f32 %v1272, %v1084
    %v1280 = vadd.f32 %v1278, %v1279
    %v1281 = vpack.c.bf16 %v1172, %v1172
    %1282 = vmatpush.bf16.msra.mxu0 %v861
    %1283 = vmatpush.bf16.msra.mxu0 %v858
    %1284 = vmatpush.bf16.msra.mxu0 %v855
    %1285 = vmatpush.bf16.msra.mxu0 %v852
    %1286 = vmatpush.bf16.msra.mxu0 %v849
    %1287 = vmatpush.bf16.msra.mxu0 %v846
    %1288 = vmatpush.bf16.msra.mxu0 %v843
    %1289 = vmatpush.bf16.msra.mxu0 %v840
    %1290 = vmatmul.bf16.gmra.mxu0 %v1281
    %v1291 = vpop.f32.mrf.mxu0
    %v1292 = vadd.f32 0.0, %v1291
    %v1293 = vpop.f32.mrf.mxu0
    %1294 = vdwg.mxu0
    %1295 = vmatpush.bf16.msra.mxu0 %v862
    %1296 = vmatpush.bf16.msra.mxu0 %v859
    %1297 = vmatpush.bf16.msra.mxu0 %v856
    %1298 = vmatpush.bf16.msra.mxu0 %v853
    %1299 = vmatpush.bf16.msra.mxu0 %v850
    %1300 = vmatpush.bf16.msra.mxu0 %v847
    %1301 = vmatpush.bf16.msra.mxu0 %v844
    %1302 = vmatpush.bf16.msra.mxu0 %v841
    %1303 = vmatmul.bf16.gmra.mxu0 %v1281
    %v1304 = vpop.f32.mrf.mxu0
    %v1305 = vadd.f32 0.0, %v1304
    %v1306 = vpop.f32.mrf.mxu0
    %1307 = vdwg.mxu0
    %1308 = vmatpush.bf16.msra.mxu0 %v863
    %1309 = vmatpush.bf16.msra.mxu0 %v860
    %1310 = vmatpush.bf16.msra.mxu0 %v857
    %1311 = vmatpush.bf16.msra.mxu0 %v854
    %1312 = vmatpush.bf16.msra.mxu0 %v851
    %1313 = vmatpush.bf16.msra.mxu0 %v848
    %1314 = vmatpush.bf16.msra.mxu0 %v845
    %1315 = vmatpush.bf16.msra.mxu0 %v842
    %1316 = vmatmul.bf16.gmra.mxu0 %v1281
    %v1317 = vpop.f32.mrf.mxu0
    %v1318 = vadd.f32 0.0, %v1317
    %v1319 = vpop.f32.mrf.mxu0
    %1320 = vdwg.mxu0
    %v1321 = vadd.f32 %v1190, %v1292
    %v1322 = vxor.u32 %v1321, 2147483648
    %v1323 = vmul.f32 %v1322, 1.442695
    %v1324 = vpow.pop %v1323
    %v1325 = vadd.f32 %v1324, 1.0
    %v1326 = vrcp.pop %v1325
    %v1327 = vmul.f32 %v1325, %v1326
    %v1328 = vsub.f32 1.0, %v1327
    %v1329 = vmul.f32 %v1326, %v1328
    %v1330 = vadd.f32 %v1326, %v1329
    %vm1331 = vweird.f32 %v1325
    %vm1332 = vweird.f32 %v1326
    %vm1333 = vmor %vm1331, %vm1332
    %v1334 = vsel %vm1333, %v1326, %v1330
    %v1335 = vand.u32 2147483647, %v1325
    %vm1336 = vcmp.eq.f32.partialorder %v1335, 8.507059e+37
    %v1337 = vand.u32 %v1325, 2147483648
    %v1338 = vor.u32 1.1754944e-38, %v1337
    %v1339 = vsel %vm1336, %v1338, %v1334
    %v1340 = vmul.f32 1.0, %v1339
    %v1341 = vadd.f32 %v1191, %v1305
    %v1342 = vxor.u32 %v1341, 2147483648
    %v1343 = vmul.f32 %v1342, 1.442695
    %v1344 = vpow.pop %v1343
    %v1345 = vadd.f32 %v1344, 1.0
    %v1346 = vrcp.pop %v1345
    %v1347 = vmul.f32 %v1345, %v1346
    %v1348 = vsub.f32 1.0, %v1347
    %v1349 = vmul.f32 %v1346, %v1348
    %v1350 = vadd.f32 %v1346, %v1349
    %vm1351 = vweird.f32 %v1345
    %vm1352 = vweird.f32 %v1346
    %vm1353 = vmor %vm1351, %vm1352
    %v1354 = vsel %vm1353, %v1346, %v1350
    %v1355 = vand.u32 2147483647, %v1345
    %vm1356 = vcmp.eq.f32.partialorder %v1355, 8.507059e+37
    %v1357 = vand.u32 %v1345, 2147483648
    %v1358 = vor.u32 1.1754944e-38, %v1357
    %v1359 = vsel %vm1356, %v1358, %v1354
    %v1360 = vmul.f32 1.0, %v1359
    %v1361 = vadd.f32 %v1318, %v968
    %v1362 = vmul.f32 %v1340, %v1361
    %v1363 = vadd.f32 %v1192, %v1362
    %v1364 = vtanh.pop %v1363
    %v1365 = vsub.f32 1.0, %v1360
    %v1366 = vmul.f32 %v1365, %v1364
    %v1367 = vmul.f32 %v1360, %v1172
    %v1368 = vadd.f32 %v1366, %v1367
    %s1369 = scalar_lea.vmem [#allocation13], 16
    %1370 = vst [vmem:[%s1369] sm:$0xff] %v1280
    %s1371 = scalar_lea.vmem [#allocation14], 40
    %1372 = vst [vmem:[%s1371] sm:$0xff] %v1368
    %s1373 = smul.u32 3, 3
    %s1374 = smul.addr %s1373, 4
    %s1375 = scalar_lea.vmem [#allocation2], %s1374
    %v1376 = vld [vmem:[%s1375] sm:$0xff]
    %v1377 = vld [vmem:[%s1375 + $0x8] sm:$0xf]
    %v1378 = vunpack.c.l.bf16 %v1376
    %v1379 = vunpack.c.h.bf16 %v1376
    %v1380 = vunpack.c.l.bf16 %v1377
    %s1381 = smul.u32 4, 3
    %s1382 = smul.addr %s1381, 4
    %s1383 = scalar_lea.vmem [#allocation3], %s1382
    %v1384 = vld [vmem:[%s1383] sm:$0xff]
    %v1385 = vld [vmem:[%s1383 + $0x8] sm:$0xf]
    %v1386 = vunpack.c.l.bf16 %v1384
    %v1387 = vunpack.c.h.bf16 %v1384
    %v1388 = vunpack.c.l.bf16 %v1385
    %v1389 = vpack.c.bf16 %v1280, %v1280
    %1390 = vmatpush.bf16.msra.mxu0 %v643
    %1391 = vmatpush.bf16.msra.mxu0 %v640
    %1392 = vmatpush.bf16.msra.mxu0 %v637
    %1393 = vmatpush.bf16.msra.mxu0 %v634
    %1394 = vmatpush.bf16.msra.mxu0 %v631
    %1395 = vmatpush.bf16.msra.mxu0 %v628
    %1396 = vmatpush.bf16.msra.mxu0 %v625
    %1397 = vmatpush.bf16.msra.mxu0 %v622
    %1398 = vmatmul.bf16.gmra.mxu0 %v1389
    %v1399 = vpop.f32.mrf.mxu0
    %v1400 = vadd.f32 0.0, %v1399
    %v1401 = vpop.f32.mrf.mxu0
    %1402 = vdwg.mxu0
    %1403 = vmatpush.bf16.msra.mxu0 %v644
    %1404 = vmatpush.bf16.msra.mxu0 %v641
    %1405 = vmatpush.bf16.msra.mxu0 %v638
    %1406 = vmatpush.bf16.msra.mxu0 %v635
    %1407 = vmatpush.bf16.msra.mxu0 %v632
    %1408 = vmatpush.bf16.msra.mxu0 %v629
    %1409 = vmatpush.bf16.msra.mxu0 %v626
    %1410 = vmatpush.bf16.msra.mxu0 %v623
    %1411 = vmatmul.bf16.gmra.mxu0 %v1389
    %v1412 = vpop.f32.mrf.mxu0
    %v1413 = vadd.f32 0.0, %v1412
    %v1414 = vpop.f32.mrf.mxu0
    %1415 = vdwg.mxu0
    %1416 = vmatpush.bf16.msra.mxu0 %v645
    %1417 = vmatpush.bf16.msra.mxu0 %v642
    %1418 = vmatpush.bf16.msra.mxu0 %v639
    %1419 = vmatpush.bf16.msra.mxu0 %v636
    %1420 = vmatpush.bf16.msra.mxu0 %v633
    %1421 = vmatpush.bf16.msra.mxu0 %v630
    %1422 = vmatpush.bf16.msra.mxu0 %v627
    %1423 = vmatpush.bf16.msra.mxu0 %v624
    %1424 = vmatmul.bf16.gmra.mxu0 %v1389
    %v1425 = vpop.f32.mrf.mxu0
    %v1426 = vadd.f32 0.0, %v1425
    %v1427 = vpop.f32.mrf.mxu0
    %1428 = vdwg.mxu0
    %v1429 = vadd.f32 %v1378, %v1400
    %v1430 = vxor.u32 %v1429, 2147483648
    %v1431 = vmul.f32 %v1430, 1.442695
    %v1432 = vpow.pop %v1431
    %v1433 = vadd.f32 %v1432, 1.0
    %v1434 = vrcp.pop %v1433
    %v1435 = vmul.f32 %v1433, %v1434
    %v1436 = vsub.f32 1.0, %v1435
    %v1437 = vmul.f32 %v1434, %v1436
    %v1438 = vadd.f32 %v1434, %v1437
    %vm1439 = vweird.f32 %v1433
    %vm1440 = vweird.f32 %v1434
    %vm1441 = vmor %vm1439, %vm1440
    %v1442 = vsel %vm1441, %v1434, %v1438
    %v1443 = vand.u32 2147483647, %v1433
    %vm1444 = vcmp.eq.f32.partialorder %v1443, 8.507059e+37
    %v1445 = vand.u32 %v1433, 2147483648
    %v1446 = vor.u32 1.1754944e-38, %v1445
    %v1447 = vsel %vm1444, %v1446, %v1442
    %v1448 = vmul.f32 1.0, %v1447
    %v1449 = vadd.f32 %v1379, %v1413
    %v1450 = vxor.u32 %v1449, 2147483648
    %v1451 = vmul.f32 %v1450, 1.442695
    %v1452 = vpow.pop %v1451
    %v1453 = vadd.f32 %v1452, 1.0
    %v1454 = vrcp.pop %v1453
    %v1455 = vmul.f32 %v1453, %v1454
    %v1456 = vsub.f32 1.0, %v1455
    %v1457 = vmul.f32 %v1454, %v1456
    %v1458 = vadd.f32 %v1454, %v1457
    %vm1459 = vweird.f32 %v1453
    %vm1460 = vweird.f32 %v1454
    %vm1461 = vmor %vm1459, %vm1460
    %v1462 = vsel %vm1461, %v1454, %v1458
    %v1463 = vand.u32 2147483647, %v1453
    %vm1464 = vcmp.eq.f32.partialorder %v1463, 8.507059e+37
    %v1465 = vand.u32 %v1453, 2147483648
    %v1466 = vor.u32 1.1754944e-38, %v1465
    %v1467 = vsel %vm1464, %v1466, %v1462
    %v1468 = vmul.f32 1.0, %v1467
    %v1469 = vadd.f32 %v1426, %v750
    %v1470 = vmul.f32 %v1448, %v1469
    %v1471 = vadd.f32 %v1380, %v1470
    %v1472 = vtanh.pop %v1471
    %v1473 = vsub.f32 1.0, %v1468
    %v1474 = vmul.f32 %v1473, %v1472
    %v1475 = vmul.f32 %v1468, %v1280
    %v1476 = vadd.f32 %v1474, %v1475
    %v1477 = vpack.c.bf16 %v1368, %v1368
    %1478 = vmatpush.bf16.msra.mxu0 %v861
    %1479 = vmatpush.bf16.msra.mxu0 %v858
    %1480 = vmatpush.bf16.msra.mxu0 %v855
    %1481 = vmatpush.bf16.msra.mxu0 %v852
    %1482 = vmatpush.bf16.msra.mxu0 %v849
    %1483 = vmatpush.bf16.msra.mxu0 %v846
    %1484 = vmatpush.bf16.msra.mxu0 %v843
    %1485 = vmatpush.bf16.msra.mxu0 %v840
    %1486 = vmatmul.bf16.gmra.mxu0 %v1477
    %v1487 = vpop.f32.mrf.mxu0
    %v1488 = vadd.f32 0.0, %v1487
    %v1489 = vpop.f32.mrf.mxu0
    %1490 = vdwg.mxu0
    %1491 = vmatpush.bf16.msra.mxu0 %v862
    %1492 = vmatpush.bf16.msra.mxu0 %v859
    %1493 = vmatpush.bf16.msra.mxu0 %v856
    %1494 = vmatpush.bf16.msra.mxu0 %v853
    %1495 = vmatpush.bf16.msra.mxu0 %v850
    %1496 = vmatpush.bf16.msra.mxu0 %v847
    %1497 = vmatpush.bf16.msra.mxu0 %v844
    %1498 = vmatpush.bf16.msra.mxu0 %v841
    %1499 = vmatmul.bf16.gmra.mxu0 %v1477
    %v1500 = vpop.f32.mrf.mxu0
    %v1501 = vadd.f32 0.0, %v1500
    %v1502 = vpop.f32.mrf.mxu0
    %1503 = vdwg.mxu0
    %1504 = vmatpush.bf16.msra.mxu0 %v863
    %1505 = vmatpush.bf16.msra.mxu0 %v860
    %1506 = vmatpush.bf16.msra.mxu0 %v857
    %1507 = vmatpush.bf16.msra.mxu0 %v854
    %1508 = vmatpush.bf16.msra.mxu0 %v851
    %1509 = vmatpush.bf16.msra.mxu0 %v848
    %1510 = vmatpush.bf16.msra.mxu0 %v845
    %1511 = vmatpush.bf16.msra.mxu0 %v842
    %1512 = vmatmul.bf16.gmra.mxu0 %v1477
    %v1513 = vpop.f32.mrf.mxu0
    %v1514 = vadd.f32 0.0, %v1513
    %v1515 = vpop.f32.mrf.mxu0
    %1516 = vdwg.mxu0
    %v1517 = vadd.f32 %v1386, %v1488
    %v1518 = vxor.u32 %v1517, 2147483648
    %v1519 = vmul.f32 %v1518, 1.442695
    %v1520 = vpow.pop %v1519
    %v1521 = vadd.f32 %v1520, 1.0
    %v1522 = vrcp.pop %v1521
    %v1523 = vmul.f32 %v1521, %v1522
    %v1524 = vsub.f32 1.0, %v1523
    %v1525 = vmul.f32 %v1522, %v1524
    %v1526 = vadd.f32 %v1522, %v1525
    %vm1527 = vweird.f32 %v1521
    %vm1528 = vweird.f32 %v1522
    %vm1529 = vmor %vm1527, %vm1528
    %v1530 = vsel %vm1529, %v1522, %v1526
    %v1531 = vand.u32 2147483647, %v1521
    %vm1532 = vcmp.eq.f32.partialorder %v1531, 8.507059e+37
    %v1533 = vand.u32 %v1521, 2147483648
    %v1534 = vor.u32 1.1754944e-38, %v1533
    %v1535 = vsel %vm1532, %v1534, %v1530
    %v1536 = vmul.f32 1.0, %v1535
    %v1537 = vadd.f32 %v1387, %v1501
    %v1538 = vxor.u32 %v1537, 2147483648
    %v1539 = vmul.f32 %v1538, 1.442695
    %v1540 = vpow.pop %v1539
    %v1541 = vadd.f32 %v1540, 1.0
    %v1542 = vrcp.pop %v1541
    %v1543 = vmul.f32 %v1541, %v1542
    %v1544 = vsub.f32 1.0, %v1543
    %v1545 = vmul.f32 %v1542, %v1544
    %v1546 = vadd.f32 %v1542, %v1545
    %vm1547 = vweird.f32 %v1541
    %vm1548 = vweird.f32 %v1542
    %vm1549 = vmor %vm1547, %vm1548
    %v1550 = vsel %vm1549, %v1542, %v1546
    %v1551 = vand.u32 2147483647, %v1541
    %vm1552 = vcmp.eq.f32.partialorder %v1551, 8.507059e+37
    %v1553 = vand.u32 %v1541, 2147483648
    %v1554 = vor.u32 1.1754944e-38, %v1553
    %v1555 = vsel %vm1552, %v1554, %v1550
    %v1556 = vmul.f32 1.0, %v1555
    %v1557 = vadd.f32 %v1514, %v968
    %v1558 = vmul.f32 %v1536, %v1557
    %v1559 = vadd.f32 %v1388, %v1558
    %v1560 = vtanh.pop %v1559
    %v1561 = vsub.f32 1.0, %v1556
    %v1562 = vmul.f32 %v1561, %v1560
    %v1563 = vmul.f32 %v1556, %v1368
    %v1564 = vadd.f32 %v1562, %v1563
    %s1565 = scalar_lea.vmem [#allocation13], 24
    %1566 = vst [vmem:[%s1565] sm:$0xff] %v1476
    %s1567 = scalar_lea.vmem [#allocation14], 32
    %1568 = vst [vmem:[%s1567] sm:$0xff] %v1564
    %s1569 = smul.addr %s1381, 4
    %s1570 = scalar_lea.vmem [#allocation2], %s1569
    %v1571 = vld [vmem:[%s1570] sm:$0xff]
    %v1572 = vld [vmem:[%s1570 + $0x8] sm:$0xf]
    %v1573 = vunpack.c.l.bf16 %v1571
    %v1574 = vunpack.c.h.bf16 %v1571
    %v1575 = vunpack.c.l.bf16 %v1572
    %s1576 = smul.addr %s1373, 4
    %s1577 = scalar_lea.vmem [#allocation3], %s1576
    %v1578 = vld [vmem:[%s1577] sm:$0xff]
    %v1579 = vld [vmem:[%s1577 + $0x8] sm:$0xf]
    %v1580 = vunpack.c.l.bf16 %v1578
    %v1581 = vunpack.c.h.bf16 %v1578
    %v1582 = vunpack.c.l.bf16 %v1579
    %v1583 = vpack.c.bf16 %v1476, %v1476
    %1584 = vmatpush.bf16.msra.mxu0 %v643
    %1585 = vmatpush.bf16.msra.mxu0 %v640
    %1586 = vmatpush.bf16.msra.mxu0 %v637
    %1587 = vmatpush.bf16.msra.mxu0 %v634
    %1588 = vmatpush.bf16.msra.mxu0 %v631
    %1589 = vmatpush.bf16.msra.mxu0 %v628
    %1590 = vmatpush.bf16.msra.mxu0 %v625
    %1591 = vmatpush.bf16.msra.mxu0 %v622
    %1592 = vmatmul.bf16.gmra.mxu0 %v1583
    %v1593 = vpop.f32.mrf.mxu0
    %v1594 = vadd.f32 0.0, %v1593
    %v1595 = vpop.f32.mrf.mxu0
    %1596 = vdwg.mxu0
    %1597 = vmatpush.bf16.msra.mxu0 %v644
    %1598 = vmatpush.bf16.msra.mxu0 %v641
    %1599 = vmatpush.bf16.msra.mxu0 %v638
    %1600 = vmatpush.bf16.msra.mxu0 %v635
    %1601 = vmatpush.bf16.msra.mxu0 %v632
    %1602 = vmatpush.bf16.msra.mxu0 %v629
    %1603 = vmatpush.bf16.msra.mxu0 %v626
    %1604 = vmatpush.bf16.msra.mxu0 %v623
    %1605 = vmatmul.bf16.gmra.mxu0 %v1583
    %v1606 = vpop.f32.mrf.mxu0
    %v1607 = vadd.f32 0.0, %v1606
    %v1608 = vpop.f32.mrf.mxu0
    %1609 = vdwg.mxu0
    %1610 = vmatpush.bf16.msra.mxu0 %v645
    %1611 = vmatpush.bf16.msra.mxu0 %v642
    %1612 = vmatpush.bf16.msra.mxu0 %v639
    %1613 = vmatpush.bf16.msra.mxu0 %v636
    %1614 = vmatpush.bf16.msra.mxu0 %v633
    %1615 = vmatpush.bf16.msra.mxu0 %v630
    %1616 = vmatpush.bf16.msra.mxu0 %v627
    %1617 = vmatpush.bf16.msra.mxu0 %v624
    %1618 = vmatmul.bf16.gmra.mxu0 %v1583
    %v1619 = vpop.f32.mrf.mxu0
    %v1620 = vadd.f32 0.0, %v1619
    %v1621 = vpop.f32.mrf.mxu0
    %1622 = vdwg.mxu0
    %v1623 = vadd.f32 %v1573, %v1594
    %v1624 = vxor.u32 %v1623, 2147483648
    %v1625 = vmul.f32 %v1624, 1.442695
    %v1626 = vpow.pop %v1625
    %v1627 = vadd.f32 %v1626, 1.0
    %v1628 = vrcp.pop %v1627
    %v1629 = vmul.f32 %v1627, %v1628
    %v1630 = vsub.f32 1.0, %v1629
    %v1631 = vmul.f32 %v1628, %v1630
    %v1632 = vadd.f32 %v1628, %v1631
    %vm1633 = vweird.f32 %v1627
    %vm1634 = vweird.f32 %v1628
    %vm1635 = vmor %vm1633, %vm1634
    %v1636 = vsel %vm1635, %v1628, %v1632
    %v1637 = vand.u32 2147483647, %v1627
    %vm1638 = vcmp.eq.f32.partialorder %v1637, 8.507059e+37
    %v1639 = vand.u32 %v1627, 2147483648
    %v1640 = vor.u32 1.1754944e-38, %v1639
    %v1641 = vsel %vm1638, %v1640, %v1636
    %v1642 = vmul.f32 1.0, %v1641
    %v1643 = vadd.f32 %v1574, %v1607
    %v1644 = vxor.u32 %v1643, 2147483648
    %v1645 = vmul.f32 %v1644, 1.442695
    %v1646 = vpow.pop %v1645
    %v1647 = vadd.f32 %v1646, 1.0
    %v1648 = vrcp.pop %v1647
    %v1649 = vmul.f32 %v1647, %v1648
    %v1650 = vsub.f32 1.0, %v1649
    %v1651 = vmul.f32 %v1648, %v1650
    %v1652 = vadd.f32 %v1648, %v1651
    %vm1653 = vweird.f32 %v1647
    %vm1654 = vweird.f32 %v1648
    %vm1655 = vmor %vm1653, %vm1654
    %v1656 = vsel %vm1655, %v1648, %v1652
    %v1657 = vand.u32 2147483647, %v1647
    %vm1658 = vcmp.eq.f32.partialorder %v1657, 8.507059e+37
    %v1659 = vand.u32 %v1647, 2147483648
    %v1660 = vor.u32 1.1754944e-38, %v1659
    %v1661 = vsel %vm1658, %v1660, %v1656
    %v1662 = vmul.f32 1.0, %v1661
    %v1663 = vadd.f32 %v1620, %v750
    %v1664 = vmul.f32 %v1642, %v1663
    %v1665 = vadd.f32 %v1575, %v1664
    %v1666 = vtanh.pop %v1665
    %v1667 = vsub.f32 1.0, %v1662
    %v1668 = vmul.f32 %v1667, %v1666
    %v1669 = vmul.f32 %v1662, %v1476
    %v1670 = vadd.f32 %v1668, %v1669
    %v1671 = vpack.c.bf16 %v1564, %v1564
    %1672 = vmatpush.bf16.msra.mxu0 %v861
    %1673 = vmatpush.bf16.msra.mxu0 %v858
    %1674 = vmatpush.bf16.msra.mxu0 %v855
    %1675 = vmatpush.bf16.msra.mxu0 %v852
    %1676 = vmatpush.bf16.msra.mxu0 %v849
    %1677 = vmatpush.bf16.msra.mxu0 %v846
    %1678 = vmatpush.bf16.msra.mxu0 %v843
    %1679 = vmatpush.bf16.msra.mxu0 %v840
    %1680 = vmatmul.bf16.gmra.mxu0 %v1671
    %v1681 = vpop.f32.mrf.mxu0
    %v1682 = vadd.f32 0.0, %v1681
    %v1683 = vpop.f32.mrf.mxu0
    %1684 = vdwg.mxu0
    %1685 = vmatpush.bf16.msra.mxu0 %v862
    %1686 = vmatpush.bf16.msra.mxu0 %v859
    %1687 = vmatpush.bf16.msra.mxu0 %v856
    %1688 = vmatpush.bf16.msra.mxu0 %v853
    %1689 = vmatpush.bf16.msra.mxu0 %v850
    %1690 = vmatpush.bf16.msra.mxu0 %v847
    %1691 = vmatpush.bf16.msra.mxu0 %v844
    %1692 = vmatpush.bf16.msra.mxu0 %v841
    %1693 = vmatmul.bf16.gmra.mxu0 %v1671
    %v1694 = vpop.f32.mrf.mxu0
    %v1695 = vadd.f32 0.0, %v1694
    %v1696 = vpop.f32.mrf.mxu0
    %1697 = vdwg.mxu0
    %1698 = vmatpush.bf16.msra.mxu0 %v863
    %1699 = vmatpush.bf16.msra.mxu0 %v860
    %1700 = vmatpush.bf16.msra.mxu0 %v857
    %1701 = vmatpush.bf16.msra.mxu0 %v854
    %1702 = vmatpush.bf16.msra.mxu0 %v851
    %1703 = vmatpush.bf16.msra.mxu0 %v848
    %1704 = vmatpush.bf16.msra.mxu0 %v845
    %1705 = vmatpush.bf16.msra.mxu0 %v842
    %1706 = vmatmul.bf16.gmra.mxu0 %v1671
    %v1707 = vpop.f32.mrf.mxu0
    %v1708 = vadd.f32 0.0, %v1707
    %v1709 = vpop.f32.mrf.mxu0
    %1710 = vdwg.mxu0
    %v1711 = vadd.f32 %v1580, %v1682
    %v1712 = vxor.u32 %v1711, 2147483648
    %v1713 = vmul.f32 %v1712, 1.442695
    %v1714 = vpow.pop %v1713
    %v1715 = vadd.f32 %v1714, 1.0
    %v1716 = vrcp.pop %v1715
    %v1717 = vmul.f32 %v1715, %v1716
    %v1718 = vsub.f32 1.0, %v1717
    %v1719 = vmul.f32 %v1716, %v1718
    %v1720 = vadd.f32 %v1716, %v1719
    %vm1721 = vweird.f32 %v1715
    %vm1722 = vweird.f32 %v1716
    %vm1723 = vmor %vm1721, %vm1722
    %v1724 = vsel %vm1723, %v1716, %v1720
    %v1725 = vand.u32 2147483647, %v1715
    %vm1726 = vcmp.eq.f32.partialorder %v1725, 8.507059e+37
    %v1727 = vand.u32 %v1715, 2147483648
    %v1728 = vor.u32 1.1754944e-38, %v1727
    %v1729 = vsel %vm1726, %v1728, %v1724
    %v1730 = vmul.f32 1.0, %v1729
    %v1731 = vadd.f32 %v1581, %v1695
    %v1732 = vxor.u32 %v1731, 2147483648
    %v1733 = vmul.f32 %v1732, 1.442695
    %v1734 = vpow.pop %v1733
    %v1735 = vadd.f32 %v1734, 1.0
    %v1736 = vrcp.pop %v1735
    %v1737 = vmul.f32 %v1735, %v1736
    %v1738 = vsub.f32 1.0, %v1737
    %v1739 = vmul.f32 %v1736, %v1738
    %v1740 = vadd.f32 %v1736, %v1739
    %vm1741 = vweird.f32 %v1735
    %vm1742 = vweird.f32 %v1736
    %vm1743 = vmor %vm1741, %vm1742
    %v1744 = vsel %vm1743, %v1736, %v1740
    %v1745 = vand.u32 2147483647, %v1735
    %vm1746 = vcmp.eq.f32.partialorder %v1745, 8.507059e+37
    %v1747 = vand.u32 %v1735, 2147483648
    %v1748 = vor.u32 1.1754944e-38, %v1747
    %v1749 = vsel %vm1746, %v1748, %v1744
    %v1750 = vmul.f32 1.0, %v1749
    %v1751 = vadd.f32 %v1708, %v968
    %v1752 = vmul.f32 %v1730, %v1751
    %v1753 = vadd.f32 %v1582, %v1752
    %v1754 = vtanh.pop %v1753
    %v1755 = vsub.f32 1.0, %v1750
    %v1756 = vmul.f32 %v1755, %v1754
    %v1757 = vmul.f32 %v1750, %v1564
    %v1758 = vadd.f32 %v1756, %v1757
    %s1759 = scalar_lea.vmem [#allocation13], 32
    %1760 = vst [vmem:[%s1759] sm:$0xff] %v1670
    %s1761 = scalar_lea.vmem [#allocation14], 24
    %1762 = vst [vmem:[%s1761] sm:$0xff] %v1758
    %s1763 = smul.addr %s1185, 4
    %s1764 = scalar_lea.vmem [#allocation2], %s1763
    %v1765 = vld [vmem:[%s1764] sm:$0xff]
    %v1766 = vld [vmem:[%s1764 + $0x8] sm:$0xf]
    %v1767 = vunpack.c.l.bf16 %v1765
    %v1768 = vunpack.c.h.bf16 %v1765
    %v1769 = vunpack.c.l.bf16 %v1766
    %s1770 = smul.addr %s1177, 4
    %s1771 = scalar_lea.vmem [#allocation3], %s1770
    %v1772 = vld [vmem:[%s1771] sm:$0xff]
    %v1773 = vld [vmem:[%s1771 + $0x8] sm:$0xf]
    %v1774 = vunpack.c.l.bf16 %v1772
    %v1775 = vunpack.c.h.bf16 %v1772
    %v1776 = vunpack.c.l.bf16 %v1773
    %v1777 = vpack.c.bf16 %v1670, %v1670
    %1778 = vmatpush.bf16.msra.mxu0 %v643
    %1779 = vmatpush.bf16.msra.mxu0 %v640
    %1780 = vmatpush.bf16.msra.mxu0 %v637
    %1781 = vmatpush.bf16.msra.mxu0 %v634
    %1782 = vmatpush.bf16.msra.mxu0 %v631
    %1783 = vmatpush.bf16.msra.mxu0 %v628
    %1784 = vmatpush.bf16.msra.mxu0 %v625
    %1785 = vmatpush.bf16.msra.mxu0 %v622
    %1786 = vmatmul.bf16.gmra.mxu0 %v1777
    %v1787 = vpop.f32.mrf.mxu0
    %v1788 = vadd.f32 0.0, %v1787
    %v1789 = vpop.f32.mrf.mxu0
    %1790 = vdwg.mxu0
    %1791 = vmatpush.bf16.msra.mxu0 %v644
    %1792 = vmatpush.bf16.msra.mxu0 %v641
    %1793 = vmatpush.bf16.msra.mxu0 %v638
    %1794 = vmatpush.bf16.msra.mxu0 %v635
    %1795 = vmatpush.bf16.msra.mxu0 %v632
    %1796 = vmatpush.bf16.msra.mxu0 %v629
    %1797 = vmatpush.bf16.msra.mxu0 %v626
    %1798 = vmatpush.bf16.msra.mxu0 %v623
    %1799 = vmatmul.bf16.gmra.mxu0 %v1777
    %v1800 = vpop.f32.mrf.mxu0
    %v1801 = vadd.f32 0.0, %v1800
    %v1802 = vpop.f32.mrf.mxu0
    %1803 = vdwg.mxu0
    %1804 = vmatpush.bf16.msra.mxu0 %v645
    %1805 = vmatpush.bf16.msra.mxu0 %v642
    %1806 = vmatpush.bf16.msra.mxu0 %v639
    %1807 = vmatpush.bf16.msra.mxu0 %v636
    %1808 = vmatpush.bf16.msra.mxu0 %v633
    %1809 = vmatpush.bf16.msra.mxu0 %v630
    %1810 = vmatpush.bf16.msra.mxu0 %v627
    %1811 = vmatpush.bf16.msra.mxu0 %v624
    %1812 = vmatmul.bf16.gmra.mxu0 %v1777
    %v1813 = vpop.f32.mrf.mxu0
    %v1814 = vadd.f32 0.0, %v1813
    %v1815 = vpop.f32.mrf.mxu0
    %1816 = vdwg.mxu0
    %v1817 = vadd.f32 %v1767, %v1788
    %v1818 = vxor.u32 %v1817, 2147483648
    %v1819 = vmul.f32 %v1818, 1.442695
    %v1820 = vpow.pop %v1819
    %v1821 = vadd.f32 %v1820, 1.0
    %v1822 = vrcp.pop %v1821
    %v1823 = vmul.f32 %v1821, %v1822
    %v1824 = vsub.f32 1.0, %v1823
    %v1825 = vmul.f32 %v1822, %v1824
    %v1826 = vadd.f32 %v1822, %v1825
    %vm1827 = vweird.f32 %v1821
    %vm1828 = vweird.f32 %v1822
    %vm1829 = vmor %vm1827, %vm1828
    %v1830 = vsel %vm1829, %v1822, %v1826
    %v1831 = vand.u32 2147483647, %v1821
    %vm1832 = vcmp.eq.f32.partialorder %v1831, 8.507059e+37
    %v1833 = vand.u32 %v1821, 2147483648
    %v1834 = vor.u32 1.1754944e-38, %v1833
    %v1835 = vsel %vm1832, %v1834, %v1830
    %v1836 = vmul.f32 1.0, %v1835
    %v1837 = vadd.f32 %v1768, %v1801
    %v1838 = vxor.u32 %v1837, 2147483648
    %v1839 = vmul.f32 %v1838, 1.442695
    %v1840 = vpow.pop %v1839
    %v1841 = vadd.f32 %v1840, 1.0
    %v1842 = vrcp.pop %v1841
    %v1843 = vmul.f32 %v1841, %v1842
    %v1844 = vsub.f32 1.0, %v1843
    %v1845 = vmul.f32 %v1842, %v1844
    %v1846 = vadd.f32 %v1842, %v1845
    %vm1847 = vweird.f32 %v1841
    %vm1848 = vweird.f32 %v1842
    %vm1849 = vmor %vm1847, %vm1848
    %v1850 = vsel %vm1849, %v1842, %v1846
    %v1851 = vand.u32 2147483647, %v1841
    %vm1852 = vcmp.eq.f32.partialorder %v1851, 8.507059e+37
    %v1853 = vand.u32 %v1841, 2147483648
    %v1854 = vor.u32 1.1754944e-38, %v1853
    %v1855 = vsel %vm1852, %v1854, %v1850
    %v1856 = vmul.f32 1.0, %v1855
    %v1857 = vadd.f32 %v1814, %v750
    %v1858 = vmul.f32 %v1836, %v1857
    %v1859 = vadd.f32 %v1769, %v1858
    %v1860 = vtanh.pop %v1859
    %v1861 = vsub.f32 1.0, %v1856
    %v1862 = vmul.f32 %v1861, %v1860
    %v1863 = vmul.f32 %v1856, %v1670
    %v1864 = vadd.f32 %v1862, %v1863
    %v1865 = vpack.c.bf16 %v1758, %v1758
    %1866 = vmatpush.bf16.msra.mxu0 %v861
    %1867 = vmatpush.bf16.msra.mxu0 %v858
    %1868 = vmatpush.bf16.msra.mxu0 %v855
    %1869 = vmatpush.bf16.msra.mxu0 %v852
    %1870 = vmatpush.bf16.msra.mxu0 %v849
    %1871 = vmatpush.bf16.msra.mxu0 %v846
    %1872 = vmatpush.bf16.msra.mxu0 %v843
    %1873 = vmatpush.bf16.msra.mxu0 %v840
    %1874 = vmatmul.bf16.gmra.mxu0 %v1865
    %v1875 = vpop.f32.mrf.mxu0
    %v1876 = vadd.f32 0.0, %v1875
    %v1877 = vpop.f32.mrf.mxu0
    %1878 = vdwg.mxu0
    %1879 = vmatpush.bf16.msra.mxu0 %v862
    %1880 = vmatpush.bf16.msra.mxu0 %v859
    %1881 = vmatpush.bf16.msra.mxu0 %v856
    %1882 = vmatpush.bf16.msra.mxu0 %v853
    %1883 = vmatpush.bf16.msra.mxu0 %v850
    %1884 = vmatpush.bf16.msra.mxu0 %v847
    %1885 = vmatpush.bf16.msra.mxu0 %v844
    %1886 = vmatpush.bf16.msra.mxu0 %v841
    %1887 = vmatmul.bf16.gmra.mxu0 %v1865
    %v1888 = vpop.f32.mrf.mxu0
    %v1889 = vadd.f32 0.0, %v1888
    %v1890 = vpop.f32.mrf.mxu0
    %1891 = vdwg.mxu0
    %1892 = vmatpush.bf16.msra.mxu0 %v863
    %1893 = vmatpush.bf16.msra.mxu0 %v860
    %1894 = vmatpush.bf16.msra.mxu0 %v857
    %1895 = vmatpush.bf16.msra.mxu0 %v854
    %1896 = vmatpush.bf16.msra.mxu0 %v851
    %1897 = vmatpush.bf16.msra.mxu0 %v848
    %1898 = vmatpush.bf16.msra.mxu0 %v845
    %1899 = vmatpush.bf16.msra.mxu0 %v842
    %1900 = vmatmul.bf16.gmra.mxu0 %v1865
    %v1901 = vpop.f32.mrf.mxu0
    %v1902 = vadd.f32 0.0, %v1901
    %v1903 = vpop.f32.mrf.mxu0
    %1904 = vdwg.mxu0
    %v1905 = vadd.f32 %v1774, %v1876
    %v1906 = vxor.u32 %v1905, 2147483648
    %v1907 = vmul.f32 %v1906, 1.442695
    %v1908 = vpow.pop %v1907
    %v1909 = vadd.f32 %v1908, 1.0
    %v1910 = vrcp.pop %v1909
    %v1911 = vmul.f32 %v1909, %v1910
    %v1912 = vsub.f32 1.0, %v1911
    %v1913 = vmul.f32 %v1910, %v1912
    %v1914 = vadd.f32 %v1910, %v1913
    %vm1915 = vweird.f32 %v1909
    %vm1916 = vweird.f32 %v1910
    %vm1917 = vmor %vm1915, %vm1916
    %v1918 = vsel %vm1917, %v1910, %v1914
    %v1919 = vand.u32 2147483647, %v1909
    %vm1920 = vcmp.eq.f32.partialorder %v1919, 8.507059e+37
    %v1921 = vand.u32 %v1909, 2147483648
    %v1922 = vor.u32 1.1754944e-38, %v1921
    %v1923 = vsel %vm1920, %v1922, %v1918
    %v1924 = vmul.f32 1.0, %v1923
    %v1925 = vadd.f32 %v1775, %v1889
    %v1926 = vxor.u32 %v1925, 2147483648
    %v1927 = vmul.f32 %v1926, 1.442695
    %v1928 = vpow.pop %v1927
    %v1929 = vadd.f32 %v1928, 1.0
    %v1930 = vrcp.pop %v1929
    %v1931 = vmul.f32 %v1929, %v1930
    %v1932 = vsub.f32 1.0, %v1931
    %v1933 = vmul.f32 %v1930, %v1932
    %v1934 = vadd.f32 %v1930, %v1933
    %vm1935 = vweird.f32 %v1929
    %vm1936 = vweird.f32 %v1930
    %vm1937 = vmor %vm1935, %vm1936
    %v1938 = vsel %vm1937, %v1930, %v1934
    %v1939 = vand.u32 2147483647, %v1929
    %vm1940 = vcmp.eq.f32.partialorder %v1939, 8.507059e+37
    %v1941 = vand.u32 %v1929, 2147483648
    %v1942 = vor.u32 1.1754944e-38, %v1941
    %v1943 = vsel %vm1940, %v1942, %v1938
    %v1944 = vmul.f32 1.0, %v1943
    %v1945 = vadd.f32 %v1902, %v968
    %v1946 = vmul.f32 %v1924, %v1945
    %v1947 = vadd.f32 %v1776, %v1946
    %v1948 = vtanh.pop %v1947
    %v1949 = vsub.f32 1.0, %v1944
    %v1950 = vmul.f32 %v1949, %v1948
    %v1951 = vmul.f32 %v1944, %v1758
    %v1952 = vadd.f32 %v1950, %v1951
    %s1953 = scalar_lea.vmem [#allocation13], 40
    %1954 = vst [vmem:[%s1953] sm:$0xff] %v1864
    %s1955 = scalar_lea.vmem [#allocation14], 16
    %1956 = vst [vmem:[%s1955] sm:$0xff] %v1952
    %s1957 = smul.addr %s989, 4
    %s1958 = scalar_lea.vmem [#allocation2], %s1957
    %v1959 = vld [vmem:[%s1958] sm:$0xff]
    %v1960 = vld [vmem:[%s1958 + $0x8] sm:$0xf]
    %v1961 = vunpack.c.l.bf16 %v1959
    %v1962 = vunpack.c.h.bf16 %v1959
    %v1963 = vunpack.c.l.bf16 %v1960
    %s1964 = smul.addr %s981, 4
    %s1965 = scalar_lea.vmem [#allocation3], %s1964
    %v1966 = vld [vmem:[%s1965] sm:$0xff]
    %v1967 = vld [vmem:[%s1965 + $0x8] sm:$0xf]
    %v1968 = vunpack.c.l.bf16 %v1966
    %v1969 = vunpack.c.h.bf16 %v1966
    %v1970 = vunpack.c.l.bf16 %v1967
    %v1971 = vpack.c.bf16 %v1864, %v1864
    %1972 = vmatpush.bf16.msra.mxu0 %v643
    %1973 = vmatpush.bf16.msra.mxu0 %v640
    %1974 = vmatpush.bf16.msra.mxu0 %v637
    %1975 = vmatpush.bf16.msra.mxu0 %v634
    %1976 = vmatpush.bf16.msra.mxu0 %v631
    %1977 = vmatpush.bf16.msra.mxu0 %v628
    %1978 = vmatpush.bf16.msra.mxu0 %v625
    %1979 = vmatpush.bf16.msra.mxu0 %v622
    %1980 = vmatmul.bf16.gmra.mxu0 %v1971
    %v1981 = vpop.f32.mrf.mxu0
    %v1982 = vadd.f32 0.0, %v1981
    %v1983 = vpop.f32.mrf.mxu0
    %1984 = vdwg.mxu0
    %1985 = vmatpush.bf16.msra.mxu0 %v644
    %1986 = vmatpush.bf16.msra.mxu0 %v641
    %1987 = vmatpush.bf16.msra.mxu0 %v638
    %1988 = vmatpush.bf16.msra.mxu0 %v635
    %1989 = vmatpush.bf16.msra.mxu0 %v632
    %1990 = vmatpush.bf16.msra.mxu0 %v629
    %1991 = vmatpush.bf16.msra.mxu0 %v626
    %1992 = vmatpush.bf16.msra.mxu0 %v623
    %1993 = vmatmul.bf16.gmra.mxu0 %v1971
    %v1994 = vpop.f32.mrf.mxu0
    %v1995 = vadd.f32 0.0, %v1994
    %v1996 = vpop.f32.mrf.mxu0
    %1997 = vdwg.mxu0
    %1998 = vmatpush.bf16.msra.mxu0 %v645
    %1999 = vmatpush.bf16.msra.mxu0 %v642
    %2000 = vmatpush.bf16.msra.mxu0 %v639
    %2001 = vmatpush.bf16.msra.mxu0 %v636
    %2002 = vmatpush.bf16.msra.mxu0 %v633
    %2003 = vmatpush.bf16.msra.mxu0 %v630
    %2004 = vmatpush.bf16.msra.mxu0 %v627
    %2005 = vmatpush.bf16.msra.mxu0 %v624
    %2006 = vmatmul.bf16.gmra.mxu0 %v1971
    %v2007 = vpop.f32.mrf.mxu0
    %v2008 = vadd.f32 0.0, %v2007
    %v2009 = vpop.f32.mrf.mxu0
    %2010 = vdwg.mxu0
    %v2011 = vadd.f32 %v1961, %v1982
    %v2012 = vxor.u32 %v2011, 2147483648
    %v2013 = vmul.f32 %v2012, 1.442695
    %v2014 = vpow.pop %v2013
    %v2015 = vadd.f32 %v2014, 1.0
    %v2016 = vrcp.pop %v2015
    %v2017 = vmul.f32 %v2015, %v2016
    %v2018 = vsub.f32 1.0, %v2017
    %v2019 = vmul.f32 %v2016, %v2018
    %v2020 = vadd.f32 %v2016, %v2019
    %vm2021 = vweird.f32 %v2015
    %vm2022 = vweird.f32 %v2016
    %vm2023 = vmor %vm2021, %vm2022
    %v2024 = vsel %vm2023, %v2016, %v2020
    %v2025 = vand.u32 2147483647, %v2015
    %vm2026 = vcmp.eq.f32.partialorder %v2025, 8.507059e+37
    %v2027 = vand.u32 %v2015, 2147483648
    %v2028 = vor.u32 1.1754944e-38, %v2027
    %v2029 = vsel %vm2026, %v2028, %v2024
    %v2030 = vmul.f32 1.0, %v2029
    %v2031 = vadd.f32 %v1962, %v1995
    %v2032 = vxor.u32 %v2031, 2147483648
    %v2033 = vmul.f32 %v2032, 1.442695
    %v2034 = vpow.pop %v2033
    %v2035 = vadd.f32 %v2034, 1.0
    %v2036 = vrcp.pop %v2035
    %v2037 = vmul.f32 %v2035, %v2036
    %v2038 = vsub.f32 1.0, %v2037
    %v2039 = vmul.f32 %v2036, %v2038
    %v2040 = vadd.f32 %v2036, %v2039
    %vm2041 = vweird.f32 %v2035
    %vm2042 = vweird.f32 %v2036
    %vm2043 = vmor %vm2041, %vm2042
    %v2044 = vsel %vm2043, %v2036, %v2040
    %v2045 = vand.u32 2147483647, %v2035
    %vm2046 = vcmp.eq.f32.partialorder %v2045, 8.507059e+37
    %v2047 = vand.u32 %v2035, 2147483648
    %v2048 = vor.u32 1.1754944e-38, %v2047
    %v2049 = vsel %vm2046, %v2048, %v2044
    %v2050 = vmul.f32 1.0, %v2049
    %v2051 = vadd.f32 %v2008, %v750
    %v2052 = vmul.f32 %v2030, %v2051
    %v2053 = vadd.f32 %v1963, %v2052
    %v2054 = vtanh.pop %v2053
    %v2055 = vsub.f32 1.0, %v2050
    %v2056 = vmul.f32 %v2055, %v2054
    %v2057 = vmul.f32 %v2050, %v1864
    %v2058 = vadd.f32 %v2056, %v2057
    %v2059 = vpack.c.bf16 %v1952, %v1952
    %2060 = vmatpush.bf16.msra.mxu0 %v861
    %2061 = vmatpush.bf16.msra.mxu0 %v858
    %2062 = vmatpush.bf16.msra.mxu0 %v855
    %2063 = vmatpush.bf16.msra.mxu0 %v852
    %2064 = vmatpush.bf16.msra.mxu0 %v849
    %2065 = vmatpush.bf16.msra.mxu0 %v846
    %2066 = vmatpush.bf16.msra.mxu0 %v843
    %2067 = vmatpush.bf16.msra.mxu0 %v840
    %2068 = vmatmul.bf16.gmra.mxu0 %v2059
    %v2069 = vpop.f32.mrf.mxu0
    %v2070 = vadd.f32 0.0, %v2069
    %v2071 = vpop.f32.mrf.mxu0
    %2072 = vdwg.mxu0
    %2073 = vmatpush.bf16.msra.mxu0 %v862
    %2074 = vmatpush.bf16.msra.mxu0 %v859
    %2075 = vmatpush.bf16.msra.mxu0 %v856
    %2076 = vmatpush.bf16.msra.mxu0 %v853
    %2077 = vmatpush.bf16.msra.mxu0 %v850
    %2078 = vmatpush.bf16.msra.mxu0 %v847
    %2079 = vmatpush.bf16.msra.mxu0 %v844
    %2080 = vmatpush.bf16.msra.mxu0 %v841
    %2081 = vmatmul.bf16.gmra.mxu0 %v2059
    %v2082 = vpop.f32.mrf.mxu0
    %v2083 = vadd.f32 0.0, %v2082
    %v2084 = vpop.f32.mrf.mxu0
    %2085 = vdwg.mxu0
    %2086 = vmatpush.bf16.msra.mxu0 %v863
    %2087 = vmatpush.bf16.msra.mxu0 %v860
    %2088 = vmatpush.bf16.msra.mxu0 %v857
    %2089 = vmatpush.bf16.msra.mxu0 %v854
    %2090 = vmatpush.bf16.msra.mxu0 %v851
    %2091 = vmatpush.bf16.msra.mxu0 %v848
    %2092 = vmatpush.bf16.msra.mxu0 %v845
    %2093 = vmatpush.bf16.msra.mxu0 %v842
    %2094 = vmatmul.bf16.gmra.mxu0 %v2059
    %v2095 = vpop.f32.mrf.mxu0
    %v2096 = vadd.f32 0.0, %v2095
    %v2097 = vpop.f32.mrf.mxu0
    %2098 = vdwg.mxu0
    %v2099 = vadd.f32 %v1968, %v2070
    %v2100 = vxor.u32 %v2099, 2147483648
    %v2101 = vmul.f32 %v2100, 1.442695
    %v2102 = vpow.pop %v2101
    %v2103 = vadd.f32 %v2102, 1.0
    %v2104 = vrcp.pop %v2103
    %v2105 = vmul.f32 %v2103, %v2104
    %v2106 = vsub.f32 1.0, %v2105
    %v2107 = vmul.f32 %v2104, %v2106
    %v2108 = vadd.f32 %v2104, %v2107
    %vm2109 = vweird.f32 %v2103
    %vm2110 = vweird.f32 %v2104
    %vm2111 = vmor %vm2109, %vm2110
    %v2112 = vsel %vm2111, %v2104, %v2108
    %v2113 = vand.u32 2147483647, %v2103
    %vm2114 = vcmp.eq.f32.partialorder %v2113, 8.507059e+37
    %v2115 = vand.u32 %v2103, 2147483648
    %v2116 = vor.u32 1.1754944e-38, %v2115
    %v2117 = vsel %vm2114, %v2116, %v2112
    %v2118 = vmul.f32 1.0, %v2117
    %v2119 = vadd.f32 %v1969, %v2083
    %v2120 = vxor.u32 %v2119, 2147483648
    %v2121 = vmul.f32 %v2120, 1.442695
    %v2122 = vpow.pop %v2121
    %v2123 = vadd.f32 %v2122, 1.0
    %v2124 = vrcp.pop %v2123
    %v2125 = vmul.f32 %v2123, %v2124
    %v2126 = vsub.f32 1.0, %v2125
    %v2127 = vmul.f32 %v2124, %v2126
    %v2128 = vadd.f32 %v2124, %v2127
    %vm2129 = vweird.f32 %v2123
    %vm2130 = vweird.f32 %v2124
    %vm2131 = vmor %vm2129, %vm2130
    %v2132 = vsel %vm2131, %v2124, %v2128
    %v2133 = vand.u32 2147483647, %v2123
    %vm2134 = vcmp.eq.f32.partialorder %v2133, 8.507059e+37
    %v2135 = vand.u32 %v2123, 2147483648
    %v2136 = vor.u32 1.1754944e-38, %v2135
    %v2137 = vsel %vm2134, %v2136, %v2132
    %v2138 = vmul.f32 1.0, %v2137
    %v2139 = vadd.f32 %v2096, %v968
    %v2140 = vmul.f32 %v2118, %v2139
    %v2141 = vadd.f32 %v1970, %v2140
    %v2142 = vtanh.pop %v2141
    %v2143 = vsub.f32 1.0, %v2138
    %v2144 = vmul.f32 %v2143, %v2142
    %v2145 = vmul.f32 %v2138, %v1952
    %v2146 = vadd.f32 %v2144, %v2145
    %s2147 = scalar_lea.vmem [#allocation13], 48
    %2148 = vst [vmem:[%s2147] sm:$0xff] %v2058
    %s2149 = scalar_lea.vmem [#allocation14], 8
    %2150 = vst [vmem:[%s2149] sm:$0xff] %v2146
    %s2151 = smul.addr %s534, 4
    %s2152 = scalar_lea.vmem [#allocation2], %s2151
    %v2153 = vld [vmem:[%s2152] sm:$0xff]
    %v2154 = vld [vmem:[%s2152 + $0x8] sm:$0xf]
    %v2155 = vunpack.c.l.bf16 %v2153
    %v2156 = vunpack.c.h.bf16 %v2153
    %v2157 = vunpack.c.l.bf16 %v2154
    %s2158 = smul.addr %s526, 4
    %s2159 = scalar_lea.vmem [#allocation3], %s2158
    %v2160 = vld [vmem:[%s2159] sm:$0xff]
    %v2161 = vld [vmem:[%s2159 + $0x8] sm:$0xf]
    %v2162 = vunpack.c.l.bf16 %v2160
    %v2163 = vunpack.c.h.bf16 %v2160
    %v2164 = vunpack.c.l.bf16 %v2161
    %v2165 = vpack.c.bf16 %v2058, %v2058
    %2166 = vmatpush.bf16.msra.mxu0 %v643
    %2167 = vmatpush.bf16.msra.mxu0 %v640
    %2168 = vmatpush.bf16.msra.mxu0 %v637
    %2169 = vmatpush.bf16.msra.mxu0 %v634
    %2170 = vmatpush.bf16.msra.mxu0 %v631
    %2171 = vmatpush.bf16.msra.mxu0 %v628
    %2172 = vmatpush.bf16.msra.mxu0 %v625
    %2173 = vmatpush.bf16.msra.mxu0 %v622
    %2174 = vmatmul.bf16.gmra.mxu0 %v2165
    %v2175 = vpop.f32.mrf.mxu0
    %v2176 = vadd.f32 0.0, %v2175
    %v2177 = vpop.f32.mrf.mxu0
    %2178 = vdwg.mxu0
    %2179 = vmatpush.bf16.msra.mxu0 %v644
    %2180 = vmatpush.bf16.msra.mxu0 %v641
    %2181 = vmatpush.bf16.msra.mxu0 %v638
    %2182 = vmatpush.bf16.msra.mxu0 %v635
    %2183 = vmatpush.bf16.msra.mxu0 %v632
    %2184 = vmatpush.bf16.msra.mxu0 %v629
    %2185 = vmatpush.bf16.msra.mxu0 %v626
    %2186 = vmatpush.bf16.msra.mxu0 %v623
    %2187 = vmatmul.bf16.gmra.mxu0 %v2165
    %v2188 = vpop.f32.mrf.mxu0
    %v2189 = vadd.f32 0.0, %v2188
    %v2190 = vpop.f32.mrf.mxu0
    %2191 = vdwg.mxu0
    %2192 = vmatpush.bf16.msra.mxu0 %v645
    %2193 = vmatpush.bf16.msra.mxu0 %v642
    %2194 = vmatpush.bf16.msra.mxu0 %v639
    %2195 = vmatpush.bf16.msra.mxu0 %v636
    %2196 = vmatpush.bf16.msra.mxu0 %v633
    %2197 = vmatpush.bf16.msra.mxu0 %v630
    %2198 = vmatpush.bf16.msra.mxu0 %v627
    %2199 = vmatpush.bf16.msra.mxu0 %v624
    %2200 = vmatmul.bf16.gmra.mxu0 %v2165
    %v2201 = vpop.f32.mrf.mxu0
    %v2202 = vadd.f32 0.0, %v2201
    %v2203 = vpop.f32.mrf.mxu0
    %2204 = vdwg.mxu0
    %v2205 = vadd.f32 %v2155, %v2176
    %v2206 = vxor.u32 %v2205, 2147483648
    %v2207 = vmul.f32 %v2206, 1.442695
    %v2208 = vpow.pop %v2207
    %v2209 = vadd.f32 %v2208, 1.0
    %v2210 = vrcp.pop %v2209
    %v2211 = vmul.f32 %v2209, %v2210
    %v2212 = vsub.f32 1.0, %v2211
    %v2213 = vmul.f32 %v2210, %v2212
    %v2214 = vadd.f32 %v2210, %v2213
    %vm2215 = vweird.f32 %v2209
    %vm2216 = vweird.f32 %v2210
    %vm2217 = vmor %vm2215, %vm2216
    %v2218 = vsel %vm2217, %v2210, %v2214
    %v2219 = vand.u32 2147483647, %v2209
    %vm2220 = vcmp.eq.f32.partialorder %v2219, 8.507059e+37
    %v2221 = vand.u32 %v2209, 2147483648
    %v2222 = vor.u32 1.1754944e-38, %v2221
    %v2223 = vsel %vm2220, %v2222, %v2218
    %v2224 = vmul.f32 1.0, %v2223
    %v2225 = vadd.f32 %v2156, %v2189
    %v2226 = vxor.u32 %v2225, 2147483648
    %v2227 = vmul.f32 %v2226, 1.442695
    %v2228 = vpow.pop %v2227
    %v2229 = vadd.f32 %v2228, 1.0
    %v2230 = vrcp.pop %v2229
    %v2231 = vmul.f32 %v2229, %v2230
    %v2232 = vsub.f32 1.0, %v2231
    %v2233 = vmul.f32 %v2230, %v2232
    %v2234 = vadd.f32 %v2230, %v2233
    %vm2235 = vweird.f32 %v2229
    %vm2236 = vweird.f32 %v2230
    %vm2237 = vmor %vm2235, %vm2236
    %v2238 = vsel %vm2237, %v2230, %v2234
    %v2239 = vand.u32 2147483647, %v2229
    %vm2240 = vcmp.eq.f32.partialorder %v2239, 8.507059e+37
    %v2241 = vand.u32 %v2229, 2147483648
    %v2242 = vor.u32 1.1754944e-38, %v2241
    %v2243 = vsel %vm2240, %v2242, %v2238
    %v2244 = vmul.f32 1.0, %v2243
    %v2245 = vadd.f32 %v2202, %v750
    %v2246 = vmul.f32 %v2224, %v2245
    %v2247 = vadd.f32 %v2157, %v2246
    %v2248 = vtanh.pop %v2247
    %v2249 = vsub.f32 1.0, %v2244
    %v2250 = vmul.f32 %v2249, %v2248
    %v2251 = vmul.f32 %v2244, %v2058
    %v2252 = vadd.f32 %v2250, %v2251
    %v2253 = vpack.c.bf16 %v2146, %v2146
    %2254 = vmatpush.bf16.msra.mxu0 %v861
    %2255 = vmatpush.bf16.msra.mxu0 %v858
    %2256 = vmatpush.bf16.msra.mxu0 %v855
    %2257 = vmatpush.bf16.msra.mxu0 %v852
    %2258 = vmatpush.bf16.msra.mxu0 %v849
    %2259 = vmatpush.bf16.msra.mxu0 %v846
    %2260 = vmatpush.bf16.msra.mxu0 %v843
    %2261 = vmatpush.bf16.msra.mxu0 %v840
    %2262 = vmatmul.bf16.gmra.mxu0 %v2253
    %v2263 = vpop.f32.mrf.mxu0
    %v2264 = vadd.f32 0.0, %v2263
    %v2265 = vpop.f32.mrf.mxu0
    %2266 = vdwg.mxu0
    %2267 = vmatpush.bf16.msra.mxu0 %v862
    %2268 = vmatpush.bf16.msra.mxu0 %v859
    %2269 = vmatpush.bf16.msra.mxu0 %v856
    %2270 = vmatpush.bf16.msra.mxu0 %v853
    %2271 = vmatpush.bf16.msra.mxu0 %v850
    %2272 = vmatpush.bf16.msra.mxu0 %v847
    %2273 = vmatpush.bf16.msra.mxu0 %v844
    %2274 = vmatpush.bf16.msra.mxu0 %v841
    %2275 = vmatmul.bf16.gmra.mxu0 %v2253
    %v2276 = vpop.f32.mrf.mxu0
    %v2277 = vadd.f32 0.0, %v2276
    %v2278 = vpop.f32.mrf.mxu0
    %2279 = vdwg.mxu0
    %2280 = vmatpush.bf16.msra.mxu0 %v863
    %2281 = vmatpush.bf16.msra.mxu0 %v860
    %2282 = vmatpush.bf16.msra.mxu0 %v857
    %2283 = vmatpush.bf16.msra.mxu0 %v854
    %2284 = vmatpush.bf16.msra.mxu0 %v851
    %2285 = vmatpush.bf16.msra.mxu0 %v848
    %2286 = vmatpush.bf16.msra.mxu0 %v845
    %2287 = vmatpush.bf16.msra.mxu0 %v842
    %2288 = vmatmul.bf16.gmra.mxu0 %v2253
    %v2289 = vpop.f32.mrf.mxu0
    %v2290 = vadd.f32 0.0, %v2289
    %v2291 = vpop.f32.mrf.mxu0
    %2292 = vdwg.mxu0
    %v2293 = vadd.f32 %v2162, %v2264
    %v2294 = vxor.u32 %v2293, 2147483648
    %v2295 = vmul.f32 %v2294, 1.442695
    %v2296 = vpow.pop %v2295
    %v2297 = vadd.f32 %v2296, 1.0
    %v2298 = vrcp.pop %v2297
    %v2299 = vmul.f32 %v2297, %v2298
    %v2300 = vsub.f32 1.0, %v2299
    %v2301 = vmul.f32 %v2298, %v2300
    %v2302 = vadd.f32 %v2298, %v2301
    %vm2303 = vweird.f32 %v2297
    %vm2304 = vweird.f32 %v2298
    %vm2305 = vmor %vm2303, %vm2304
    %v2306 = vsel %vm2305, %v2298, %v2302
    %v2307 = vand.u32 2147483647, %v2297
    %vm2308 = vcmp.eq.f32.partialorder %v2307, 8.507059e+37
    %v2309 = vand.u32 %v2297, 2147483648
    %v2310 = vor.u32 1.1754944e-38, %v2309
    %v2311 = vsel %vm2308, %v2310, %v2306
    %v2312 = vmul.f32 1.0, %v2311
    %v2313 = vadd.f32 %v2163, %v2277
    %v2314 = vxor.u32 %v2313, 2147483648
    %v2315 = vmul.f32 %v2314, 1.442695
    %v2316 = vpow.pop %v2315
    %v2317 = vadd.f32 %v2316, 1.0
    %v2318 = vrcp.pop %v2317
    %v2319 = vmul.f32 %v2317, %v2318
    %v2320 = vsub.f32 1.0, %v2319
    %v2321 = vmul.f32 %v2318, %v2320
    %v2322 = vadd.f32 %v2318, %v2321
    %vm2323 = vweird.f32 %v2317
    %vm2324 = vweird.f32 %v2318
    %vm2325 = vmor %vm2323, %vm2324
    %v2326 = vsel %vm2325, %v2318, %v2322
    %v2327 = vand.u32 2147483647, %v2317
    %vm2328 = vcmp.eq.f32.partialorder %v2327, 8.507059e+37
    %v2329 = vand.u32 %v2317, 2147483648
    %v2330 = vor.u32 1.1754944e-38, %v2329
    %v2331 = vsel %vm2328, %v2330, %v2326
    %v2332 = vmul.f32 1.0, %v2331
    %v2333 = vadd.f32 %v2290, %v968
    %v2334 = vmul.f32 %v2312, %v2333
    %v2335 = vadd.f32 %v2164, %v2334
    %v2336 = vtanh.pop %v2335
    %v2337 = vsub.f32 1.0, %v2332
    %v2338 = vmul.f32 %v2337, %v2336
    %v2339 = vmul.f32 %v2332, %v2146
    %v2340 = vadd.f32 %v2338, %v2339
    %s2341 = scalar_lea.vmem [#allocation13], 56
    %2342 = vst [vmem:[%s2341] sm:$0xff] %v2252
    %2343 = vst [vmem:[#allocation14] sm:$0xff] %v2340
    %v2344 = vld [vmem:[#allocation10] sm:$0xff]
    %v2345 = vld [vmem:[#allocation10 + $0x8] sm:$0xff]
    %v2346 = vld [vmem:[#allocation10 + $0x10] sm:$0xff]
    %v2347 = vld [vmem:[#allocation10 + $0x18] sm:$0xff]
    %v2348 = vld [vmem:[#allocation10 + $0x20] sm:$0xff]
    %v2349 = vld [vmem:[#allocation10 + $0x28] sm:$0xff]
    %v2350 = vld [vmem:[#allocation10 + $0x30] sm:$0xff]
    %v2351 = vld [vmem:[#allocation10 + $0x38] sm:$0xff]
    %v2352 = vld [vmem:[#allocation10 + $0x40] sm:$0xff]
    %v2353 = vld [vmem:[#allocation10 + $0x48] sm:$0xff]
    %v2354 = vld [vmem:[#allocation10 + $0x50] sm:$0xff]
    %v2355 = vld [vmem:[#allocation10 + $0x58] sm:$0xff]
    %v2356 = vld [vmem:[#allocation10 + $0x60] sm:$0xff]
    %v2357 = vld [vmem:[#allocation10 + $0x68] sm:$0xff]
    %v2358 = vld [vmem:[#allocation10 + $0x70] sm:$0xff]
    %v2359 = vld [vmem:[#allocation10 + $0x78] sm:$0xff]
    %v2360 = vld [vmem:[#allocation12] sm:$0xff]
    %v2361 = vld [vmem:[#allocation12 + $0x8] sm:$0xff]
    %v2362 = vld [vmem:[#allocation12 + $0x10] sm:$0xff]
    %v2363 = vld [vmem:[#allocation12 + $0x18] sm:$0xff]
    %v2364 = vld [vmem:[#allocation12 + $0x20] sm:$0xff]
    %v2365 = vld [vmem:[#allocation12 + $0x28] sm:$0xff]
    %v2366 = vld [vmem:[#allocation12 + $0x30] sm:$0xff]
    %v2367 = vld [vmem:[#allocation12 + $0x38] sm:$0xff]
    %v2368 = vld [vmem:[#allocation12 + $0x40] sm:$0xff]
    %v2369 = vld [vmem:[#allocation12 + $0x48] sm:$0xff]
    %v2370 = vld [vmem:[#allocation12 + $0x50] sm:$0xff]
    %v2371 = vld [vmem:[#allocation12 + $0x58] sm:$0xff]
    %v2372 = vld [vmem:[#allocation12 + $0x60] sm:$0xff]
    %v2373 = vld [vmem:[#allocation12 + $0x68] sm:$0xff]
    %v2374 = vld [vmem:[#allocation12 + $0x70] sm:$0xff]
    %v2375 = vld [vmem:[#allocation12 + $0x78] sm:$0xff]
    %2376 = vmatpush.msra.mxu0 %v2375
    %2377 = vmatpush.msra.mxu0 %v2374
    %2378 = vmatpush.msra.mxu0 %v2373
    %2379 = vmatpush.msra.mxu0 %v2372
    %2380 = vmatpush.msra.mxu0 %v2371
    %2381 = vmatpush.msra.mxu0 %v2370
    %2382 = vmatpush.msra.mxu0 %v2369
    %2383 = vmatpush.msra.mxu0 %v2368
    %2384 = vmatpush.msra.mxu0 %v2367
    %2385 = vmatpush.msra.mxu0 %v2366
    %2386 = vmatpush.msra.mxu0 %v2365
    %2387 = vmatpush.msra.mxu0 %v2364
    %2388 = vmatpush.msra.mxu0 %v2363
    %2389 = vmatpush.msra.mxu0 %v2362
    %2390 = vmatpush.msra.mxu0 %v2361
    %2391 = vmatpush.msra.mxu0 %v2360
    %2392 = vmatmul.f32.gmra.mxu0 %v2340
    %v2393 = vpop.f32.mrf.mxu0
    %v2394 = vadd.f32 0.0, %v2393
    %2395 = vdwg.mxu0
    %2396 = vmatpush.msra.mxu0 %v2359
    %2397 = vmatpush.msra.mxu0 %v2358
    %2398 = vmatpush.msra.mxu0 %v2357
    %2399 = vmatpush.msra.mxu0 %v2356
    %2400 = vmatpush.msra.mxu0 %v2355
    %2401 = vmatpush.msra.mxu0 %v2354
    %2402 = vmatpush.msra.mxu0 %v2353
    %2403 = vmatpush.msra.mxu0 %v2352
    %2404 = vmatpush.msra.mxu0 %v2351
    %2405 = vmatpush.msra.mxu0 %v2350
    %2406 = vmatpush.msra.mxu0 %v2349
    %2407 = vmatpush.msra.mxu0 %v2348
    %2408 = vmatpush.msra.mxu0 %v2347
    %2409 = vmatpush.msra.mxu0 %v2346
    %2410 = vmatpush.msra.mxu0 %v2345
    %2411 = vmatpush.msra.mxu0 %v2344
    %2412 = vmatmul.f32.gmra.mxu0 %v2252
    %v2413 = vpop.f32.mrf.mxu0
    %v2414 = vadd.f32 %v2394, %v2413
    %2415 = vdwg.mxu0
    %v2416 = vld [vmem:[%s11] sm:$0x1]
    %v2418 = vperm.slane %v2416, 0
    %v2420 = vadd.f32 %v2414, %v2418
    %v2421 = vtanh.pop %v2420
    %2422 = vst [vmem:[#allocation16] sm:$0xff] %v2421
    // Predicated region
    $region70: #{tpu_custom_call.1} parent=1 // pred_check
      _
    $region71: #{tpu_custom_call.1} parent=1 // pred_check_branch
      %2424 = sbr.rel (0) target = $region73
    $region72: #{tpu_custom_call.1} parent=1 // pred_region
      %2426 = vsyncadd [#allocation6], 0
      %s2427 = sshll.u32 [#allocation13], 4
      %s2428 = int_to_ptr.vmem [resolvable:$true] %s2427
      %s2429 = sshll.u32 %s12, 4
      %s2430 = int_to_ptr.hbm [resolvable:$true] %s2429
      %2435 = dma.vmem_to_hbm [thread:$0]  %s2428, 1024, %s2430, [#allocation6], 128, 128, 8
    $region73: #{tpu_custom_call.1} parent=1 // pred_fallthru
      _
    // Predicated region
    $region74: #{tpu_custom_call.1} parent=1 // pred_check
      _
    $region75: #{tpu_custom_call.1} parent=1 // pred_check_branch
      %2437 = sbr.rel (0) target = $region77
    $region76: #{tpu_custom_call.1} parent=1 // pred_region
      %2439 = vsyncadd [#allocation15], 0
      %s2440 = sshll.u32 [#allocation14], 4
      %s2441 = int_to_ptr.vmem [resolvable:$true] %s2440
      %s2442 = sshll.u32 %s13, 4
      %s2443 = int_to_ptr.hbm [resolvable:$true] %s2442
      %2448 = dma.vmem_to_hbm [thread:$0]  %s2441, 1024, %s2443, [#allocation15], 128, 128, 8
    $region77: #{tpu_custom_call.1} parent=1 // pred_fallthru
      _
    // Predicated region
    $region78: #{tpu_custom_call.1} parent=1 // pred_check
      _
    $region79: #{tpu_custom_call.1} parent=1 // pred_check_branch
      %2450 = sbr.rel (0) target = $region81
    $region80: #{tpu_custom_call.1} parent=1 // pred_region
      %2452 = vsyncadd [#allocation15], 0
      %s2454 = sshll.u32 [#allocation16], 4
      %s2455 = int_to_ptr.vmem [resolvable:$true] %s2454
      %s2456 = sshll.u32 %s14, 4
      %s2457 = int_to_ptr.hbm [resolvable:$true] %s2456
      %2459 = dma.vmem_to_hbm [thread:$0]  %s2455, 128, %s2457, [#allocation15]
    $region81: #{tpu_custom_call.1} parent=1 // pred_fallthru
      _
    // Predicated region
    $region82: #{tpu_custom_call.1} parent=1 // pred_check
      _
    $region83: #{tpu_custom_call.1} parent=1 // pred_check_branch
      %2461 = sbr.rel (0) target = $region85
    $region84: #{tpu_custom_call.1} parent=1 // pred_region
      %2463 = dma.done [#allocation6], 1024
    $region85: #{tpu_custom_call.1} parent=1 // pred_fallthru
      _
    // Predicated region
    $region86: #{tpu_custom_call.1} parent=1 // pred_check
      _
    $region87: #{tpu_custom_call.1} parent=1 // pred_check_branch
      %2465 = sbr.rel (0) target = $region89
    $region88: #{tpu_custom_call.1} parent=1 // pred_region
      %2467 = dma.done [#allocation15], 1024
    $region89: #{tpu_custom_call.1} parent=1 // pred_fallthru
      _
    // Predicated region
    $region90: #{tpu_custom_call.1} parent=1 // pred_check
      _
    $region91: #{tpu_custom_call.1} parent=1 // pred_check_branch
      %2469 = sbr.rel (0) target = $region93
    $region92: #{tpu_custom_call.1} parent=1 // pred_region
      %2471 = dma.done [#allocation15], 128
    $region93: #{tpu_custom_call.1} parent=1 // pred_fallthru
      _
    %2472 = vsyncpa [#allocation5], 1
    %2473 = vsyncpa [#allocation8], 1
    %2474 = vsyncpa [#allocation11], 1
    %2475 = vsyncpa [#allocation6], 1
    %2476 = vsyncpa [#allocation15], 1

</llo_original>
